<compile_context>
chip_gen: v7x
topology: tpu7x:2x2x1
jax: 0.10.0
libtpu: 0.0.40
codegen_flags: <defaults>
</compile_context>

<pallas_src>
import jax
import jax.numpy as jnp
from jax.experimental import pallas as pl
from jax.experimental.pallas import tpu as pltpu


def _tap_conv_pallas(xflat, wt, shift, *, k, wpp, m):
    """Fused stride-1 conv (tap-wise matmul accumulation) + shift + ReLU.

    xflat: (N, R, Cin) bf16  zero-padded image, rows flattened as h*wpp + w.
    wt:    (k*k, Cin, Cout) bf16  tap-major weights, tap index = kh*k + kw.
    shift: (Cout,) f32  bias (conv1/conv2) or folded BN shift (conv3).
    Returns (N, m, Cout) f32 with m = OH*wpp; column j of each output row is
    the conv output at width position j (valid for j < OW, garbage after).
    """
    n, r, cin = xflat.shape
    ntaps, cin_w, cout = wt.shape
    assert ntaps == k * k and cin_w == cin

    def kernel(x_ref, w_ref, b_ref, o_ref):
        # x_ref: (R, Cin) bf16, w_ref: (k*k, Cin, Cout) bf16,
        # b_ref: (1, Cout) f32,  o_ref: (m, Cout) f32.
        acc = jnp.zeros((m, cout), jnp.float32)
        t = 0
        for kh in range(k):
            for kw in range(k):
                # Contiguous static window: rows (oh+kh)*wpp + (j+kw) for all
                # (oh, j) — a single flat slice of length m.
                win = x_ref[pl.ds(kh * wpp + kw, m), :]           # (m, Cin)
                acc = acc + jnp.dot(win, w_ref[t],
                                    preferred_element_type=jnp.float32)
                t += 1
        o_ref[...] = jnp.maximum(acc + b_ref[...], 0.0)

    return pl.pallas_call(
        kernel,
        out_shape=jax.ShapeDtypeStruct((n, m, cout), jnp.float32),
        grid_spec=pltpu.PrefetchScalarGridSpec(
            num_scalar_prefetch=0,
            grid=(n,),
            in_specs=[
                pl.BlockSpec((None, r, cin), lambda i: (i, 0, 0)),
                pl.BlockSpec((ntaps, cin, cout), lambda i: (0, 0, 0)),
                pl.BlockSpec((1, cout), lambda i: (0, 0)),
            ],
            out_specs=pl.BlockSpec((None, m, cout), lambda i: (i, 0, 0)),
        ),
        compiler_params=pltpu.CompilerParams(
            dimension_semantics=("parallel",),
            vmem_limit_bytes=32 * 1024 * 1024),
    )(xflat, wt, shift.reshape(1, cout).astype(jnp.float32))


def _stride1_conv_relu(x, w_oihw, shift, *, pad):
    """k x k, stride-1, symmetric-pad conv + shift + ReLU (NHWC in/out)."""
    n, h, w, cin = x.shape
    cout, cin_w, k, _ = w_oihw.shape
    assert cin_w == cin
    oh = h + 2 * pad - k + 1
    ow = w + 2 * pad - k + 1
    wpp = w + 2 * pad
    # One extra zero row at the bottom guards the flattened-window overrun of
    # the last tap (those reads only feed the discarded j >= ow columns).
    xp = jnp.pad(x, ((0, 0), (pad, pad + 1), (pad, pad), (0, 0)))
    xflat = xp.reshape(n, (h + 2 * pad + 1) * wpp, cin).astype(jnp.bfloat16)
    wt = jnp.transpose(w_oihw, (2, 3, 1, 0)).reshape(k * k, cin, cout)
    out = _tap_conv_pallas(xflat, wt.astype(jnp.bfloat16), shift,
                           k=k, wpp=wpp, m=oh * wpp)
    return out.reshape(n, oh, wpp, cout)[:, :, :ow, :]


def _conv_k4s2p1_relu(x, w_oihw, bias):
    """4x4, stride-2, pad-1 conv + bias + ReLU via space-to-depth -> 2x2 s1."""
    n, h, w, cin = x.shape
    cout = w_oihw.shape[0]
    assert h % 2 == 0 and w % 2 == 0
    oh, ow = h // 2, w // 2
    # pad: top 1 / bottom 3 (keeps height even AND leaves one guard row after
    # space-to-depth); left/right 1.
    xp = jnp.pad(x, ((0, 0), (1, 3), (1, 1), (0, 0)))
    hp, wp = h + 4, w + 2
    x2 = xp.reshape(n, hp // 2, 2, wp // 2, 2, cin)
    x2 = jnp.transpose(x2, (0, 1, 3, 2, 4, 5)).reshape(
        n, hp // 2, wp // 2, 4 * cin)
    wpp = wp // 2                                        # = ow + 1
    xflat = x2.reshape(n, (hp // 2) * wpp, 4 * cin).astype(jnp.bfloat16)
    # Weights: (cout, cin, 4, 4) -> taps (a, b) of the 2x2 stride-1 conv,
    # features ordered (ph, pw, cin) to match the space-to-depth packing:
    # x2[n, i, j, (ph*2+pw)*cin + c] = xp[n, 2i+ph, 2j+pw, c].
    wk = jnp.transpose(w_oihw, (2, 3, 1, 0))             # (kh, kw, cin, cout)
    wk = wk.reshape(2, 2, 2, 2, cin, cout)               # (a, ph, b, pw, c, o)
    wk = jnp.transpose(wk, (0, 2, 1, 3, 4, 5))           # (a, b, ph, pw, c, o)
    wt = wk.reshape(4, 4 * cin, cout)
    out = _tap_conv_pallas(xflat, wt.astype(jnp.bfloat16), bias,
                           k=2, wpp=wpp, m=oh * wpp)
    return out.reshape(n, oh, wpp, cout)[:, :, :ow, :]


def conv_down_forward(x_nchw, params):
    x = jnp.transpose(x_nchw, (0, 2, 3, 1)).astype(jnp.float32)  # NCHW -> NHWC
    # QuantStub(scale=1/128): identity in float mode.
    # conv1: k=4, s=2, p=1, bias, ReLU
    x = _conv_k4s2p1_relu(x, params["w1"], params["b1"])
    # conv2: k=3, s=1, p=1, bias, ReLU
    x = _stride1_conv_relu(x, params["w2"], params["b2"], pad=1)
    # conv3 (no bias) + BN(eval) + ReLU; BN scale folded into weights.
    eps = 1e-5
    bn_scale = params["gamma"] * jax.lax.rsqrt(params["var"] + eps)
    bn_shift = params["beta"] - params["mean"] * bn_scale
    w3 = params["w3"] * bn_scale[:, None, None, None]
    x = _stride1_conv_relu(x, w3, bn_shift, pad=1)
    return jnp.transpose(x, (0, 3, 1, 2))                # back to NCHW


def conv_down_reference(x, params):
    # Pure-JAX f32 reference (lax conv) for correctness checking.
    def conv(x, w, stride, pad, b=None):
        y = jax.lax.conv_general_dilated(
            x, w, window_strides=(stride, stride),
            padding=[(pad, pad), (pad, pad)],
            dimension_numbers=("NCHW", "OIHW", "NCHW"))
        if b is not None:
            y = y + b[None, :, None, None]
        return y
    y = jax.nn.relu(conv(x, params["w1"], 2, 1, params["b1"]))
    y = jax.nn.relu(conv(y, params["w2"], 1, 1, params["b2"]))
    y = conv(y, params["w3"], 1, 1)
    eps = 1e-5
    y = (y - params["mean"][None, :, None, None]) / jnp.sqrt(
        params["var"][None, :, None, None] + eps)
    y = y * params["gamma"][None, :, None, None] + params["beta"][None, :, None, None]
    return jax.nn.relu(y)


def make_params(key, in_dim, mid_dim, out_dim):
    ks = jax.random.split(key, 8)
    return {
        "w1": 0.1 * jax.random.normal(ks[0], (mid_dim, in_dim, 4, 4), jnp.float32),
        "b1": 0.1 * jax.random.normal(ks[1], (mid_dim,), jnp.float32),
        "w2": 0.1 * jax.random.normal(ks[2], (out_dim, mid_dim, 3, 3), jnp.float32),
        "b2": 0.1 * jax.random.normal(ks[3], (out_dim,), jnp.float32),
        "w3": 0.1 * jax.random.normal(ks[4], (out_dim, out_dim, 3, 3), jnp.float32),
        "gamma": 1.0 + 0.1 * jax.random.normal(ks[5], (out_dim,), jnp.float32),
        "beta": 0.1 * jax.random.normal(ks[6], (out_dim,), jnp.float32),
        "mean": 0.05 * jax.random.normal(ks[7], (out_dim,), jnp.float32),
        "var": jnp.linspace(0.5, 1.5, out_dim, dtype=jnp.float32),
    }


if __name__ == "__main__":
    key = jax.random.PRNGKey(0)
    kx, kp = jax.random.split(key)
    in_dim, mid_dim, out_dim = 4, 8, 16
    x = jax.random.normal(kx, (2, in_dim, 16, 16), jnp.float32)   # NCHW
    params = make_params(kp, in_dim, mid_dim, out_dim)

    fwd = jax.jit(conv_down_forward)
    out = jax.block_until_ready(fwd(x, params))
    ref = jax.block_until_ready(conv_down_reference(x, params))

    assert out.shape == (2, out_dim, 8, 8), out.shape
    max_err = float(jnp.max(jnp.abs(out - ref)))
    # bf16 matmul inputs with f32 accumulation -> relaxed tolerance vs f32 ref.
    assert jnp.allclose(out, ref, atol=5e-2, rtol=5e-2), max_err
    print("KERNEL_OK")
</pallas_src>

<mosaic_0001>
module attributes {stable_mosaic.version = 11 : i64} {
  func.func @kernel(%arg0: i32, %arg1: memref<1x90x16xbf16, #tpu.memory_space<vmem>>, %arg2: memref<4x16x8xbf16, #tpu.memory_space<vmem>>, %arg3: memref<1x8xf32, #tpu.memory_space<vmem>>, %arg4: memref<1x72x8xf32, #tpu.memory_space<vmem>>) attributes {dimension_semantics = [#tpu.dimension_semantics<parallel>], iteration_bounds = array<i64: 2>, scalar_prefetch = 0 : i64, scratch_operands = 0 : i64, tpu.core_type = #tpu.core_type<tc>, window_params = [{transform_indices = @transform_0, window_bounds = array<i64: 1, 90, 16>}, {pipeline_mode = #tpu.pipeline_mode<synchronous>, transform_indices = @transform_1, window_bounds = array<i64: 4, 16, 8>}, {pipeline_mode = #tpu.pipeline_mode<synchronous>, transform_indices = @transform_2, window_bounds = array<i64: 1, 8>}, {transform_indices = @transform_3, window_bounds = array<i64: 1, 72, 8>}]} {
    %cst = arith.constant 0.000000e+00 : f32
    %0 = vector.broadcast %cst : f32 to vector<72x8xf32>
    %c0 = arith.constant 0 : index
    %c0_0 = arith.constant 0 : index
    %c0_1 = arith.constant 0 : index
    %1 = vector.load %arg1[%c0, %c0_0, %c0_1] : memref<1x90x16xbf16, #tpu.memory_space<vmem>>, vector<1x72x16xbf16>
    %2 = vector.shape_cast %1 : vector<1x72x16xbf16> to vector<72x16xbf16>
    %c0_2 = arith.constant 0 : index
    %c0_3 = arith.constant 0 : index
    %c0_4 = arith.constant 0 : index
    %3 = vector.load %arg2[%c0_2, %c0_3, %c0_4] : memref<4x16x8xbf16, #tpu.memory_space<vmem>>, vector<1x16x8xbf16>
    %4 = vector.shape_cast %3 : vector<1x16x8xbf16> to vector<16x8xbf16>
    %cst_5 = arith.constant dense<0.000000e+00> : vector<72x8xf32>
    %5 = tpu.matmul %2, %4, %cst_5 {dimension_numbers = #tpu.dot_dimension_numbers<[1], [0], [0], [1], [0, 0, 1, 1], [], []>} : vector<72x16xbf16>, vector<16x8xbf16>, vector<72x8xf32> -> vector<72x8xf32>
    %6 = arith.addf %0, %5 : vector<72x8xf32>
    %c0_6 = arith.constant 0 : index
    %c1 = arith.constant 1 : index
    %c0_7 = arith.constant 0 : index
    %7 = vector.load %arg1[%c0_6, %c1, %c0_7] : memref<1x90x16xbf16, #tpu.memory_space<vmem>>, vector<1x72x16xbf16>
    %8 = vector.shape_cast %7 : vector<1x72x16xbf16> to vector<72x16xbf16>
    %c1_8 = arith.constant 1 : index
    %c0_9 = arith.constant 0 : index
    %c0_10 = arith.constant 0 : index
    %9 = vector.load %arg2[%c1_8, %c0_9, %c0_10] : memref<4x16x8xbf16, #tpu.memory_space<vmem>>, vector<1x16x8xbf16>
    %10 = vector.shape_cast %9 : vector<1x16x8xbf16> to vector<16x8xbf16>
    %cst_11 = arith.constant dense<0.000000e+00> : vector<72x8xf32>
    %11 = tpu.matmul %8, %10, %cst_11 {dimension_numbers = #tpu.dot_dimension_numbers<[1], [0], [0], [1], [0, 0, 1, 1], [], []>} : vector<72x16xbf16>, vector<16x8xbf16>, vector<72x8xf32> -> vector<72x8xf32>
    %12 = arith.addf %6, %11 : vector<72x8xf32>
    %c0_12 = arith.constant 0 : index
    %c9 = arith.constant 9 : index
    %c0_13 = arith.constant 0 : index
    %13 = vector.load %arg1[%c0_12, %c9, %c0_13] : memref<1x90x16xbf16, #tpu.memory_space<vmem>>, vector<1x72x16xbf16>
    %14 = vector.shape_cast %13 : vector<1x72x16xbf16> to vector<72x16xbf16>
    %c2 = arith.constant 2 : index
    %c0_14 = arith.constant 0 : index
    %c0_15 = arith.constant 0 : index
    %15 = vector.load %arg2[%c2, %c0_14, %c0_15] : memref<4x16x8xbf16, #tpu.memory_space<vmem>>, vector<1x16x8xbf16>
    %16 = vector.shape_cast %15 : vector<1x16x8xbf16> to vector<16x8xbf16>
    %cst_16 = arith.constant dense<0.000000e+00> : vector<72x8xf32>
    %17 = tpu.matmul %14, %16, %cst_16 {dimension_numbers = #tpu.dot_dimension_numbers<[1], [0], [0], [1], [0, 0, 1, 1], [], []>} : vector<72x16xbf16>, vector<16x8xbf16>, vector<72x8xf32> -> vector<72x8xf32>
    %18 = arith.addf %12, %17 : vector<72x8xf32>
    %c0_17 = arith.constant 0 : index
    %c10 = arith.constant 10 : index
    %c0_18 = arith.constant 0 : index
    %19 = vector.load %arg1[%c0_17, %c10, %c0_18] : memref<1x90x16xbf16, #tpu.memory_space<vmem>>, vector<1x72x16xbf16>
    %20 = vector.shape_cast %19 : vector<1x72x16xbf16> to vector<72x16xbf16>
    %c3 = arith.constant 3 : index
    %c0_19 = arith.constant 0 : index
    %c0_20 = arith.constant 0 : index
    %21 = vector.load %arg2[%c3, %c0_19, %c0_20] : memref<4x16x8xbf16, #tpu.memory_space<vmem>>, vector<1x16x8xbf16>
    %22 = vector.shape_cast %21 : vector<1x16x8xbf16> to vector<16x8xbf16>
    %cst_21 = arith.constant dense<0.000000e+00> : vector<72x8xf32>
    %23 = tpu.matmul %20, %22, %cst_21 {dimension_numbers = #tpu.dot_dimension_numbers<[1], [0], [0], [1], [0, 0, 1, 1], [], []>} : vector<72x16xbf16>, vector<16x8xbf16>, vector<72x8xf32> -> vector<72x8xf32>
    %24 = arith.addf %18, %23 : vector<72x8xf32>
    %c0_22 = arith.constant 0 : index
    %c0_23 = arith.constant 0 : index
    %25 = vector.load %arg3[%c0_22, %c0_23] : memref<1x8xf32, #tpu.memory_space<vmem>>, vector<1x8xf32>
    %26 = vector.broadcast %25 : vector<1x8xf32> to vector<72x8xf32>
    %27 = arith.addf %24, %26 : vector<72x8xf32>
    %cst_24 = arith.constant 0.000000e+00 : f32
    %28 = vector.broadcast %cst_24 : f32 to vector<72x8xf32>
    %29 = arith.maximumf %27, %28 : vector<72x8xf32>
    %c0_25 = arith.constant 0 : index
    %c0_26 = arith.constant 0 : index
    %c0_27 = arith.constant 0 : index
    %30 = vector.load %arg4[%c0_25, %c0_26, %c0_27] : memref<1x72x8xf32, #tpu.memory_space<vmem>>, vector<1x72x8xf32>
    %31 = vector.shape_cast %30 : vector<1x72x8xf32> to vector<72x8xf32>
    %32 = vector.shape_cast %29 : vector<72x8xf32> to vector<1x72x8xf32>
    tpu.vector_store %arg4[%c0_25, %c0_26, %c0_27], %32 {strides = array<i32>} : memref<1x72x8xf32, #tpu.memory_space<vmem>>, vector<1x72x8xf32>,
    return
  }
  func.func @transform_0(%arg0: i32) -> (i32, i32, i32) {
    %c0_i32 = arith.constant 0 : i32
    %c0_i32_0 = arith.constant 0 : i32
    %c0_i32_1 = arith.constant 0 : i32
    return %arg0, %c0_i32, %c0_i32_0 : i32, i32, i32
  }
  func.func @transform_1(%arg0: i32) -> (i32, i32, i32) {
    %c0_i32 = arith.constant 0 : i32
    %c0_i32_0 = arith.constant 0 : i32
    %c0_i32_1 = arith.constant 0 : i32
    %c0_i32_2 = arith.constant 0 : i32
    return %c0_i32, %c0_i32_0, %c0_i32_1 : i32, i32, i32
  }
  func.func @transform_2(%arg0: i32) -> (i32, i32) {
    %c0_i32 = arith.constant 0 : i32
    %c0_i32_0 = arith.constant 0 : i32
    %c0_i32_1 = arith.constant 0 : i32
    return %c0_i32, %c0_i32_0 : i32, i32
  }
  func.func @transform_3(%arg0: i32) -> (i32, i32, i32) {
    %c0_i32 = arith.constant 0 : i32
    %c0_i32_0 = arith.constant 0 : i32
    %c0_i32_1 = arith.constant 0 : i32
    return %arg0, %c0_i32, %c0_i32_0 : i32, i32, i32
  }
}

module attributes {stable_mosaic.version = 11 : i64} {
  func.func @kernel(%arg0: i32, %arg1: memref<1x110x8xbf16, #tpu.memory_space<vmem>>, %arg2: memref<9x8x16xbf16, #tpu.memory_space<vmem>>, %arg3: memref<1x16xf32, #tpu.memory_space<vmem>>, %arg4: memref<1x80x16xf32, #tpu.memory_space<vmem>>) attributes {dimension_semantics = [#tpu.dimension_semantics<parallel>], iteration_bounds = array<i64: 2>, scalar_prefetch = 0 : i64, scratch_operands = 0 : i64, tpu.core_type = #tpu.core_type<tc>, window_params = [{transform_indices = @transform_0, window_bounds = array<i64: 1, 110, 8>}, {pipeline_mode = #tpu.pipeline_mode<synchronous>, transform_indices = @transform_1, window_bounds = array<i64: 9, 8, 16>}, {pipeline_mode = #tpu.pipeline_mode<synchronous>, transform_indices = @transform_2, window_bounds = array<i64: 1, 16>}, {transform_indices = @transform_3, window_bounds = array<i64: 1, 80, 16>}]} {
    %cst = arith.constant 0.000000e+00 : f32
    %0 = vector.broadcast %cst : f32 to vector<80x16xf32>
    %c0 = arith.constant 0 : index
    %c0_0 = arith.constant 0 : index
    %c0_1 = arith.constant 0 : index
    %1 = vector.load %arg1[%c0, %c0_0, %c0_1] : memref<1x110x8xbf16, #tpu.memory_space<vmem>>, vector<1x80x8xbf16>
    %2 = vector.shape_cast %1 : vector<1x80x8xbf16> to vector<80x8xbf16>
    %c0_2 = arith.constant 0 : index
    %c0_3 = arith.constant 0 : index
    %c0_4 = arith.constant 0 : index
    %3 = vector.load %arg2[%c0_2, %c0_3, %c0_4] : memref<9x8x16xbf16, #tpu.memory_space<vmem>>, vector<1x8x16xbf16>
    %4 = vector.shape_cast %3 : vector<1x8x16xbf16> to vector<8x16xbf16>
    %cst_5 = arith.constant dense<0.000000e+00> : vector<80x16xf32>
    %5 = tpu.matmul %2, %4, %cst_5 {dimension_numbers = #tpu.dot_dimension_numbers<[1], [0], [0], [1], [0, 0, 1, 1], [], []>} : vector<80x8xbf16>, vector<8x16xbf16>, vector<80x16xf32> -> vector<80x16xf32>
    %6 = arith.addf %0, %5 : vector<80x16xf32>
    %c0_6 = arith.constant 0 : index
    %c1 = arith.constant 1 : index
    %c0_7 = arith.constant 0 : index
    %7 = vector.load %arg1[%c0_6, %c1, %c0_7] : memref<1x110x8xbf16, #tpu.memory_space<vmem>>, vector<1x80x8xbf16>
    %8 = vector.shape_cast %7 : vector<1x80x8xbf16> to vector<80x8xbf16>
    %c1_8 = arith.constant 1 : index
    %c0_9 = arith.constant 0 : index
    %c0_10 = arith.constant 0 : index
    %9 = vector.load %arg2[%c1_8, %c0_9, %c0_10] : memref<9x8x16xbf16, #tpu.memory_space<vmem>>, vector<1x8x16xbf16>
    %10 = vector.shape_cast %9 : vector<1x8x16xbf16> to vector<8x16xbf16>
    %cst_11 = arith.constant dense<0.000000e+00> : vector<80x16xf32>
    %11 = tpu.matmul %8, %10, %cst_11 {dimension_numbers = #tpu.dot_dimension_numbers<[1], [0], [0], [1], [0, 0, 1, 1], [], []>} : vector<80x8xbf16>, vector<8x16xbf16>, vector<80x16xf32> -> vector<80x16xf32>
    %12 = arith.addf %6, %11 : vector<80x16xf32>
    %c0_12 = arith.constant 0 : index
    %c2 = arith.constant 2 : index
    %c0_13 = arith.constant 0 : index
    %13 = vector.load %arg1[%c0_12, %c2, %c0_13] : memref<1x110x8xbf16, #tpu.memory_space<vmem>>, vector<1x80x8xbf16>
    %14 = vector.shape_cast %13 : vector<1x80x8xbf16> to vector<80x8xbf16>
    %c2_14 = arith.constant 2 : index
    %c0_15 = arith.constant 0 : index
    %c0_16 = arith.constant 0 : index
    %15 = vector.load %arg2[%c2_14, %c0_15, %c0_16] : memref<9x8x16xbf16, #tpu.memory_space<vmem>>, vector<1x8x16xbf16>
    %16 = vector.shape_cast %15 : vector<1x8x16xbf16> to vector<8x16xbf16>
    %cst_17 = arith.constant dense<0.000000e+00> : vector<80x16xf32>
    %17 = tpu.matmul %14, %16, %cst_17 {dimension_numbers = #tpu.dot_dimension_numbers<[1], [0], [0], [1], [0, 0, 1, 1], [], []>} : vector<80x8xbf16>, vector<8x16xbf16>, vector<80x16xf32> -> vector<80x16xf32>
    %18 = arith.addf %12, %17 : vector<80x16xf32>
    %c0_18 = arith.constant 0 : index
    %c10 = arith.constant 10 : index
    %c0_19 = arith.constant 0 : index
    %19 = vector.load %arg1[%c0_18, %c10, %c0_19] : memref<1x110x8xbf16, #tpu.memory_space<vmem>>, vector<1x80x8xbf16>
    %20 = vector.shape_cast %19 : vector<1x80x8xbf16> to vector<80x8xbf16>
    %c3 = arith.constant 3 : index
    %c0_20 = arith.constant 0 : index
    %c0_21 = arith.constant 0 : index
    %21 = vector.load %arg2[%c3, %c0_20, %c0_21] : memref<9x8x16xbf16, #tpu.memory_space<vmem>>, vector<1x8x16xbf16>
    %22 = vector.shape_cast %21 : vector<1x8x16xbf16> to vector<8x16xbf16>
    %cst_22 = arith.constant dense<0.000000e+00> : vector<80x16xf32>
    %23 = tpu.matmul %20, %22, %cst_22 {dimension_numbers = #tpu.dot_dimension_numbers<[1], [0], [0], [1], [0, 0, 1, 1], [], []>} : vector<80x8xbf16>, vector<8x16xbf16>, vector<80x16xf32> -> vector<80x16xf32>
    %24 = arith.addf %18, %23 : vector<80x16xf32>
    %c0_23 = arith.constant 0 : index
    %c11 = arith.constant 11 : index
    %c0_24 = arith.constant 0 : index
    %25 = vector.load %arg1[%c0_23, %c11, %c0_24] : memref<1x110x8xbf16, #tpu.memory_space<vmem>>, vector<1x80x8xbf16>
    %26 = vector.shape_cast %25 : vector<1x80x8xbf16> to vector<80x8xbf16>
    %c4 = arith.constant 4 : index
    %c0_25 = arith.constant 0 : index
    %c0_26 = arith.constant 0 : index
    %27 = vector.load %arg2[%c4, %c0_25, %c0_26] : memref<9x8x16xbf16, #tpu.memory_space<vmem>>, vector<1x8x16xbf16>
    %28 = vector.shape_cast %27 : vector<1x8x16xbf16> to vector<8x16xbf16>
    %cst_27 = arith.constant dense<0.000000e+00> : vector<80x16xf32>
    %29 = tpu.matmul %26, %28, %cst_27 {dimension_numbers = #tpu.dot_dimension_numbers<[1], [0], [0], [1], [0, 0, 1, 1], [], []>} : vector<80x8xbf16>, vector<8x16xbf16>, vector<80x16xf32> -> vector<80x16xf32>
    %30 = arith.addf %24, %29 : vector<80x16xf32>
    %c0_28 = arith.constant 0 : index
    %c12 = arith.constant 12 : index
    %c0_29 = arith.constant 0 : index
    %31 = vector.load %arg1[%c0_28, %c12, %c0_29] : memref<1x110x8xbf16, #tpu.memory_space<vmem>>, vector<1x80x8xbf16>
    %32 = vector.shape_cast %31 : vector<1x80x8xbf16> to vector<80x8xbf16>
    %c5 = arith.constant 5 : index
    %c0_30 = arith.constant 0 : index
    %c0_31 = arith.constant 0 : index
    %33 = vector.load %arg2[%c5, %c0_30, %c0_31] : memref<9x8x16xbf16, #tpu.memory_space<vmem>>, vector<1x8x16xbf16>
    %34 = vector.shape_cast %33 : vector<1x8x16xbf16> to vector<8x16xbf16>
    %cst_32 = arith.constant dense<0.000000e+00> : vector<80x16xf32>
    %35 = tpu.matmul %32, %34, %cst_32 {dimension_numbers = #tpu.dot_dimension_numbers<[1], [0], [0], [1], [0, 0, 1, 1], [], []>} : vector<80x8xbf16>, vector<8x16xbf16>, vector<80x16xf32> -> vector<80x16xf32>
    %36 = arith.addf %30, %35 : vector<80x16xf32>
    %c0_33 = arith.constant 0 : index
    %c20 = arith.constant 20 : index
    %c0_34 = arith.constant 0 : index
    %37 = vector.load %arg1[%c0_33, %c20, %c0_34] : memref<1x110x8xbf16, #tpu.memory_space<vmem>>, vector<1x80x8xbf16>
    %38 = vector.shape_cast %37 : vector<1x80x8xbf16> to vector<80x8xbf16>
    %c6 = arith.constant 6 : index
    %c0_35 = arith.constant 0 : index
    %c0_36 = arith.constant 0 : index
    %39 = vector.load %arg2[%c6, %c0_35, %c0_36] : memref<9x8x16xbf16, #tpu.memory_space<vmem>>, vector<1x8x16xbf16>
    %40 = vector.shape_cast %39 : vector<1x8x16xbf16> to vector<8x16xbf16>
    %cst_37 = arith.constant dense<0.000000e+00> : vector<80x16xf32>
    %41 = tpu.matmul %38, %40, %cst_37 {dimension_numbers = #tpu.dot_dimension_numbers<[1], [0], [0], [1], [0, 0, 1, 1], [], []>} : vector<80x8xbf16>, vector<8x16xbf16>, vector<80x16xf32> -> vector<80x16xf32>
    %42 = arith.addf %36, %41 : vector<80x16xf32>
    %c0_38 = arith.constant 0 : index
    %c21 = arith.constant 21 : index
    %c0_39 = arith.constant 0 : index
    %43 = vector.load %arg1[%c0_38, %c21, %c0_39] : memref<1x110x8xbf16, #tpu.memory_space<vmem>>, vector<1x80x8xbf16>
    %44 = vector.shape_cast %43 : vector<1x80x8xbf16> to vector<80x8xbf16>
    %c7 = arith.constant 7 : index
    %c0_40 = arith.constant 0 : index
    %c0_41 = arith.constant 0 : index
    %45 = vector.load %arg2[%c7, %c0_40, %c0_41] : memref<9x8x16xbf16, #tpu.memory_space<vmem>>, vector<1x8x16xbf16>
    %46 = vector.shape_cast %45 : vector<1x8x16xbf16> to vector<8x16xbf16>
    %cst_42 = arith.constant dense<0.000000e+00> : vector<80x16xf32>
    %47 = tpu.matmul %44, %46, %cst_42 {dimension_numbers = #tpu.dot_dimension_numbers<[1], [0], [0], [1], [0, 0, 1, 1], [], []>} : vector<80x8xbf16>, vector<8x16xbf16>, vector<80x16xf32> -> vector<80x16xf32>
    %48 = arith.addf %42, %47 : vector<80x16xf32>
    %c0_43 = arith.constant 0 : index
    %c22 = arith.constant 22 : index
    %c0_44 = arith.constant 0 : index
    %49 = vector.load %arg1[%c0_43, %c22, %c0_44] : memref<1x110x8xbf16, #tpu.memory_space<vmem>>, vector<1x80x8xbf16>
    %50 = vector.shape_cast %49 : vector<1x80x8xbf16> to vector<80x8xbf16>
    %c8 = arith.constant 8 : index
    %c0_45 = arith.constant 0 : index
    %c0_46 = arith.constant 0 : index
    %51 = vector.load %arg2[%c8, %c0_45, %c0_46] : memref<9x8x16xbf16, #tpu.memory_space<vmem>>, vector<1x8x16xbf16>
    %52 = vector.shape_cast %51 : vector<1x8x16xbf16> to vector<8x16xbf16>
    %cst_47 = arith.constant dense<0.000000e+00> : vector<80x16xf32>
    %53 = tpu.matmul %50, %52, %cst_47 {dimension_numbers = #tpu.dot_dimension_numbers<[1], [0], [0], [1], [0, 0, 1, 1], [], []>} : vector<80x8xbf16>, vector<8x16xbf16>, vector<80x16xf32> -> vector<80x16xf32>
    %54 = arith.addf %48, %53 : vector<80x16xf32>
    %c0_48 = arith.constant 0 : index
    %c0_49 = arith.constant 0 : index
    %55 = vector.load %arg3[%c0_48, %c0_49] : memref<1x16xf32, #tpu.memory_space<vmem>>, vector<1x16xf32>
    %56 = vector.broadcast %55 : vector<1x16xf32> to vector<80x16xf32>
    %57 = arith.addf %54, %56 : vector<80x16xf32>
    %cst_50 = arith.constant 0.000000e+00 : f32
    %58 = vector.broadcast %cst_50 : f32 to vector<80x16xf32>
    %59 = arith.maximumf %57, %58 : vector<80x16xf32>
    %c0_51 = arith.constant 0 : index
    %c0_52 = arith.constant 0 : index
    %c0_53 = arith.constant 0 : index
    %60 = vector.load %arg4[%c0_51, %c0_52, %c0_53] : memref<1x80x16xf32, #tpu.memory_space<vmem>>, vector<1x80x16xf32>
    %61 = vector.shape_cast %60 : vector<1x80x16xf32> to vector<80x16xf32>
    %62 = vector.shape_cast %59 : vector<80x16xf32> to vector<1x80x16xf32>
    tpu.vector_store %arg4[%c0_51, %c0_52, %c0_53], %62 {strides = array<i32>} : memref<1x80x16xf32, #tpu.memory_space<vmem>>, vector<1x80x16xf32>,
    return
  }
  func.func @transform_0(%arg0: i32) -> (i32, i32, i32) {
    %c0_i32 = arith.constant 0 : i32
    %c0_i32_0 = arith.constant 0 : i32
    %c0_i32_1 = arith.constant 0 : i32
    return %arg0, %c0_i32, %c0_i32_0 : i32, i32, i32
  }
  func.func @transform_1(%arg0: i32) -> (i32, i32, i32) {
    %c0_i32 = arith.constant 0 : i32
    %c0_i32_0 = arith.constant 0 : i32
    %c0_i32_1 = arith.constant 0 : i32
    %c0_i32_2 = arith.constant 0 : i32
    return %c0_i32, %c0_i32_0, %c0_i32_1 : i32, i32, i32
  }
  func.func @transform_2(%arg0: i32) -> (i32, i32) {
    %c0_i32 = arith.constant 0 : i32
    %c0_i32_0 = arith.constant 0 : i32
    %c0_i32_1 = arith.constant 0 : i32
    return %c0_i32, %c0_i32_0 : i32, i32
  }
  func.func @transform_3(%arg0: i32) -> (i32, i32, i32) {
    %c0_i32 = arith.constant 0 : i32
    %c0_i32_0 = arith.constant 0 : i32
    %c0_i32_1 = arith.constant 0 : i32
    return %arg0, %c0_i32, %c0_i32_0 : i32, i32, i32
  }
}

module attributes {stable_mosaic.version = 11 : i64} {
  func.func @kernel(%arg0: i32, %arg1: memref<1x110x16xbf16, #tpu.memory_space<vmem>>, %arg2: memref<9x16x16xbf16, #tpu.memory_space<vmem>>, %arg3: memref<1x16xf32, #tpu.memory_space<vmem>>, %arg4: memref<1x80x16xf32, #tpu.memory_space<vmem>>) attributes {dimension_semantics = [#tpu.dimension_semantics<parallel>], iteration_bounds = array<i64: 2>, scalar_prefetch = 0 : i64, scratch_operands = 0 : i64, tpu.core_type = #tpu.core_type<tc>, window_params = [{transform_indices = @transform_0, window_bounds = array<i64: 1, 110, 16>}, {pipeline_mode = #tpu.pipeline_mode<synchronous>, transform_indices = @transform_1, window_bounds = array<i64: 9, 16, 16>}, {pipeline_mode = #tpu.pipeline_mode<synchronous>, transform_indices = @transform_2, window_bounds = array<i64: 1, 16>}, {transform_indices = @transform_3, window_bounds = array<i64: 1, 80, 16>}]} {
    %cst = arith.constant 0.000000e+00 : f32
    %0 = vector.broadcast %cst : f32 to vector<80x16xf32>
    %c0 = arith.constant 0 : index
    %c0_0 = arith.constant 0 : index
    %c0_1 = arith.constant 0 : index
    %1 = vector.load %arg1[%c0, %c0_0, %c0_1] : memref<1x110x16xbf16, #tpu.memory_space<vmem>>, vector<1x80x16xbf16>
    %2 = vector.shape_cast %1 : vector<1x80x16xbf16> to vector<80x16xbf16>
    %c0_2 = arith.constant 0 : index
    %c0_3 = arith.constant 0 : index
    %c0_4 = arith.constant 0 : index
    %3 = vector.load %arg2[%c0_2, %c0_3, %c0_4] : memref<9x16x16xbf16, #tpu.memory_space<vmem>>, vector<1x16x16xbf16>
    %4 = vector.shape_cast %3 : vector<1x16x16xbf16> to vector<16x16xbf16>
    %cst_5 = arith.constant dense<0.000000e+00> : vector<80x16xf32>
    %5 = tpu.matmul %2, %4, %cst_5 {dimension_numbers = #tpu.dot_dimension_numbers<[1], [0], [0], [1], [0, 0, 1, 1], [], []>} : vector<80x16xbf16>, vector<16x16xbf16>, vector<80x16xf32> -> vector<80x16xf32>
    %6 = arith.addf %0, %5 : vector<80x16xf32>
    %c0_6 = arith.constant 0 : index
    %c1 = arith.constant 1 : index
    %c0_7 = arith.constant 0 : index
    %7 = vector.load %arg1[%c0_6, %c1, %c0_7] : memref<1x110x16xbf16, #tpu.memory_space<vmem>>, vector<1x80x16xbf16>
    %8 = vector.shape_cast %7 : vector<1x80x16xbf16> to vector<80x16xbf16>
    %c1_8 = arith.constant 1 : index
    %c0_9 = arith.constant 0 : index
    %c0_10 = arith.constant 0 : index
    %9 = vector.load %arg2[%c1_8, %c0_9, %c0_10] : memref<9x16x16xbf16, #tpu.memory_space<vmem>>, vector<1x16x16xbf16>
    %10 = vector.shape_cast %9 : vector<1x16x16xbf16> to vector<16x16xbf16>
    %cst_11 = arith.constant dense<0.000000e+00> : vector<80x16xf32>
    %11 = tpu.matmul %8, %10, %cst_11 {dimension_numbers = #tpu.dot_dimension_numbers<[1], [0], [0], [1], [0, 0, 1, 1], [], []>} : vector<80x16xbf16>, vector<16x16xbf16>, vector<80x16xf32> -> vector<80x16xf32>
    %12 = arith.addf %6, %11 : vector<80x16xf32>
    %c0_12 = arith.constant 0 : index
    %c2 = arith.constant 2 : index
    %c0_13 = arith.constant 0 : index
    %13 = vector.load %arg1[%c0_12, %c2, %c0_13] : memref<1x110x16xbf16, #tpu.memory_space<vmem>>, vector<1x80x16xbf16>
    %14 = vector.shape_cast %13 : vector<1x80x16xbf16> to vector<80x16xbf16>
    %c2_14 = arith.constant 2 : index
    %c0_15 = arith.constant 0 : index
    %c0_16 = arith.constant 0 : index
    %15 = vector.load %arg2[%c2_14, %c0_15, %c0_16] : memref<9x16x16xbf16, #tpu.memory_space<vmem>>, vector<1x16x16xbf16>
    %16 = vector.shape_cast %15 : vector<1x16x16xbf16> to vector<16x16xbf16>
    %cst_17 = arith.constant dense<0.000000e+00> : vector<80x16xf32>
    %17 = tpu.matmul %14, %16, %cst_17 {dimension_numbers = #tpu.dot_dimension_numbers<[1], [0], [0], [1], [0, 0, 1, 1], [], []>} : vector<80x16xbf16>, vector<16x16xbf16>, vector<80x16xf32> -> vector<80x16xf32>
    %18 = arith.addf %12, %17 : vector<80x16xf32>
    %c0_18 = arith.constant 0 : index
    %c10 = arith.constant 10 : index
    %c0_19 = arith.constant 0 : index
    %19 = vector.load %arg1[%c0_18, %c10, %c0_19] : memref<1x110x16xbf16, #tpu.memory_space<vmem>>, vector<1x80x16xbf16>
    %20 = vector.shape_cast %19 : vector<1x80x16xbf16> to vector<80x16xbf16>
    %c3 = arith.constant 3 : index
    %c0_20 = arith.constant 0 : index
    %c0_21 = arith.constant 0 : index
    %21 = vector.load %arg2[%c3, %c0_20, %c0_21] : memref<9x16x16xbf16, #tpu.memory_space<vmem>>, vector<1x16x16xbf16>
    %22 = vector.shape_cast %21 : vector<1x16x16xbf16> to vector<16x16xbf16>
    %cst_22 = arith.constant dense<0.000000e+00> : vector<80x16xf32>
    %23 = tpu.matmul %20, %22, %cst_22 {dimension_numbers = #tpu.dot_dimension_numbers<[1], [0], [0], [1], [0, 0, 1, 1], [], []>} : vector<80x16xbf16>, vector<16x16xbf16>, vector<80x16xf32> -> vector<80x16xf32>
    %24 = arith.addf %18, %23 : vector<80x16xf32>
    %c0_23 = arith.constant 0 : index
    %c11 = arith.constant 11 : index
    %c0_24 = arith.constant 0 : index
    %25 = vector.load %arg1[%c0_23, %c11, %c0_24] : memref<1x110x16xbf16, #tpu.memory_space<vmem>>, vector<1x80x16xbf16>
    %26 = vector.shape_cast %25 : vector<1x80x16xbf16> to vector<80x16xbf16>
    %c4 = arith.constant 4 : index
    %c0_25 = arith.constant 0 : index
    %c0_26 = arith.constant 0 : index
    %27 = vector.load %arg2[%c4, %c0_25, %c0_26] : memref<9x16x16xbf16, #tpu.memory_space<vmem>>, vector<1x16x16xbf16>
    %28 = vector.shape_cast %27 : vector<1x16x16xbf16> to vector<16x16xbf16>
    %cst_27 = arith.constant dense<0.000000e+00> : vector<80x16xf32>
    %29 = tpu.matmul %26, %28, %cst_27 {dimension_numbers = #tpu.dot_dimension_numbers<[1], [0], [0], [1], [0, 0, 1, 1], [], []>} : vector<80x16xbf16>, vector<16x16xbf16>, vector<80x16xf32> -> vector<80x16xf32>
    %30 = arith.addf %24, %29 : vector<80x16xf32>
    %c0_28 = arith.constant 0 : index
    %c12 = arith.constant 12 : index
    %c0_29 = arith.constant 0 : index
    %31 = vector.load %arg1[%c0_28, %c12, %c0_29] : memref<1x110x16xbf16, #tpu.memory_space<vmem>>, vector<1x80x16xbf16>
    %32 = vector.shape_cast %31 : vector<1x80x16xbf16> to vector<80x16xbf16>
    %c5 = arith.constant 5 : index
    %c0_30 = arith.constant 0 : index
    %c0_31 = arith.constant 0 : index
    %33 = vector.load %arg2[%c5, %c0_30, %c0_31] : memref<9x16x16xbf16, #tpu.memory_space<vmem>>, vector<1x16x16xbf16>
    %34 = vector.shape_cast %33 : vector<1x16x16xbf16> to vector<16x16xbf16>
    %cst_32 = arith.constant dense<0.000000e+00> : vector<80x16xf32>
    %35 = tpu.matmul %32, %34, %cst_32 {dimension_numbers = #tpu.dot_dimension_numbers<[1], [0], [0], [1], [0, 0, 1, 1], [], []>} : vector<80x16xbf16>, vector<16x16xbf16>, vector<80x16xf32> -> vector<80x16xf32>
    %36 = arith.addf %30, %35 : vector<80x16xf32>
    %c0_33 = arith.constant 0 : index
    %c20 = arith.constant 20 : index
    %c0_34 = arith.constant 0 : index
    %37 = vector.load %arg1[%c0_33, %c20, %c0_34] : memref<1x110x16xbf16, #tpu.memory_space<vmem>>, vector<1x80x16xbf16>
    %38 = vector.shape_cast %37 : vector<1x80x16xbf16> to vector<80x16xbf16>
    %c6 = arith.constant 6 : index
    %c0_35 = arith.constant 0 : index
    %c0_36 = arith.constant 0 : index
    %39 = vector.load %arg2[%c6, %c0_35, %c0_36] : memref<9x16x16xbf16, #tpu.memory_space<vmem>>, vector<1x16x16xbf16>
    %40 = vector.shape_cast %39 : vector<1x16x16xbf16> to vector<16x16xbf16>
    %cst_37 = arith.constant dense<0.000000e+00> : vector<80x16xf32>
    %41 = tpu.matmul %38, %40, %cst_37 {dimension_numbers = #tpu.dot_dimension_numbers<[1], [0], [0], [1], [0, 0, 1, 1], [], []>} : vector<80x16xbf16>, vector<16x16xbf16>, vector<80x16xf32> -> vector<80x16xf32>
    %42 = arith.addf %36, %41 : vector<80x16xf32>
    %c0_38 = arith.constant 0 : index
    %c21 = arith.constant 21 : index
    %c0_39 = arith.constant 0 : index
    %43 = vector.load %arg1[%c0_38, %c21, %c0_39] : memref<1x110x16xbf16, #tpu.memory_space<vmem>>, vector<1x80x16xbf16>
    %44 = vector.shape_cast %43 : vector<1x80x16xbf16> to vector<80x16xbf16>
    %c7 = arith.constant 7 : index
    %c0_40 = arith.constant 0 : index
    %c0_41 = arith.constant 0 : index
    %45 = vector.load %arg2[%c7, %c0_40, %c0_41] : memref<9x16x16xbf16, #tpu.memory_space<vmem>>, vector<1x16x16xbf16>
    %46 = vector.shape_cast %45 : vector<1x16x16xbf16> to vector<16x16xbf16>
    %cst_42 = arith.constant dense<0.000000e+00> : vector<80x16xf32>
    %47 = tpu.matmul %44, %46, %cst_42 {dimension_numbers = #tpu.dot_dimension_numbers<[1], [0], [0], [1], [0, 0, 1, 1], [], []>} : vector<80x16xbf16>, vector<16x16xbf16>, vector<80x16xf32> -> vector<80x16xf32>
    %48 = arith.addf %42, %47 : vector<80x16xf32>
    %c0_43 = arith.constant 0 : index
    %c22 = arith.constant 22 : index
    %c0_44 = arith.constant 0 : index
    %49 = vector.load %arg1[%c0_43, %c22, %c0_44] : memref<1x110x16xbf16, #tpu.memory_space<vmem>>, vector<1x80x16xbf16>
    %50 = vector.shape_cast %49 : vector<1x80x16xbf16> to vector<80x16xbf16>
    %c8 = arith.constant 8 : index
    %c0_45 = arith.constant 0 : index
    %c0_46 = arith.constant 0 : index
    %51 = vector.load %arg2[%c8, %c0_45, %c0_46] : memref<9x16x16xbf16, #tpu.memory_space<vmem>>, vector<1x16x16xbf16>
    %52 = vector.shape_cast %51 : vector<1x16x16xbf16> to vector<16x16xbf16>
    %cst_47 = arith.constant dense<0.000000e+00> : vector<80x16xf32>
    %53 = tpu.matmul %50, %52, %cst_47 {dimension_numbers = #tpu.dot_dimension_numbers<[1], [0], [0], [1], [0, 0, 1, 1], [], []>} : vector<80x16xbf16>, vector<16x16xbf16>, vector<80x16xf32> -> vector<80x16xf32>
    %54 = arith.addf %48, %53 : vector<80x16xf32>
    %c0_48 = arith.constant 0 : index
    %c0_49 = arith.constant 0 : index
    %55 = vector.load %arg3[%c0_48, %c0_49] : memref<1x16xf32, #tpu.memory_space<vmem>>, vector<1x16xf32>
    %56 = vector.broadcast %55 : vector<1x16xf32> to vector<80x16xf32>
    %57 = arith.addf %54, %56 : vector<80x16xf32>
    %cst_50 = arith.constant 0.000000e+00 : f32
    %58 = vector.broadcast %cst_50 : f32 to vector<80x16xf32>
    %59 = arith.maximumf %57, %58 : vector<80x16xf32>
    %c0_51 = arith.constant 0 : index
    %c0_52 = arith.constant 0 : index
    %c0_53 = arith.constant 0 : index
    %60 = vector.load %arg4[%c0_51, %c0_52, %c0_53] : memref<1x80x16xf32, #tpu.memory_space<vmem>>, vector<1x80x16xf32>
    %61 = vector.shape_cast %60 : vector<1x80x16xf32> to vector<80x16xf32>
    %62 = vector.shape_cast %59 : vector<80x16xf32> to vector<1x80x16xf32>
    tpu.vector_store %arg4[%c0_51, %c0_52, %c0_53], %62 {strides = array<i32>} : memref<1x80x16xf32, #tpu.memory_space<vmem>>, vector<1x80x16xf32>,
    return
  }
  func.func @transform_0(%arg0: i32) -> (i32, i32, i32) {
    %c0_i32 = arith.constant 0 : i32
    %c0_i32_0 = arith.constant 0 : i32
    %c0_i32_1 = arith.constant 0 : i32
    return %arg0, %c0_i32, %c0_i32_0 : i32, i32, i32
  }
  func.func @transform_1(%arg0: i32) -> (i32, i32, i32) {
    %c0_i32 = arith.constant 0 : i32
    %c0_i32_0 = arith.constant 0 : i32
    %c0_i32_1 = arith.constant 0 : i32
    %c0_i32_2 = arith.constant 0 : i32
    return %c0_i32, %c0_i32_0, %c0_i32_1 : i32, i32, i32
  }
  func.func @transform_2(%arg0: i32) -> (i32, i32) {
    %c0_i32 = arith.constant 0 : i32
    %c0_i32_0 = arith.constant 0 : i32
    %c0_i32_1 = arith.constant 0 : i32
    return %c0_i32, %c0_i32_0 : i32, i32
  }
  func.func @transform_3(%arg0: i32) -> (i32, i32, i32) {
    %c0_i32 = arith.constant 0 : i32
    %c0_i32_0 = arith.constant 0 : i32
    %c0_i32_1 = arith.constant 0 : i32
    return %arg0, %c0_i32, %c0_i32_0 : i32, i32, i32
  }
}

</mosaic_0001>

<llo_original>
// kernel: conv_down_forward.3
$region0: #{conv_down_forward.3}
  #allocation0 [shape = 'u32[]', space=smem, size = 0x4, offset = 0x4, fixed_abs, tag = 'smem constant byte address 0x4 - core index']
  #allocation1 [shape = 'u32[144,128]{1,0:T(1,128)}', space=vmem, size = 0x12000, scoped, tag = 'internal scratch']
  %s0 = inlined_call_operand.vmem [shape: bf16[2,90,16], index: 0, kind: input, shape index: {}]
  %s1 = inlined_call_operand.vmem [shape: bf16[4,16,8], index: 1, kind: input, shape index: {}]
  %s2 = inlined_call_operand.vmem [shape: f32[1,8], index: 2, kind: input, shape index: {}]
  %s3 = inlined_call_operand.vmem [shape: f32[2,72,8], index: 3, kind: output, shape index: {}]
  %s4 = sld [smem:[#allocation0]]
  $region45: #{conv_down_forward.3} parent=0
    _
  %s6 = ssub.s32 1, %s4
  %s7 = scalar_select 0, %s6, %s4
  loop: start=0, step=1, limit=4
  $region2: #{conv_down_forward.3} parent=0 // loop_pre_header
    _
  $region3: #{conv_down_forward.3} parent=0 // loop_header
    %s9 = sphi 0, %s13
    %p10 = scmp.ge.s32.totalorder %s9, 4
    %s19 = sphi 0, %s21
    %s22 = sphi 0, %s19
    %s23 = sphi 0, %s22
    %s39 = sphi 0, %s23
    %s43 = sphi 0, %s43
    %s45 = sphi 0, %s43
    %s46 = sphi 0, %s45
    %s60 = sphi 0, %s46
    %s64 = sphi 0, %s64
    %s66 = sphi 0, %s64
    %s67 = sphi 0, %s66
    %s81 = sphi 0, %s67
    %s87 = sphi 0, %s89
    %s90 = sphi 0, %s87
    %s91 = sphi 0, %s90
    %s107 = sphi 0, %s91
  $region4: #{conv_down_forward.3} parent=0 // loop_header_branch
    %12 = sbr.rel (%p10) target = $region8
  $region5: #{conv_down_forward.3} parent=0 // loop_body
    %s14 = ssub.s32 %s9, 1
    %s15 = ssub.s32 %s9, 2
    %s16 = sadd.s32 %s9, 1
    %s17 = ssub.s32 %s9, %s16
    %p18 = scmp.eq.s32.totalorder %s17, 0
    %s20 = sadd.s32 %s19, 1
    %s21 = scalar_select %p18, %s19, %s20
    %p24 = pneg %p18
    %p25 = scmp.eq.s32.totalorder %s9, 1
    %p26 = por %p24, %p25
    %p27 = scmp.ne.s32.totalorder %s19, %s22
    %p28 = scmp.eq.s32.totalorder %s9, 0
    %p29 = por %p27, %p28
    %p30 = scmp.ne.s32.totalorder %s19, %s22
    %p31 = scmp.eq.s32.totalorder %s14, 1
    %p32 = por %p30, %p31
    %p33 = scmp.ne.s32.totalorder %s22, %s23
    %p34 = scmp.eq.s32.totalorder %s14, 0
    %p35 = por %p33, %p34
    %p36 = scmp.ne.s32.totalorder %s22, %s23
    %p37 = scmp.eq.s32.totalorder %s15, 1
    %p38 = por %p36, %p37
    %p40 = scmp.ne.s32.totalorder %s23, %s39
    %p41 = scmp.eq.s32.totalorder %s15, 0
    %p42 = por %p40, %p41
    %s44 = sadd.s32 %s43, 1
    %p47 = scmp.eq.s32.totalorder %s9, 1
    %p48 = scmp.ne.s32.totalorder %s43, %s45
    %p49 = scmp.eq.s32.totalorder %s9, 0
    %p50 = por %p48, %p49
    %p51 = scmp.ne.s32.totalorder %s43, %s45
    %p52 = scmp.eq.s32.totalorder %s14, 1
    %p53 = por %p51, %p52
    %p54 = scmp.ne.s32.totalorder %s45, %s46
    %p55 = scmp.eq.s32.totalorder %s14, 0
    %p56 = por %p54, %p55
    %p57 = scmp.ne.s32.totalorder %s45, %s46
    %p58 = scmp.eq.s32.totalorder %s15, 1
    %p59 = por %p57, %p58
    %p61 = scmp.ne.s32.totalorder %s46, %s60
    %p62 = scmp.eq.s32.totalorder %s15, 0
    %p63 = por %p61, %p62
    %s65 = sadd.s32 %s64, 1
    %p68 = scmp.eq.s32.totalorder %s9, 1
    %p69 = scmp.ne.s32.totalorder %s64, %s66
    %p70 = scmp.eq.s32.totalorder %s9, 0
    %p71 = por %p69, %p70
    %p72 = scmp.ne.s32.totalorder %s64, %s66
    %p73 = scmp.eq.s32.totalorder %s14, 1
    %p74 = por %p72, %p73
    %p75 = scmp.ne.s32.totalorder %s66, %s67
    %p76 = scmp.eq.s32.totalorder %s14, 0
    %p77 = por %p75, %p76
    %p78 = scmp.ne.s32.totalorder %s66, %s67
    %p79 = scmp.eq.s32.totalorder %s15, 1
    %p80 = por %p78, %p79
    %p82 = scmp.ne.s32.totalorder %s67, %s81
    %p83 = scmp.eq.s32.totalorder %s15, 0
    %p84 = por %p82, %p83
    %s85 = ssub.s32 %s9, %s16
    %p86 = scmp.eq.s32.totalorder %s85, 0
    %s88 = sadd.s32 %s87, 1
    %s89 = scalar_select %p86, %s87, %s88
    %p92 = pneg %p86
    %p93 = scmp.eq.s32.totalorder %s9, 1
    %p94 = por %p92, %p93
    %p95 = scmp.ne.s32.totalorder %s87, %s90
    %p96 = scmp.eq.s32.totalorder %s9, 0
    %p97 = por %p95, %p96
    %p98 = scmp.ne.s32.totalorder %s87, %s90
    %p99 = scmp.eq.s32.totalorder %s14, 1
    %p100 = por %p98, %p99
    %p101 = scmp.ne.s32.totalorder %s90, %s91
    %p102 = scmp.eq.s32.totalorder %s14, 0
    %p103 = por %p101, %p102
    %p104 = scmp.ne.s32.totalorder %s90, %s91
    %p105 = scmp.eq.s32.totalorder %s15, 1
    %p106 = por %p104, %p105
    %p108 = scmp.ne.s32.totalorder %s91, %s107
    %p109 = scmp.eq.s32.totalorder %s15, 0
    %p110 = por %p108, %p109
    %p111 = scmp.le.s32.totalorder 1, %s9
    %p112 = scmp.lt.s32.totalorder %s9, 3
    %p113 = pnand %p111, %p112
    %p114 = pneg %p113
    // Predicated region
    $region9: #{conv_down_forward.3} parent=5 // pred_check
      _
    $region10: #{conv_down_forward.3} parent=5 // pred_check_branch
      %116 = sbr.rel (%p113) target = $region12
    $region11: #{conv_down_forward.3} parent=5 // pred_region
      %s117 = ssub.s32 %s9, 1
      // Predicated region
      $region13: #{conv_down_forward.3} parent=11 // pred_check
        %p118 = pneg %p56
      $region14: #{conv_down_forward.3} parent=11 // pred_check_branch
        %120 = sbr.rel (%p118) target = $region16
      $region15: #{conv_down_forward.3} parent=11 // pred_region
        _
      $region16: #{conv_down_forward.3} parent=11 // pred_fallthru
        _
      // Predicated region
      $region17: #{conv_down_forward.3} parent=11 // pred_check
        %p121 = pneg %p77
      $region18: #{conv_down_forward.3} parent=11 // pred_check_branch
        %123 = sbr.rel (%p121) target = $region20
      $region19: #{conv_down_forward.3} parent=11 // pred_region
        _
      $region20: #{conv_down_forward.3} parent=11 // pred_fallthru
        _
    $region12: #{conv_down_forward.3} parent=5 // pred_fallthru
      _
    %p124 = scmp.lt.s32.totalorder %s9, 2
    // Predicated region
    $region21: #{conv_down_forward.3} parent=5 // pred_check
      %p125 = pneg %p124
    $region22: #{conv_down_forward.3} parent=5 // pred_check_branch
      %127 = sbr.rel (%p125) target = $region24
    $region23: #{conv_down_forward.3} parent=5 // pred_region
      // Predicated region
      $region25: #{conv_down_forward.3} parent=23 // pred_check
        %p128 = pneg %p29
      $region26: #{conv_down_forward.3} parent=23 // pred_check_branch
        %130 = sbr.rel (%p128) target = $region28
      $region27: #{conv_down_forward.3} parent=23 // pred_region
        %p131 = scmp.lt.s32.totalorder %s9, 1
        %s132 = scalar_select %p131, %s9, 1
        %s133 = smul.addr %s132, 12
        %s134 = smul.addr %s133, 4
        %s135 = scalar_lea.vmem %s0, %s134
      $region28: #{conv_down_forward.3} parent=23 // pred_fallthru
        _
    $region24: #{conv_down_forward.3} parent=5 // pred_fallthru
      _
    %p136 = scmp.le.s32.totalorder 1, %s9
    %p137 = scmp.lt.s32.totalorder %s9, 3
    %p138 = pnand %p136, %p137
    %p139 = pneg %p138
    // Predicated region
    $region29: #{conv_down_forward.3} parent=5 // pred_check
      _
    $region30: #{conv_down_forward.3} parent=5 // pred_check_branch
      %141 = sbr.rel (%p138) target = $region32
    $region31: #{conv_down_forward.3} parent=5 // pred_region
      %s142 = ssub.s32 %s9, 1
      %p143 = scmp.lt.s32.totalorder %s14, 1
      %s144 = scalar_select %p143, %s14, 1
      %s145 = smul.addr %s144, 12
      %s146 = smul.addr %s145, 4
      %s147 = scalar_lea.vmem %s0, %s146
      %p148 = pneg %p35
      %p149 = pneg %p32
      %p150 = pneg %p56
      %p151 = pneg %p53
      %p152 = pneg %p77
      %p153 = pneg %p74
      %p154 = pneg %p103
      %p155 = pneg %p100
      %p156 = scmp.lt.s32.totalorder %s14, 1
      %s157 = scalar_select %p156, %s14, 1
      %s158 = smul.addr %s157, 9
      %s159 = smul.addr %s158, 8
      %s160 = scalar_lea.vmem %s3, %s159
      %p161 = scmp.lt.s32.totalorder %s14, 1
      %s162 = scalar_select %p161, %s14, 1
      %s163 = smul.addr %s162, 12
      %s164 = smul.addr %s163, 4
      %s165 = scalar_lea.vmem %s0, %s164
      %p166 = scmp.lt.s32.totalorder %s14, 1
      %s167 = scalar_select %p166, %s14, 1
      %s168 = smul.addr %s167, 9
      %s169 = smul.addr %s168, 8
      %s170 = scalar_lea.vmem %s3, %s169
      %v172 = vld [vmem:[%s165] sm:$0xf]
      %v173 = vld [vmem:[%s165 + $0x4] sm:$0xf]
      %v174 = vld [vmem:[%s165 + $0x8] sm:$0xf]
      %v175 = vld [vmem:[%s165 + $0xc] sm:$0xf]
      %v176 = vld [vmem:[%s165 + $0x10] sm:$0xf]
      %v177 = vld [vmem:[%s165 + $0x14] sm:$0xf]
      %v178 = vld [vmem:[%s165 + $0x18] sm:$0xf]
      %v179 = vld [vmem:[%s165 + $0x1c] sm:$0xf]
      %v180 = vld [vmem:[%s165 + $0x20] sm:$0xf]
      %v181 = vld [vmem:[%s1] sm:$0xf]
      %v182 = vld [vmem:[%s1 + $0x4] sm:$0xf]
      %v183 = vld [vmem:[%s165 + $0x24] sm:$0x1]
      %s184 = scalar_lea.vmem %s1, 8
      %v185 = vld [vmem:[%s184] sm:$0xf]
      %v186 = vld [vmem:[%s184 + $0x4] sm:$0xf]
      %v197 = vunpack.c.l.b16 %v172
      %v198 = vunpack.c.l.b16 %v173
      %v199 = vunpack.c.l.b16 %v174
      %v200 = vunpack.c.l.b16 %v175
      %v201 = vunpack.c.l.b16 %v176
      %v202 = vunpack.c.l.b16 %v177
      %v203 = vunpack.c.l.b16 %v178
      %v204 = vunpack.c.l.b16 %v179
      %v205 = vunpack.c.l.b16 %v180
      %v206 = vunpack.c.l.b16 %v183
      %v207 = vpack.c.b16 %v198, %v197
      %v208 = vpack.c.b16 %v200, %v199
      %v209 = vpack.c.b16 %v202, %v201
      %v210 = vpack.c.b16 %v204, %v203
      %v211 = vpack.c.b16 %v206, %v205
      %vm212 = vsmask.f32 7424
      %v214 = vshrl.u32 %v207, 16
      %v216 = vshll.u32 %v207, 16
      %v218 = vrot.slane %v216, 1
      %v219 = vor.u32 %v214, %v218
      %v221 = vshll.u32 %v208, 16
      %v223 = vrot.slane %v221, 1
      %v224 = vsel %vm212, %v219, %v223
      %v225 = vshrl.u32 %v208, 16
      %v227 = vor.u32 %v225, %v223
      %v229 = vshll.u32 %v209, 16
      %v231 = vrot.slane %v229, 1
      %v232 = vsel %vm212, %v227, %v231
      %v233 = vshrl.u32 %v209, 16
      %v235 = vor.u32 %v233, %v231
      %v237 = vshll.u32 %v210, 16
      %v239 = vrot.slane %v237, 1
      %v240 = vsel %vm212, %v235, %v239
      %v241 = vshrl.u32 %v210, 16
      %v243 = vor.u32 %v241, %v239
      %v245 = vshll.u32 %v211, 16
      %v247 = vrot.slane %v245, 1
      %v248 = vsel %vm212, %v243, %v247
      %v249 = vshrl.u32 %v211, 16
      %v251 = vor.u32 %v249, %v247
      %v254 = vunpack.c.l.b16 %v185
      %v255 = vunpack.c.l.b16 %v186
      %v256 = vpack.c.b16 %v255, %v254
      %vm258 = vcmask 130048
      %v260 = vsel %vm258, %v224, 0
      %v263 = vsel %vm258, %v232, 0
      %v266 = vsel %vm258, %v240, 0
      %v269 = vsel %vm258, %v248, 0
      %v272 = vsel %vm258, %v251, 0
      %274 = vmatprep.subr.bf16.mxu0 0
      %275 = vmatpush1.bf16.msra.mxu0 %v256
      %276 = vmatprep.subr.bf16.mxu0 0
      %277 = vmatpush1.bf16.msra.mxu0 0
      %278 = vmatprep.subr.bf16.mxu0 0
      %279 = vmatpush1.bf16.msra.mxu0 0
      %280 = vmatprep.subr.bf16.mxu0 0
      %281 = vmatpush1.bf16.msra.mxu0 0
      %282 = vmatprep.subr.bf16.mxu0 0
      %283 = vmatpush1.bf16.msra.mxu0 0
      %284 = vmatprep.subr.bf16.mxu0 0
      %285 = vmatpush1.bf16.msra.mxu0 0
      %286 = vmatprep.subr.bf16.mxu0 0
      %287 = vmatpush1.bf16.msra.mxu0 0
      %288 = vmatprep.subr.bf16.mxu0 0
      %289 = vmatpush1.bf16.msra.mxu0 0
      %290 = vmatprep.subr.bf16.mxu0 0
      %291 = vmatpush1.bf16.msra.mxu0 0
      %292 = vmatprep.subr.bf16.mxu0 0
      %293 = vmatpush1.bf16.msra.mxu0 0
      %294 = vmatprep.subr.bf16.mxu0 0
      %295 = vmatpush1.bf16.msra.mxu0 0
      %296 = vmatprep.subr.bf16.mxu0 0
      %297 = vmatpush1.bf16.msra.mxu0 0
      %298 = vmatprep.subr.bf16.mxu0 0
      %299 = vmatpush1.bf16.msra.mxu0 0
      %300 = vmatprep.subr.bf16.mxu0 0
      %301 = vmatpush1.bf16.msra.mxu0 0
      %302 = vmatprep.subr.bf16.mxu0 0
      %303 = vmatpush1.bf16.msra.mxu0 0
      %304 = vmatprep.subr.bf16.mxu0 0
      %305 = vmatpush1.bf16.msra.mxu0 0
      %306 = vmatprep.mubr.bf16.mxu0 0
      %307 = vmatmul.mubr.bf16.gmra.mrb[0].mxu0 %v260
      %v308 = vpop.f32.mrb[0].mxu0
      %v309 = vadd.f32 0.0, %v308
      %v310 = vpop.f32.mrb[0].mxu0
      %v311 = vpop.f32.mrb[0].mxu0
      %v312 = vadd.f32 0.0, %v311
      %v313 = vpop.f32.mrb[0].mxu0
      %314 = vmatprep.mubr.bf16.mxu0 0
      %315 = vmatmul.mubr.bf16.gmra.mrb[0].mxu0 %v263
      %v316 = vpop.f32.mrb[0].mxu0
      %v317 = vadd.f32 0.0, %v316
      %v318 = vpop.f32.mrb[0].mxu0
      %v319 = vpop.f32.mrb[0].mxu0
      %v320 = vadd.f32 0.0, %v319
      %v321 = vpop.f32.mrb[0].mxu0
      %322 = vmatprep.mubr.bf16.mxu0 0
      %323 = vmatmul.mubr.bf16.gmra.mrb[0].mxu0 %v266
      %v324 = vpop.f32.mrb[0].mxu0
      %v325 = vadd.f32 0.0, %v324
      %v326 = vpop.f32.mrb[0].mxu0
      %v327 = vpop.f32.mrb[0].mxu0
      %v328 = vadd.f32 0.0, %v327
      %v329 = vpop.f32.mrb[0].mxu0
      %330 = vmatprep.mubr.bf16.mxu0 0
      %331 = vmatmul.mubr.bf16.gmra.mrb[0].mxu0 %v269
      %v332 = vpop.f32.mrb[0].mxu0
      %v333 = vadd.f32 0.0, %v332
      %v334 = vpop.f32.mrb[0].mxu0
      %v335 = vpop.f32.mrb[0].mxu0
      %v336 = vadd.f32 0.0, %v335
      %v337 = vpop.f32.mrb[0].mxu0
      %338 = vmatprep.mubr.bf16.mxu0 0
      %339 = vmatmul.mubr.bf16.gmra.mrb[0].mxu0 %v272
      %v340 = vpop.f32.mrb[0].mxu0
      %v341 = vadd.f32 0.0, %v340
      %v342 = vpop.f32.mrb[0].mxu0
      %v343 = vpop.f32.mrb[0].mxu0
      %v344 = vpop.f32.mrb[0].mxu0
      %345 = vdwg.mxu0
      %v346 = vpack.c.b16 %v205, %v205
      %v349 = vunpack.c.l.b16 %v181
      %v350 = vunpack.c.l.b16 %v182
      %v351 = vpack.c.b16 %v350, %v349
      %v353 = vsel %vm258, %v207, 0
      %v355 = vsel %vm258, %v208, 0
      %v357 = vsel %vm258, %v209, 0
      %v359 = vsel %vm258, %v210, 0
      %v362 = vsel %vm258, %v346, 0
      %364 = vmatprep.subr.bf16.mxu0 0
      %365 = vmatpush1.bf16.msra.mxu0 %v351
      %366 = vmatprep.subr.bf16.mxu0 0
      %367 = vmatpush1.bf16.msra.mxu0 0
      %368 = vmatprep.subr.bf16.mxu0 0
      %369 = vmatpush1.bf16.msra.mxu0 0
      %370 = vmatprep.subr.bf16.mxu0 0
      %371 = vmatpush1.bf16.msra.mxu0 0
      %372 = vmatprep.subr.bf16.mxu0 0
      %373 = vmatpush1.bf16.msra.mxu0 0
      %374 = vmatprep.subr.bf16.mxu0 0
      %375 = vmatpush1.bf16.msra.mxu0 0
      %376 = vmatprep.subr.bf16.mxu0 0
      %377 = vmatpush1.bf16.msra.mxu0 0
      %378 = vmatprep.subr.bf16.mxu0 0
      %379 = vmatpush1.bf16.msra.mxu0 0
      %380 = vmatprep.subr.bf16.mxu0 0
      %381 = vmatpush1.bf16.msra.mxu0 0
      %382 = vmatprep.subr.bf16.mxu0 0
      %383 = vmatpush1.bf16.msra.mxu0 0
      %384 = vmatprep.subr.bf16.mxu0 0
      %385 = vmatpush1.bf16.msra.mxu0 0
      %386 = vmatprep.subr.bf16.mxu0 0
      %387 = vmatpush1.bf16.msra.mxu0 0
      %388 = vmatprep.subr.bf16.mxu0 0
      %389 = vmatpush1.bf16.msra.mxu0 0
      %390 = vmatprep.subr.bf16.mxu0 0
      %391 = vmatpush1.bf16.msra.mxu0 0
      %392 = vmatprep.subr.bf16.mxu0 0
      %393 = vmatpush1.bf16.msra.mxu0 0
      %394 = vmatprep.subr.bf16.mxu0 0
      %395 = vmatpush1.bf16.msra.mxu0 0
      %396 = vmatprep.mubr.bf16.mxu0 0
      %397 = vmatmul.mubr.bf16.gmra.mrb[0].mxu0 %v353
      %v398 = vpop.f32.mrb[0].mxu0
      %v399 = vadd.f32 %v309, %v398
      %v400 = vpop.f32.mrb[0].mxu0
      %v401 = vpop.f32.mrb[0].mxu0
      %v402 = vadd.f32 %v312, %v401
      %v403 = vpop.f32.mrb[0].mxu0
      %404 = vmatprep.mubr.bf16.mxu0 0
      %405 = vmatmul.mubr.bf16.gmra.mrb[0].mxu0 %v355
      %v406 = vpop.f32.mrb[0].mxu0
      %v407 = vadd.f32 %v317, %v406
      %v408 = vpop.f32.mrb[0].mxu0
      %v409 = vpop.f32.mrb[0].mxu0
      %v410 = vadd.f32 %v320, %v409
      %v411 = vpop.f32.mrb[0].mxu0
      %412 = vmatprep.mubr.bf16.mxu0 0
      %413 = vmatmul.mubr.bf16.gmra.mrb[0].mxu0 %v357
      %v414 = vpop.f32.mrb[0].mxu0
      %v415 = vadd.f32 %v325, %v414
      %v416 = vpop.f32.mrb[0].mxu0
      %v417 = vpop.f32.mrb[0].mxu0
      %v418 = vadd.f32 %v328, %v417
      %v419 = vpop.f32.mrb[0].mxu0
      %420 = vmatprep.mubr.bf16.mxu0 0
      %421 = vmatmul.mubr.bf16.gmra.mrb[0].mxu0 %v359
      %v422 = vpop.f32.mrb[0].mxu0
      %v423 = vadd.f32 %v333, %v422
      %v424 = vpop.f32.mrb[0].mxu0
      %v425 = vpop.f32.mrb[0].mxu0
      %v426 = vadd.f32 %v336, %v425
      %v427 = vpop.f32.mrb[0].mxu0
      %428 = vmatprep.mubr.bf16.mxu0 0
      %429 = vmatmul.mubr.bf16.gmra.mrb[0].mxu0 %v362
      %v430 = vpop.f32.mrb[0].mxu0
      %v431 = vadd.f32 %v341, %v430
      %v432 = vpop.f32.mrb[0].mxu0
      %v433 = vpop.f32.mrb[0].mxu0
      %v434 = vpop.f32.mrb[0].mxu0
      %435 = vdwg.mxu0
      %v436 = vld [vmem:[%s165 + $0x4] sm:$0xf]
      %v437 = vld [vmem:[%s165 + $0x8] sm:$0xf]
      %v438 = vld [vmem:[%s165 + $0xc] sm:$0xf]
      %v439 = vld [vmem:[%s165 + $0x10] sm:$0xf]
      %v440 = vld [vmem:[%s165 + $0x14] sm:$0xf]
      %v441 = vld [vmem:[%s165 + $0x18] sm:$0xf]
      %v442 = vld [vmem:[%s165 + $0x1c] sm:$0xf]
      %v443 = vld [vmem:[%s165 + $0x20] sm:$0xf]
      %v444 = vld [vmem:[%s165 + $0x24] sm:$0xf]
      %v445 = vld [vmem:[%s165 + $0x28] sm:$0x1]
      %s446 = scalar_lea.vmem %s1, 16
      %v447 = vld [vmem:[%s446] sm:$0xf]
      %v448 = vld [vmem:[%s446 + $0x4] sm:$0xf]
      %v459 = vunpack.c.l.b16 %v436
      %v460 = vunpack.c.l.b16 %v437
      %v461 = vunpack.c.l.b16 %v438
      %v462 = vunpack.c.l.b16 %v439
      %v463 = vunpack.c.l.b16 %v440
      %v464 = vunpack.c.l.b16 %v441
      %v465 = vunpack.c.l.b16 %v442
      %v466 = vunpack.c.l.b16 %v443
      %v467 = vunpack.c.l.b16 %v444
      %v468 = vunpack.c.l.b16 %v445
      %v469 = vpack.c.b16 %v460, %v459
      %v470 = vpack.c.b16 %v462, %v461
      %v471 = vpack.c.b16 %v464, %v463
      %v472 = vpack.c.b16 %v466, %v465
      %v473 = vpack.c.b16 %v468, %v467
      %v475 = vshrl.u32 %v469, 16
      %v477 = vshll.u32 %v469, 16
      %v479 = vrot.slane %v477, 1
      %v480 = vor.u32 %v475, %v479
      %v482 = vshll.u32 %v470, 16
      %v484 = vrot.slane %v482, 1
      %v485 = vsel %vm212, %v480, %v484
      %v486 = vshrl.u32 %v470, 16
      %v488 = vor.u32 %v486, %v484
      %v490 = vshll.u32 %v471, 16
      %v492 = vrot.slane %v490, 1
      %v493 = vsel %vm212, %v488, %v492
      %v494 = vshrl.u32 %v471, 16
      %v496 = vor.u32 %v494, %v492
      %v498 = vshll.u32 %v472, 16
      %v500 = vrot.slane %v498, 1
      %v501 = vsel %vm212, %v496, %v500
      %v502 = vshrl.u32 %v472, 16
      %v504 = vor.u32 %v502, %v500
      %v506 = vshll.u32 %v473, 16
      %v508 = vrot.slane %v506, 1
      %v509 = vsel %vm212, %v504, %v508
      %v510 = vshrl.u32 %v473, 16
      %v512 = vor.u32 %v510, %v508
      %v515 = vunpack.c.l.b16 %v447
      %v516 = vunpack.c.l.b16 %v448
      %v517 = vpack.c.b16 %v516, %v515
      %v520 = vsel %vm258, %v485, 0
      %v523 = vsel %vm258, %v493, 0
      %v526 = vsel %vm258, %v501, 0
      %v529 = vsel %vm258, %v509, 0
      %v532 = vsel %vm258, %v512, 0
      %534 = vmatprep.subr.bf16.mxu0 0
      %535 = vmatpush1.bf16.msra.mxu0 %v517
      %536 = vmatprep.subr.bf16.mxu0 0
      %537 = vmatpush1.bf16.msra.mxu0 0
      %538 = vmatprep.subr.bf16.mxu0 0
      %539 = vmatpush1.bf16.msra.mxu0 0
      %540 = vmatprep.subr.bf16.mxu0 0
      %541 = vmatpush1.bf16.msra.mxu0 0
      %542 = vmatprep.subr.bf16.mxu0 0
      %543 = vmatpush1.bf16.msra.mxu0 0
      %544 = vmatprep.subr.bf16.mxu0 0
      %545 = vmatpush1.bf16.msra.mxu0 0
      %546 = vmatprep.subr.bf16.mxu0 0
      %547 = vmatpush1.bf16.msra.mxu0 0
      %548 = vmatprep.subr.bf16.mxu0 0
      %549 = vmatpush1.bf16.msra.mxu0 0
      %550 = vmatprep.subr.bf16.mxu0 0
      %551 = vmatpush1.bf16.msra.mxu0 0
      %552 = vmatprep.subr.bf16.mxu0 0
      %553 = vmatpush1.bf16.msra.mxu0 0
      %554 = vmatprep.subr.bf16.mxu0 0
      %555 = vmatpush1.bf16.msra.mxu0 0
      %556 = vmatprep.subr.bf16.mxu0 0
      %557 = vmatpush1.bf16.msra.mxu0 0
      %558 = vmatprep.subr.bf16.mxu0 0
      %559 = vmatpush1.bf16.msra.mxu0 0
      %560 = vmatprep.subr.bf16.mxu0 0
      %561 = vmatpush1.bf16.msra.mxu0 0
      %562 = vmatprep.subr.bf16.mxu0 0
      %563 = vmatpush1.bf16.msra.mxu0 0
      %564 = vmatprep.subr.bf16.mxu0 0
      %565 = vmatpush1.bf16.msra.mxu0 0
      %566 = vmatprep.mubr.bf16.mxu0 0
      %567 = vmatmul.mubr.bf16.gmra.mrb[0].mxu0 %v520
      %v568 = vpop.f32.mrb[0].mxu0
      %v569 = vadd.f32 0.0, %v568
      %v570 = vpop.f32.mrb[0].mxu0
      %v571 = vpop.f32.mrb[0].mxu0
      %v572 = vadd.f32 0.0, %v571
      %v573 = vpop.f32.mrb[0].mxu0
      %574 = vmatprep.mubr.bf16.mxu0 0
      %575 = vmatmul.mubr.bf16.gmra.mrb[0].mxu0 %v523
      %v576 = vpop.f32.mrb[0].mxu0
      %v577 = vadd.f32 0.0, %v576
      %v578 = vpop.f32.mrb[0].mxu0
      %v579 = vpop.f32.mrb[0].mxu0
      %v580 = vadd.f32 0.0, %v579
      %v581 = vpop.f32.mrb[0].mxu0
      %582 = vmatprep.mubr.bf16.mxu0 0
      %583 = vmatmul.mubr.bf16.gmra.mrb[0].mxu0 %v526
      %v584 = vpop.f32.mrb[0].mxu0
      %v585 = vadd.f32 0.0, %v584
      %v586 = vpop.f32.mrb[0].mxu0
      %v587 = vpop.f32.mrb[0].mxu0
      %v588 = vadd.f32 0.0, %v587
      %v589 = vpop.f32.mrb[0].mxu0
      %590 = vmatprep.mubr.bf16.mxu0 0
      %591 = vmatmul.mubr.bf16.gmra.mrb[0].mxu0 %v529
      %v592 = vpop.f32.mrb[0].mxu0
      %v593 = vadd.f32 0.0, %v592
      %v594 = vpop.f32.mrb[0].mxu0
      %v595 = vpop.f32.mrb[0].mxu0
      %v596 = vadd.f32 0.0, %v595
      %v597 = vpop.f32.mrb[0].mxu0
      %598 = vmatprep.mubr.bf16.mxu0 0
      %599 = vmatmul.mubr.bf16.gmra.mrb[0].mxu0 %v532
      %v600 = vpop.f32.mrb[0].mxu0
      %v601 = vadd.f32 0.0, %v600
      %v602 = vpop.f32.mrb[0].mxu0
      %v603 = vpop.f32.mrb[0].mxu0
      %v604 = vpop.f32.mrb[0].mxu0
      %605 = vdwg.mxu0
      %v606 = vadd.f32 %v399, %v569
      %v607 = vadd.f32 %v402, %v572
      %v608 = vadd.f32 %v407, %v577
      %v609 = vadd.f32 %v410, %v580
      %v610 = vadd.f32 %v415, %v585
      %v611 = vadd.f32 %v418, %v588
      %v612 = vadd.f32 %v423, %v593
      %v613 = vadd.f32 %v426, %v596
      %v614 = vadd.f32 %v431, %v601
      %v615 = vld [vmem:[%s165 + $0x4] sm:$0xe]
      %s616 = scalar_lea.vmem %s1, 24
      %v617 = vld [vmem:[%s616] sm:$0xf]
      %v618 = vld [vmem:[%s616 + $0x4] sm:$0xf]
      %v620 = vunpack.c.l.b16 %v615
      %v621 = vpack.c.b16 %v460, %v620
      %vm622 = vcmask 1046528
      %v623 = vrot.slane %v621, 1
      %v624 = vrot.slane %v470, 1
      %v625 = vsel %vm622, %v623, %v624
      %v626 = vrot.slane %v471, 1
      %v627 = vsel %vm622, %v624, %v626
      %v628 = vrot.slane %v472, 1
      %v629 = vsel %vm622, %v626, %v628
      %v630 = vrot.slane %v473, 1
      %v631 = vsel %vm622, %v628, %v630
      %v634 = vunpack.c.l.b16 %v617
      %v635 = vunpack.c.l.b16 %v618
      %v636 = vpack.c.b16 %v635, %v634
      %v639 = vsel %vm258, %v625, 0
      %v642 = vsel %vm258, %v627, 0
      %v645 = vsel %vm258, %v629, 0
      %v648 = vsel %vm258, %v631, 0
      %v651 = vsel %vm258, %v630, 0
      %653 = vmatprep.subr.bf16.mxu0 0
      %654 = vmatpush1.bf16.msra.mxu0 %v636
      %655 = vmatprep.subr.bf16.mxu0 0
      %656 = vmatpush1.bf16.msra.mxu0 0
      %657 = vmatprep.subr.bf16.mxu0 0
      %658 = vmatpush1.bf16.msra.mxu0 0
      %659 = vmatprep.subr.bf16.mxu0 0
      %660 = vmatpush1.bf16.msra.mxu0 0
      %661 = vmatprep.subr.bf16.mxu0 0
      %662 = vmatpush1.bf16.msra.mxu0 0
      %663 = vmatprep.subr.bf16.mxu0 0
      %664 = vmatpush1.bf16.msra.mxu0 0
      %665 = vmatprep.subr.bf16.mxu0 0
      %666 = vmatpush1.bf16.msra.mxu0 0
      %667 = vmatprep.subr.bf16.mxu0 0
      %668 = vmatpush1.bf16.msra.mxu0 0
      %669 = vmatprep.subr.bf16.mxu0 0
      %670 = vmatpush1.bf16.msra.mxu0 0
      %671 = vmatprep.subr.bf16.mxu0 0
      %672 = vmatpush1.bf16.msra.mxu0 0
      %673 = vmatprep.subr.bf16.mxu0 0
      %674 = vmatpush1.bf16.msra.mxu0 0
      %675 = vmatprep.subr.bf16.mxu0 0
      %676 = vmatpush1.bf16.msra.mxu0 0
      %677 = vmatprep.subr.bf16.mxu0 0
      %678 = vmatpush1.bf16.msra.mxu0 0
      %679 = vmatprep.subr.bf16.mxu0 0
      %680 = vmatpush1.bf16.msra.mxu0 0
      %681 = vmatprep.subr.bf16.mxu0 0
      %682 = vmatpush1.bf16.msra.mxu0 0
      %683 = vmatprep.subr.bf16.mxu0 0
      %684 = vmatpush1.bf16.msra.mxu0 0
      %685 = vmatprep.mubr.bf16.mxu0 0
      %686 = vmatmul.mubr.bf16.gmra.mrb[0].mxu0 %v639
      %v687 = vpop.f32.mrb[0].mxu0
      %v688 = vadd.f32 0.0, %v687
      %v689 = vpop.f32.mrb[0].mxu0
      %v690 = vpop.f32.mrb[0].mxu0
      %v691 = vadd.f32 0.0, %v690
      %v692 = vpop.f32.mrb[0].mxu0
      %693 = vmatprep.mubr.bf16.mxu0 0
      %694 = vmatmul.mubr.bf16.gmra.mrb[0].mxu0 %v642
      %v695 = vpop.f32.mrb[0].mxu0
      %v696 = vadd.f32 0.0, %v695
      %v697 = vpop.f32.mrb[0].mxu0
      %v698 = vpop.f32.mrb[0].mxu0
      %v699 = vadd.f32 0.0, %v698
      %v700 = vpop.f32.mrb[0].mxu0
      %701 = vmatprep.mubr.bf16.mxu0 0
      %702 = vmatmul.mubr.bf16.gmra.mrb[0].mxu0 %v645
      %v703 = vpop.f32.mrb[0].mxu0
      %v704 = vadd.f32 0.0, %v703
      %v705 = vpop.f32.mrb[0].mxu0
      %v706 = vpop.f32.mrb[0].mxu0
      %v707 = vadd.f32 0.0, %v706
      %v708 = vpop.f32.mrb[0].mxu0
      %709 = vmatprep.mubr.bf16.mxu0 0
      %710 = vmatmul.mubr.bf16.gmra.mrb[0].mxu0 %v648
      %v711 = vpop.f32.mrb[0].mxu0
      %v712 = vadd.f32 0.0, %v711
      %v713 = vpop.f32.mrb[0].mxu0
      %v714 = vpop.f32.mrb[0].mxu0
      %v715 = vadd.f32 0.0, %v714
      %v716 = vpop.f32.mrb[0].mxu0
      %717 = vmatprep.mubr.bf16.mxu0 0
      %718 = vmatmul.mubr.bf16.gmra.mrb[0].mxu0 %v651
      %v719 = vpop.f32.mrb[0].mxu0
      %v720 = vadd.f32 0.0, %v719
      %v721 = vpop.f32.mrb[0].mxu0
      %v722 = vpop.f32.mrb[0].mxu0
      %v723 = vpop.f32.mrb[0].mxu0
      %724 = vdwg.mxu0
      %v725 = vadd.f32 %v606, %v688
      %v726 = vadd.f32 %v607, %v691
      %v727 = vadd.f32 %v608, %v696
      %v728 = vadd.f32 %v609, %v699
      %v729 = vadd.f32 %v610, %v704
      %v730 = vadd.f32 %v611, %v707
      %v731 = vadd.f32 %v612, %v712
      %v732 = vadd.f32 %v613, %v715
      %v733 = vadd.f32 %v614, %v720
      %v734 = vld [vmem:[%s2] sm:$0x1]
      %v736 = vlaneseq
      %v737 = vshrl.u32 %v736, 7
      %v738 = vsub.s32 0, %v737
      %v739 = vrot.slane %v734, %v738
      %v741 = vadd.f32 %v725, %v739
      %v742 = vadd.f32 %v726, %v739
      %v743 = vadd.f32 %v727, %v739
      %v744 = vadd.f32 %v728, %v739
      %v745 = vadd.f32 %v729, %v739
      %v746 = vadd.f32 %v730, %v739
      %v747 = vadd.f32 %v731, %v739
      %v748 = vadd.f32 %v732, %v739
      %v749 = vadd.f32 %v733, %v739
      %v750 = vmax.f32 %v741, 0.0
      %v751 = vmax.f32 %v742, 0.0
      %v752 = vmax.f32 %v743, 0.0
      %v753 = vmax.f32 %v744, 0.0
      %v754 = vmax.f32 %v745, 0.0
      %v755 = vmax.f32 %v746, 0.0
      %v756 = vmax.f32 %v747, 0.0
      %v757 = vmax.f32 %v748, 0.0
      %v758 = vmax.f32 %v749, 0.0
      %vm759 = vcmask 64512
      %760 = vst.msk [vmem:[%s170] sm:$0xff] %vm759, %v750
      %761 = vst.msk [vmem:[%s170 + $0x8] sm:$0xff] %vm759, %v751
      %762 = vst.msk [vmem:[%s170 + $0x10] sm:$0xff] %vm759, %v752
      %763 = vst.msk [vmem:[%s170 + $0x18] sm:$0xff] %vm759, %v753
      %764 = vst.msk [vmem:[%s170 + $0x20] sm:$0xff] %vm759, %v754
      %765 = vst.msk [vmem:[%s170 + $0x28] sm:$0xff] %vm759, %v755
      %766 = vst.msk [vmem:[%s170 + $0x30] sm:$0xff] %vm759, %v756
      %767 = vst.msk [vmem:[%s170 + $0x38] sm:$0xff] %vm759, %v757
      %768 = vst.msk [vmem:[%s170 + $0x40] sm:$0xff] %vm759, %v758
      %p769 = scmp.lt.s32.totalorder %s14, 1
      %s770 = scalar_select %p769, %s14, 1
      %s771 = smul.addr %s770, 9
      %s772 = smul.addr %s771, 8
      %s773 = scalar_lea.vmem %s3, %s772
      // Predicated region
      $region33: #{conv_down_forward.3} parent=31 // pred_check
        %p774 = pneg %p100
      $region34: #{conv_down_forward.3} parent=31 // pred_check_branch
        %776 = sbr.rel (%p774) target = $region36
      $region35: #{conv_down_forward.3} parent=31 // pred_region
        _
      $region36: #{conv_down_forward.3} parent=31 // pred_fallthru
        _
    $region32: #{conv_down_forward.3} parent=5 // pred_fallthru
      _
    %p777 = scmp.le.s32.totalorder 2, %s9
    // Predicated region
    $region37: #{conv_down_forward.3} parent=5 // pred_check
      %p778 = pneg %p777
    $region38: #{conv_down_forward.3} parent=5 // pred_check_branch
      %780 = sbr.rel (%p778) target = $region40
    $region39: #{conv_down_forward.3} parent=5 // pred_region
      %s781 = ssub.s32 %s9, 2
      // Predicated region
      $region41: #{conv_down_forward.3} parent=39 // pred_check
        %p782 = pneg %p106
      $region42: #{conv_down_forward.3} parent=39 // pred_check_branch
        %784 = sbr.rel (%p782) target = $region44
      $region43: #{conv_down_forward.3} parent=39 // pred_region
        %p785 = scmp.lt.s32.totalorder %s15, 1
        %s786 = scalar_select %p785, %s15, 1
        %s787 = smul.addr %s786, 9
        %s788 = smul.addr %s787, 8
        %s789 = scalar_lea.vmem %s3, %s788
      $region44: #{conv_down_forward.3} parent=39 // pred_fallthru
        _
    $region40: #{conv_down_forward.3} parent=5 // pred_fallthru
      _
  $region6: #{conv_down_forward.3} parent=0 // loop_footer
    %s13 = sadd.s32 1, %s9
  $region7: #{conv_down_forward.3} parent=0 // loop_footer_branch
    %8 = sbr.rel target = $region3
  $region8: #{conv_down_forward.3} parent=0 // loop_exit
    _

// kernel: conv_down_forward.4
$region0: #{conv_down_forward.4}
  #allocation0 [shape = 'u32[]', space=smem, size = 0x4, offset = 0x4, fixed_abs, tag = 'smem constant byte address 0x4 - core index']
  #allocation1 [shape = 'u32[144,128]{1,0:T(1,128)}', space=vmem, size = 0x12000, scoped, tag = 'internal scratch']
  %s0 = inlined_call_operand.vmem [shape: bf16[2,110,8], index: 0, kind: input, shape index: {}]
  %s1 = inlined_call_operand.vmem [shape: bf16[9,8,16], index: 1, kind: input, shape index: {}]
  %s2 = inlined_call_operand.vmem [shape: f32[1,16], index: 2, kind: input, shape index: {}]
  %s3 = inlined_call_operand.vmem [shape: f32[2,80,16], index: 3, kind: output, shape index: {}]
  %s4 = sld [smem:[#allocation0]]
  $region45: #{conv_down_forward.4} parent=0
    _
  %s6 = ssub.s32 1, %s4
  %s7 = scalar_select 0, %s6, %s4
  loop: start=0, step=1, limit=4
  $region2: #{conv_down_forward.4} parent=0 // loop_pre_header
    _
  $region3: #{conv_down_forward.4} parent=0 // loop_header
    %s9 = sphi 0, %s13
    %p10 = scmp.ge.s32.totalorder %s9, 4
    %s19 = sphi 0, %s21
    %s22 = sphi 0, %s19
    %s23 = sphi 0, %s22
    %s39 = sphi 0, %s23
    %s43 = sphi 0, %s43
    %s45 = sphi 0, %s43
    %s46 = sphi 0, %s45
    %s60 = sphi 0, %s46
    %s64 = sphi 0, %s64
    %s66 = sphi 0, %s64
    %s67 = sphi 0, %s66
    %s81 = sphi 0, %s67
    %s87 = sphi 0, %s89
    %s90 = sphi 0, %s87
    %s91 = sphi 0, %s90
    %s107 = sphi 0, %s91
  $region4: #{conv_down_forward.4} parent=0 // loop_header_branch
    %12 = sbr.rel (%p10) target = $region8
  $region5: #{conv_down_forward.4} parent=0 // loop_body
    %s14 = ssub.s32 %s9, 1
    %s15 = ssub.s32 %s9, 2
    %s16 = sadd.s32 %s9, 1
    %s17 = ssub.s32 %s9, %s16
    %p18 = scmp.eq.s32.totalorder %s17, 0
    %s20 = sadd.s32 %s19, 1
    %s21 = scalar_select %p18, %s19, %s20
    %p24 = pneg %p18
    %p25 = scmp.eq.s32.totalorder %s9, 1
    %p26 = por %p24, %p25
    %p27 = scmp.ne.s32.totalorder %s19, %s22
    %p28 = scmp.eq.s32.totalorder %s9, 0
    %p29 = por %p27, %p28
    %p30 = scmp.ne.s32.totalorder %s19, %s22
    %p31 = scmp.eq.s32.totalorder %s14, 1
    %p32 = por %p30, %p31
    %p33 = scmp.ne.s32.totalorder %s22, %s23
    %p34 = scmp.eq.s32.totalorder %s14, 0
    %p35 = por %p33, %p34
    %p36 = scmp.ne.s32.totalorder %s22, %s23
    %p37 = scmp.eq.s32.totalorder %s15, 1
    %p38 = por %p36, %p37
    %p40 = scmp.ne.s32.totalorder %s23, %s39
    %p41 = scmp.eq.s32.totalorder %s15, 0
    %p42 = por %p40, %p41
    %s44 = sadd.s32 %s43, 1
    %p47 = scmp.eq.s32.totalorder %s9, 1
    %p48 = scmp.ne.s32.totalorder %s43, %s45
    %p49 = scmp.eq.s32.totalorder %s9, 0
    %p50 = por %p48, %p49
    %p51 = scmp.ne.s32.totalorder %s43, %s45
    %p52 = scmp.eq.s32.totalorder %s14, 1
    %p53 = por %p51, %p52
    %p54 = scmp.ne.s32.totalorder %s45, %s46
    %p55 = scmp.eq.s32.totalorder %s14, 0
    %p56 = por %p54, %p55
    %p57 = scmp.ne.s32.totalorder %s45, %s46
    %p58 = scmp.eq.s32.totalorder %s15, 1
    %p59 = por %p57, %p58
    %p61 = scmp.ne.s32.totalorder %s46, %s60
    %p62 = scmp.eq.s32.totalorder %s15, 0
    %p63 = por %p61, %p62
    %s65 = sadd.s32 %s64, 1
    %p68 = scmp.eq.s32.totalorder %s9, 1
    %p69 = scmp.ne.s32.totalorder %s64, %s66
    %p70 = scmp.eq.s32.totalorder %s9, 0
    %p71 = por %p69, %p70
    %p72 = scmp.ne.s32.totalorder %s64, %s66
    %p73 = scmp.eq.s32.totalorder %s14, 1
    %p74 = por %p72, %p73
    %p75 = scmp.ne.s32.totalorder %s66, %s67
    %p76 = scmp.eq.s32.totalorder %s14, 0
    %p77 = por %p75, %p76
    %p78 = scmp.ne.s32.totalorder %s66, %s67
    %p79 = scmp.eq.s32.totalorder %s15, 1
    %p80 = por %p78, %p79
    %p82 = scmp.ne.s32.totalorder %s67, %s81
    %p83 = scmp.eq.s32.totalorder %s15, 0
    %p84 = por %p82, %p83
    %s85 = ssub.s32 %s9, %s16
    %p86 = scmp.eq.s32.totalorder %s85, 0
    %s88 = sadd.s32 %s87, 1
    %s89 = scalar_select %p86, %s87, %s88
    %p92 = pneg %p86
    %p93 = scmp.eq.s32.totalorder %s9, 1
    %p94 = por %p92, %p93
    %p95 = scmp.ne.s32.totalorder %s87, %s90
    %p96 = scmp.eq.s32.totalorder %s9, 0
    %p97 = por %p95, %p96
    %p98 = scmp.ne.s32.totalorder %s87, %s90
    %p99 = scmp.eq.s32.totalorder %s14, 1
    %p100 = por %p98, %p99
    %p101 = scmp.ne.s32.totalorder %s90, %s91
    %p102 = scmp.eq.s32.totalorder %s14, 0
    %p103 = por %p101, %p102
    %p104 = scmp.ne.s32.totalorder %s90, %s91
    %p105 = scmp.eq.s32.totalorder %s15, 1
    %p106 = por %p104, %p105
    %p108 = scmp.ne.s32.totalorder %s91, %s107
    %p109 = scmp.eq.s32.totalorder %s15, 0
    %p110 = por %p108, %p109
    %p111 = scmp.le.s32.totalorder 1, %s9
    %p112 = scmp.lt.s32.totalorder %s9, 3
    %p113 = pnand %p111, %p112
    %p114 = pneg %p113
    // Predicated region
    $region9: #{conv_down_forward.4} parent=5 // pred_check
      _
    $region10: #{conv_down_forward.4} parent=5 // pred_check_branch
      %116 = sbr.rel (%p113) target = $region12
    $region11: #{conv_down_forward.4} parent=5 // pred_region
      %s117 = ssub.s32 %s9, 1
      // Predicated region
      $region13: #{conv_down_forward.4} parent=11 // pred_check
        %p118 = pneg %p56
      $region14: #{conv_down_forward.4} parent=11 // pred_check_branch
        %120 = sbr.rel (%p118) target = $region16
      $region15: #{conv_down_forward.4} parent=11 // pred_region
        _
      $region16: #{conv_down_forward.4} parent=11 // pred_fallthru
        _
      // Predicated region
      $region17: #{conv_down_forward.4} parent=11 // pred_check
        %p121 = pneg %p77
      $region18: #{conv_down_forward.4} parent=11 // pred_check_branch
        %123 = sbr.rel (%p121) target = $region20
      $region19: #{conv_down_forward.4} parent=11 // pred_region
        _
      $region20: #{conv_down_forward.4} parent=11 // pred_fallthru
        _
    $region12: #{conv_down_forward.4} parent=5 // pred_fallthru
      _
    %p124 = scmp.lt.s32.totalorder %s9, 2
    // Predicated region
    $region21: #{conv_down_forward.4} parent=5 // pred_check
      %p125 = pneg %p124
    $region22: #{conv_down_forward.4} parent=5 // pred_check_branch
      %127 = sbr.rel (%p125) target = $region24
    $region23: #{conv_down_forward.4} parent=5 // pred_region
      // Predicated region
      $region25: #{conv_down_forward.4} parent=23 // pred_check
        %p128 = pneg %p29
      $region26: #{conv_down_forward.4} parent=23 // pred_check_branch
        %130 = sbr.rel (%p128) target = $region28
      $region27: #{conv_down_forward.4} parent=23 // pred_region
        %p131 = scmp.lt.s32.totalorder %s9, 1
        %s132 = scalar_select %p131, %s9, 1
        %s133 = smul.addr %s132, 14
        %s134 = smul.addr %s133, 4
        %s135 = scalar_lea.vmem %s0, %s134
      $region28: #{conv_down_forward.4} parent=23 // pred_fallthru
        _
    $region24: #{conv_down_forward.4} parent=5 // pred_fallthru
      _
    %p136 = scmp.le.s32.totalorder 1, %s9
    %p137 = scmp.lt.s32.totalorder %s9, 3
    %p138 = pnand %p136, %p137
    %p139 = pneg %p138
    // Predicated region
    $region29: #{conv_down_forward.4} parent=5 // pred_check
      _
    $region30: #{conv_down_forward.4} parent=5 // pred_check_branch
      %141 = sbr.rel (%p138) target = $region32
    $region31: #{conv_down_forward.4} parent=5 // pred_region
      %s142 = ssub.s32 %s9, 1
      %p143 = scmp.lt.s32.totalorder %s14, 1
      %s144 = scalar_select %p143, %s14, 1
      %s145 = smul.addr %s144, 14
      %s146 = smul.addr %s145, 4
      %s147 = scalar_lea.vmem %s0, %s146
      %p148 = pneg %p35
      %p149 = pneg %p32
      %p150 = pneg %p56
      %p151 = pneg %p53
      %p152 = pneg %p77
      %p153 = pneg %p74
      %p154 = pneg %p103
      %p155 = pneg %p100
      %p156 = scmp.lt.s32.totalorder %s14, 1
      %s157 = scalar_select %p156, %s14, 1
      %s158 = smul.addr %s157, 10
      %s159 = smul.addr %s158, 8
      %s160 = scalar_lea.vmem %s3, %s159
      %p161 = scmp.lt.s32.totalorder %s14, 1
      %s162 = scalar_select %p161, %s14, 1
      %s163 = smul.addr %s162, 14
      %s164 = smul.addr %s163, 4
      %s165 = scalar_lea.vmem %s0, %s164
      %p166 = scmp.lt.s32.totalorder %s14, 1
      %s167 = scalar_select %p166, %s14, 1
      %s168 = smul.addr %s167, 10
      %s169 = smul.addr %s168, 8
      %s170 = scalar_lea.vmem %s3, %s169
      %v172 = vld [vmem:[%s165] sm:$0xf]
      %v173 = vld [vmem:[%s165 + $0x4] sm:$0xf]
      %v174 = vld [vmem:[%s165 + $0x8] sm:$0xf]
      %v175 = vld [vmem:[%s165 + $0xc] sm:$0xf]
      %v176 = vld [vmem:[%s165 + $0x10] sm:$0xf]
      %v177 = vld [vmem:[%s165 + $0x14] sm:$0xf]
      %v178 = vld [vmem:[%s165 + $0x18] sm:$0xf]
      %v179 = vld [vmem:[%s165 + $0x1c] sm:$0xf]
      %v180 = vld [vmem:[%s165 + $0x20] sm:$0xf]
      %v181 = vld [vmem:[%s165 + $0x24] sm:$0xf]
      %v182 = vld [vmem:[%s1] sm:$0xf]
      %v183 = vld [vmem:[%s165 + $0x28] sm:$0x1]
      %s184 = scalar_lea.vmem %s1, 4
      %v185 = vld [vmem:[%s184] sm:$0xf]
      %v197 = vunpack.c.l.b16 %v172
      %v198 = vunpack.c.l.b16 %v173
      %v199 = vunpack.c.l.b16 %v174
      %v200 = vunpack.c.l.b16 %v175
      %v201 = vunpack.c.l.b16 %v176
      %v202 = vunpack.c.l.b16 %v177
      %v203 = vunpack.c.l.b16 %v178
      %v204 = vunpack.c.l.b16 %v179
      %v205 = vunpack.c.l.b16 %v180
      %v206 = vunpack.c.l.b16 %v181
      %v207 = vunpack.c.l.b16 %v183
      %v208 = vpack.c.b16 %v198, %v197
      %v209 = vpack.c.b16 %v200, %v199
      %v210 = vpack.c.b16 %v202, %v201
      %v211 = vpack.c.b16 %v204, %v203
      %v212 = vpack.c.b16 %v206, %v205
      %v213 = vpack.c.b16 %v207, %v207
      %vm214 = vsmask.f32 7424
      %v216 = vshrl.u32 %v208, 16
      %v218 = vshll.u32 %v208, 16
      %v220 = vrot.slane %v218, 1
      %v221 = vor.u32 %v216, %v220
      %v223 = vshll.u32 %v209, 16
      %v225 = vrot.slane %v223, 1
      %v226 = vsel %vm214, %v221, %v225
      %v227 = vshrl.u32 %v209, 16
      %v229 = vor.u32 %v227, %v225
      %v231 = vshll.u32 %v210, 16
      %v233 = vrot.slane %v231, 1
      %v234 = vsel %vm214, %v229, %v233
      %v235 = vshrl.u32 %v210, 16
      %v237 = vor.u32 %v235, %v233
      %v239 = vshll.u32 %v211, 16
      %v241 = vrot.slane %v239, 1
      %v242 = vsel %vm214, %v237, %v241
      %v243 = vshrl.u32 %v211, 16
      %v245 = vor.u32 %v243, %v241
      %v247 = vshll.u32 %v212, 16
      %v249 = vrot.slane %v247, 1
      %v250 = vsel %vm214, %v245, %v249
      %v251 = vshrl.u32 %v212, 16
      %v253 = vor.u32 %v251, %v249
      %v255 = vshll.u32 %v213, 16
      %v257 = vrot.slane %v255, 1
      %v258 = vsel %vm214, %v253, %v257
      %vm259 = vcmask 64512
      %v261 = vsel %vm259, %v226, 0
      %v264 = vsel %vm259, %v234, 0
      %v267 = vsel %vm259, %v242, 0
      %v270 = vsel %vm259, %v250, 0
      %v273 = vsel %vm259, %v258, 0
      %vm275 = vcmask 1043456
      %v277 = vsel %vm275, %v185, 0
      %279 = vmatprep.subr.bf16.mxu0 0
      %280 = vmatpush1.bf16.msra.mxu0 %v277
      %281 = vmatprep.subr.bf16.mxu0 0
      %282 = vmatpush1.bf16.msra.mxu0 0
      %283 = vmatprep.subr.bf16.mxu0 0
      %284 = vmatpush1.bf16.msra.mxu0 0
      %285 = vmatprep.subr.bf16.mxu0 0
      %286 = vmatpush1.bf16.msra.mxu0 0
      %287 = vmatprep.subr.bf16.mxu0 0
      %288 = vmatpush1.bf16.msra.mxu0 0
      %289 = vmatprep.subr.bf16.mxu0 0
      %290 = vmatpush1.bf16.msra.mxu0 0
      %291 = vmatprep.subr.bf16.mxu0 0
      %292 = vmatpush1.bf16.msra.mxu0 0
      %293 = vmatprep.subr.bf16.mxu0 0
      %294 = vmatpush1.bf16.msra.mxu0 0
      %295 = vmatprep.subr.bf16.mxu0 0
      %296 = vmatpush1.bf16.msra.mxu0 0
      %297 = vmatprep.subr.bf16.mxu0 0
      %298 = vmatpush1.bf16.msra.mxu0 0
      %299 = vmatprep.subr.bf16.mxu0 0
      %300 = vmatpush1.bf16.msra.mxu0 0
      %301 = vmatprep.subr.bf16.mxu0 0
      %302 = vmatpush1.bf16.msra.mxu0 0
      %303 = vmatprep.subr.bf16.mxu0 0
      %304 = vmatpush1.bf16.msra.mxu0 0
      %305 = vmatprep.subr.bf16.mxu0 0
      %306 = vmatpush1.bf16.msra.mxu0 0
      %307 = vmatprep.subr.bf16.mxu0 0
      %308 = vmatpush1.bf16.msra.mxu0 0
      %309 = vmatprep.subr.bf16.mxu0 0
      %310 = vmatpush1.bf16.msra.mxu0 0
      %311 = vmatprep.mubr.bf16.mxu0 0
      %312 = vmatmul.mubr.bf16.gmra.mrb[0].mxu0 %v261
      %v313 = vpop.f32.mrb[0].mxu0
      %v314 = vadd.f32 0.0, %v313
      %v315 = vpop.f32.mrb[0].mxu0
      %v316 = vpop.f32.mrb[0].mxu0
      %v317 = vadd.f32 0.0, %v316
      %v318 = vpop.f32.mrb[0].mxu0
      %319 = vmatprep.mubr.bf16.mxu0 0
      %320 = vmatmul.mubr.bf16.gmra.mrb[0].mxu0 %v264
      %v321 = vpop.f32.mrb[0].mxu0
      %v322 = vadd.f32 0.0, %v321
      %v323 = vpop.f32.mrb[0].mxu0
      %v324 = vpop.f32.mrb[0].mxu0
      %v325 = vadd.f32 0.0, %v324
      %v326 = vpop.f32.mrb[0].mxu0
      %327 = vmatprep.mubr.bf16.mxu0 0
      %328 = vmatmul.mubr.bf16.gmra.mrb[0].mxu0 %v267
      %v329 = vpop.f32.mrb[0].mxu0
      %v330 = vadd.f32 0.0, %v329
      %v331 = vpop.f32.mrb[0].mxu0
      %v332 = vpop.f32.mrb[0].mxu0
      %v333 = vadd.f32 0.0, %v332
      %v334 = vpop.f32.mrb[0].mxu0
      %335 = vmatprep.mubr.bf16.mxu0 0
      %336 = vmatmul.mubr.bf16.gmra.mrb[0].mxu0 %v270
      %v337 = vpop.f32.mrb[0].mxu0
      %v338 = vadd.f32 0.0, %v337
      %v339 = vpop.f32.mrb[0].mxu0
      %v340 = vpop.f32.mrb[0].mxu0
      %v341 = vadd.f32 0.0, %v340
      %v342 = vpop.f32.mrb[0].mxu0
      %343 = vmatprep.mubr.bf16.mxu0 0
      %344 = vmatmul.mubr.bf16.gmra.mrb[0].mxu0 %v273
      %v345 = vpop.f32.mrb[0].mxu0
      %v346 = vadd.f32 0.0, %v345
      %v347 = vpop.f32.mrb[0].mxu0
      %v348 = vpop.f32.mrb[0].mxu0
      %v349 = vadd.f32 0.0, %v348
      %v350 = vpop.f32.mrb[0].mxu0
      %351 = vdwg.mxu0
      %v352 = vsel %vm259, %v208, 0
      %v354 = vsel %vm259, %v209, 0
      %v356 = vsel %vm259, %v210, 0
      %v358 = vsel %vm259, %v211, 0
      %v360 = vsel %vm259, %v212, 0
      %v363 = vsel %vm275, %v182, 0
      %365 = vmatprep.subr.bf16.mxu0 0
      %366 = vmatpush1.bf16.msra.mxu0 %v363
      %367 = vmatprep.subr.bf16.mxu0 0
      %368 = vmatpush1.bf16.msra.mxu0 0
      %369 = vmatprep.subr.bf16.mxu0 0
      %370 = vmatpush1.bf16.msra.mxu0 0
      %371 = vmatprep.subr.bf16.mxu0 0
      %372 = vmatpush1.bf16.msra.mxu0 0
      %373 = vmatprep.subr.bf16.mxu0 0
      %374 = vmatpush1.bf16.msra.mxu0 0
      %375 = vmatprep.subr.bf16.mxu0 0
      %376 = vmatpush1.bf16.msra.mxu0 0
      %377 = vmatprep.subr.bf16.mxu0 0
      %378 = vmatpush1.bf16.msra.mxu0 0
      %379 = vmatprep.subr.bf16.mxu0 0
      %380 = vmatpush1.bf16.msra.mxu0 0
      %381 = vmatprep.subr.bf16.mxu0 0
      %382 = vmatpush1.bf16.msra.mxu0 0
      %383 = vmatprep.subr.bf16.mxu0 0
      %384 = vmatpush1.bf16.msra.mxu0 0
      %385 = vmatprep.subr.bf16.mxu0 0
      %386 = vmatpush1.bf16.msra.mxu0 0
      %387 = vmatprep.subr.bf16.mxu0 0
      %388 = vmatpush1.bf16.msra.mxu0 0
      %389 = vmatprep.subr.bf16.mxu0 0
      %390 = vmatpush1.bf16.msra.mxu0 0
      %391 = vmatprep.subr.bf16.mxu0 0
      %392 = vmatpush1.bf16.msra.mxu0 0
      %393 = vmatprep.subr.bf16.mxu0 0
      %394 = vmatpush1.bf16.msra.mxu0 0
      %395 = vmatprep.subr.bf16.mxu0 0
      %396 = vmatpush1.bf16.msra.mxu0 0
      %397 = vmatprep.mubr.bf16.mxu0 0
      %398 = vmatmul.mubr.bf16.gmra.mrb[0].mxu0 %v352
      %v399 = vpop.f32.mrb[0].mxu0
      %v400 = vadd.f32 %v314, %v399
      %v401 = vpop.f32.mrb[0].mxu0
      %v402 = vpop.f32.mrb[0].mxu0
      %v403 = vadd.f32 %v317, %v402
      %v404 = vpop.f32.mrb[0].mxu0
      %405 = vmatprep.mubr.bf16.mxu0 0
      %406 = vmatmul.mubr.bf16.gmra.mrb[0].mxu0 %v354
      %v407 = vpop.f32.mrb[0].mxu0
      %v408 = vadd.f32 %v322, %v407
      %v409 = vpop.f32.mrb[0].mxu0
      %v410 = vpop.f32.mrb[0].mxu0
      %v411 = vadd.f32 %v325, %v410
      %v412 = vpop.f32.mrb[0].mxu0
      %413 = vmatprep.mubr.bf16.mxu0 0
      %414 = vmatmul.mubr.bf16.gmra.mrb[0].mxu0 %v356
      %v415 = vpop.f32.mrb[0].mxu0
      %v416 = vadd.f32 %v330, %v415
      %v417 = vpop.f32.mrb[0].mxu0
      %v418 = vpop.f32.mrb[0].mxu0
      %v419 = vadd.f32 %v333, %v418
      %v420 = vpop.f32.mrb[0].mxu0
      %421 = vmatprep.mubr.bf16.mxu0 0
      %422 = vmatmul.mubr.bf16.gmra.mrb[0].mxu0 %v358
      %v423 = vpop.f32.mrb[0].mxu0
      %v424 = vadd.f32 %v338, %v423
      %v425 = vpop.f32.mrb[0].mxu0
      %v426 = vpop.f32.mrb[0].mxu0
      %v427 = vadd.f32 %v341, %v426
      %v428 = vpop.f32.mrb[0].mxu0
      %429 = vmatprep.mubr.bf16.mxu0 0
      %430 = vmatmul.mubr.bf16.gmra.mrb[0].mxu0 %v360
      %v431 = vpop.f32.mrb[0].mxu0
      %v432 = vadd.f32 %v346, %v431
      %v433 = vpop.f32.mrb[0].mxu0
      %v434 = vpop.f32.mrb[0].mxu0
      %v435 = vadd.f32 %v349, %v434
      %v436 = vpop.f32.mrb[0].mxu0
      %437 = vdwg.mxu0
      %v438 = vld [vmem:[%s165] sm:$0xe]
      %s439 = scalar_lea.vmem %s1, 8
      %v440 = vld [vmem:[%s439] sm:$0xf]
      %v442 = vunpack.c.l.b16 %v438
      %v443 = vpack.c.b16 %v198, %v442
      %vm444 = vcmask 1046528
      %v445 = vrot.slane %v443, 1
      %v446 = vrot.slane %v209, 1
      %v447 = vsel %vm444, %v445, %v446
      %v448 = vrot.slane %v210, 1
      %v449 = vsel %vm444, %v446, %v448
      %v450 = vrot.slane %v211, 1
      %v451 = vsel %vm444, %v448, %v450
      %v452 = vrot.slane %v212, 1
      %v453 = vsel %vm444, %v450, %v452
      %v454 = vrot.slane %v213, 1
      %v455 = vsel %vm444, %v452, %v454
      %v457 = vsel %vm259, %v447, 0
      %v460 = vsel %vm259, %v449, 0
      %v463 = vsel %vm259, %v451, 0
      %v466 = vsel %vm259, %v453, 0
      %v469 = vsel %vm259, %v455, 0
      %v472 = vsel %vm275, %v440, 0
      %474 = vmatprep.subr.bf16.mxu0 0
      %475 = vmatpush1.bf16.msra.mxu0 %v472
      %476 = vmatprep.subr.bf16.mxu0 0
      %477 = vmatpush1.bf16.msra.mxu0 0
      %478 = vmatprep.subr.bf16.mxu0 0
      %479 = vmatpush1.bf16.msra.mxu0 0
      %480 = vmatprep.subr.bf16.mxu0 0
      %481 = vmatpush1.bf16.msra.mxu0 0
      %482 = vmatprep.subr.bf16.mxu0 0
      %483 = vmatpush1.bf16.msra.mxu0 0
      %484 = vmatprep.subr.bf16.mxu0 0
      %485 = vmatpush1.bf16.msra.mxu0 0
      %486 = vmatprep.subr.bf16.mxu0 0
      %487 = vmatpush1.bf16.msra.mxu0 0
      %488 = vmatprep.subr.bf16.mxu0 0
      %489 = vmatpush1.bf16.msra.mxu0 0
      %490 = vmatprep.subr.bf16.mxu0 0
      %491 = vmatpush1.bf16.msra.mxu0 0
      %492 = vmatprep.subr.bf16.mxu0 0
      %493 = vmatpush1.bf16.msra.mxu0 0
      %494 = vmatprep.subr.bf16.mxu0 0
      %495 = vmatpush1.bf16.msra.mxu0 0
      %496 = vmatprep.subr.bf16.mxu0 0
      %497 = vmatpush1.bf16.msra.mxu0 0
      %498 = vmatprep.subr.bf16.mxu0 0
      %499 = vmatpush1.bf16.msra.mxu0 0
      %500 = vmatprep.subr.bf16.mxu0 0
      %501 = vmatpush1.bf16.msra.mxu0 0
      %502 = vmatprep.subr.bf16.mxu0 0
      %503 = vmatpush1.bf16.msra.mxu0 0
      %504 = vmatprep.subr.bf16.mxu0 0
      %505 = vmatpush1.bf16.msra.mxu0 0
      %506 = vmatprep.mubr.bf16.mxu0 0
      %507 = vmatmul.mubr.bf16.gmra.mrb[0].mxu0 %v457
      %v508 = vpop.f32.mrb[0].mxu0
      %v509 = vadd.f32 0.0, %v508
      %v510 = vpop.f32.mrb[0].mxu0
      %v511 = vpop.f32.mrb[0].mxu0
      %v512 = vadd.f32 0.0, %v511
      %v513 = vpop.f32.mrb[0].mxu0
      %514 = vmatprep.mubr.bf16.mxu0 0
      %515 = vmatmul.mubr.bf16.gmra.mrb[0].mxu0 %v460
      %v516 = vpop.f32.mrb[0].mxu0
      %v517 = vadd.f32 0.0, %v516
      %v518 = vpop.f32.mrb[0].mxu0
      %v519 = vpop.f32.mrb[0].mxu0
      %v520 = vadd.f32 0.0, %v519
      %v521 = vpop.f32.mrb[0].mxu0
      %522 = vmatprep.mubr.bf16.mxu0 0
      %523 = vmatmul.mubr.bf16.gmra.mrb[0].mxu0 %v463
      %v524 = vpop.f32.mrb[0].mxu0
      %v525 = vadd.f32 0.0, %v524
      %v526 = vpop.f32.mrb[0].mxu0
      %v527 = vpop.f32.mrb[0].mxu0
      %v528 = vadd.f32 0.0, %v527
      %v529 = vpop.f32.mrb[0].mxu0
      %530 = vmatprep.mubr.bf16.mxu0 0
      %531 = vmatmul.mubr.bf16.gmra.mrb[0].mxu0 %v466
      %v532 = vpop.f32.mrb[0].mxu0
      %v533 = vadd.f32 0.0, %v532
      %v534 = vpop.f32.mrb[0].mxu0
      %v535 = vpop.f32.mrb[0].mxu0
      %v536 = vadd.f32 0.0, %v535
      %v537 = vpop.f32.mrb[0].mxu0
      %538 = vmatprep.mubr.bf16.mxu0 0
      %539 = vmatmul.mubr.bf16.gmra.mrb[0].mxu0 %v469
      %v540 = vpop.f32.mrb[0].mxu0
      %v541 = vadd.f32 0.0, %v540
      %v542 = vpop.f32.mrb[0].mxu0
      %v543 = vpop.f32.mrb[0].mxu0
      %v544 = vadd.f32 0.0, %v543
      %v545 = vpop.f32.mrb[0].mxu0
      %546 = vdwg.mxu0
      %v547 = vadd.f32 %v400, %v509
      %v548 = vadd.f32 %v403, %v512
      %v549 = vadd.f32 %v408, %v517
      %v550 = vadd.f32 %v411, %v520
      %v551 = vadd.f32 %v416, %v525
      %v552 = vadd.f32 %v419, %v528
      %v553 = vadd.f32 %v424, %v533
      %v554 = vadd.f32 %v427, %v536
      %v555 = vadd.f32 %v432, %v541
      %v556 = vadd.f32 %v435, %v544
      %v557 = vld [vmem:[%s165 + $0x4] sm:$0xe]
      %v558 = vld [vmem:[%s165 + $0x8] sm:$0xf]
      %v559 = vld [vmem:[%s165 + $0xc] sm:$0xf]
      %v560 = vld [vmem:[%s165 + $0x10] sm:$0xf]
      %v561 = vld [vmem:[%s165 + $0x14] sm:$0xf]
      %v562 = vld [vmem:[%s165 + $0x18] sm:$0xf]
      %v563 = vld [vmem:[%s165 + $0x1c] sm:$0xf]
      %v564 = vld [vmem:[%s165 + $0x20] sm:$0xf]
      %v565 = vld [vmem:[%s165 + $0x24] sm:$0xf]
      %v566 = vld [vmem:[%s165 + $0x28] sm:$0xf]
      %v567 = vld [vmem:[%s165 + $0x2c] sm:$0x1]
      %s568 = scalar_lea.vmem %s1, 12
      %v569 = vld [vmem:[%s568] sm:$0xf]
      %v581 = vunpack.c.l.b16 %v557
      %v582 = vunpack.c.l.b16 %v558
      %v583 = vunpack.c.l.b16 %v559
      %v584 = vunpack.c.l.b16 %v560
      %v585 = vunpack.c.l.b16 %v561
      %v586 = vunpack.c.l.b16 %v562
      %v587 = vunpack.c.l.b16 %v563
      %v588 = vunpack.c.l.b16 %v564
      %v589 = vunpack.c.l.b16 %v565
      %v590 = vunpack.c.l.b16 %v566
      %v591 = vunpack.c.l.b16 %v567
      %v592 = vpack.c.b16 %v582, %v581
      %v593 = vpack.c.b16 %v584, %v583
      %v594 = vpack.c.b16 %v586, %v585
      %v595 = vpack.c.b16 %v588, %v587
      %v596 = vpack.c.b16 %v590, %v589
      %v597 = vpack.c.b16 %v591, %v591
      %v598 = vrot.slane %v592, 1
      %v599 = vrot.slane %v593, 1
      %v600 = vsel %vm444, %v598, %v599
      %v601 = vrot.slane %v594, 1
      %v602 = vsel %vm444, %v599, %v601
      %v603 = vrot.slane %v595, 1
      %v604 = vsel %vm444, %v601, %v603
      %v605 = vrot.slane %v596, 1
      %v606 = vsel %vm444, %v603, %v605
      %v607 = vrot.slane %v597, 1
      %v608 = vsel %vm444, %v605, %v607
      %v610 = vsel %vm259, %v600, 0
      %v613 = vsel %vm259, %v602, 0
      %v616 = vsel %vm259, %v604, 0
      %v619 = vsel %vm259, %v606, 0
      %v622 = vsel %vm259, %v608, 0
      %v625 = vsel %vm275, %v569, 0
      %627 = vmatprep.subr.bf16.mxu0 0
      %628 = vmatpush1.bf16.msra.mxu0 %v625
      %629 = vmatprep.subr.bf16.mxu0 0
      %630 = vmatpush1.bf16.msra.mxu0 0
      %631 = vmatprep.subr.bf16.mxu0 0
      %632 = vmatpush1.bf16.msra.mxu0 0
      %633 = vmatprep.subr.bf16.mxu0 0
      %634 = vmatpush1.bf16.msra.mxu0 0
      %635 = vmatprep.subr.bf16.mxu0 0
      %636 = vmatpush1.bf16.msra.mxu0 0
      %637 = vmatprep.subr.bf16.mxu0 0
      %638 = vmatpush1.bf16.msra.mxu0 0
      %639 = vmatprep.subr.bf16.mxu0 0
      %640 = vmatpush1.bf16.msra.mxu0 0
      %641 = vmatprep.subr.bf16.mxu0 0
      %642 = vmatpush1.bf16.msra.mxu0 0
      %643 = vmatprep.subr.bf16.mxu0 0
      %644 = vmatpush1.bf16.msra.mxu0 0
      %645 = vmatprep.subr.bf16.mxu0 0
      %646 = vmatpush1.bf16.msra.mxu0 0
      %647 = vmatprep.subr.bf16.mxu0 0
      %648 = vmatpush1.bf16.msra.mxu0 0
      %649 = vmatprep.subr.bf16.mxu0 0
      %650 = vmatpush1.bf16.msra.mxu0 0
      %651 = vmatprep.subr.bf16.mxu0 0
      %652 = vmatpush1.bf16.msra.mxu0 0
      %653 = vmatprep.subr.bf16.mxu0 0
      %654 = vmatpush1.bf16.msra.mxu0 0
      %655 = vmatprep.subr.bf16.mxu0 0
      %656 = vmatpush1.bf16.msra.mxu0 0
      %657 = vmatprep.subr.bf16.mxu0 0
      %658 = vmatpush1.bf16.msra.mxu0 0
      %659 = vmatprep.mubr.bf16.mxu0 0
      %660 = vmatmul.mubr.bf16.gmra.mrb[0].mxu0 %v610
      %v661 = vpop.f32.mrb[0].mxu0
      %v662 = vadd.f32 0.0, %v661
      %v663 = vpop.f32.mrb[0].mxu0
      %v664 = vpop.f32.mrb[0].mxu0
      %v665 = vadd.f32 0.0, %v664
      %v666 = vpop.f32.mrb[0].mxu0
      %667 = vmatprep.mubr.bf16.mxu0 0
      %668 = vmatmul.mubr.bf16.gmra.mrb[0].mxu0 %v613
      %v669 = vpop.f32.mrb[0].mxu0
      %v670 = vadd.f32 0.0, %v669
      %v671 = vpop.f32.mrb[0].mxu0
      %v672 = vpop.f32.mrb[0].mxu0
      %v673 = vadd.f32 0.0, %v672
      %v674 = vpop.f32.mrb[0].mxu0
      %675 = vmatprep.mubr.bf16.mxu0 0
      %676 = vmatmul.mubr.bf16.gmra.mrb[0].mxu0 %v616
      %v677 = vpop.f32.mrb[0].mxu0
      %v678 = vadd.f32 0.0, %v677
      %v679 = vpop.f32.mrb[0].mxu0
      %v680 = vpop.f32.mrb[0].mxu0
      %v681 = vadd.f32 0.0, %v680
      %v682 = vpop.f32.mrb[0].mxu0
      %683 = vmatprep.mubr.bf16.mxu0 0
      %684 = vmatmul.mubr.bf16.gmra.mrb[0].mxu0 %v619
      %v685 = vpop.f32.mrb[0].mxu0
      %v686 = vadd.f32 0.0, %v685
      %v687 = vpop.f32.mrb[0].mxu0
      %v688 = vpop.f32.mrb[0].mxu0
      %v689 = vadd.f32 0.0, %v688
      %v690 = vpop.f32.mrb[0].mxu0
      %691 = vmatprep.mubr.bf16.mxu0 0
      %692 = vmatmul.mubr.bf16.gmra.mrb[0].mxu0 %v622
      %v693 = vpop.f32.mrb[0].mxu0
      %v694 = vadd.f32 0.0, %v693
      %v695 = vpop.f32.mrb[0].mxu0
      %v696 = vpop.f32.mrb[0].mxu0
      %v697 = vadd.f32 0.0, %v696
      %v698 = vpop.f32.mrb[0].mxu0
      %699 = vdwg.mxu0
      %v700 = vadd.f32 %v547, %v662
      %v701 = vadd.f32 %v548, %v665
      %v702 = vadd.f32 %v549, %v670
      %v703 = vadd.f32 %v550, %v673
      %v704 = vadd.f32 %v551, %v678
      %v705 = vadd.f32 %v552, %v681
      %v706 = vadd.f32 %v553, %v686
      %v707 = vadd.f32 %v554, %v689
      %v708 = vadd.f32 %v555, %v694
      %v709 = vadd.f32 %v556, %v697
      %v710 = vld [vmem:[%s165 + $0x2c] sm:$0x3]
      %s711 = scalar_lea.vmem %s1, 16
      %v712 = vld [vmem:[%s711] sm:$0xf]
      %v714 = vunpack.c.l.b16 %v710
      %v715 = vpack.c.b16 %v714, %v714
      %vm716 = vsmask.f32 6400
      %v718 = vshrl.u32 %v592, 16
      %v720 = vrot.slane %v718, 1
      %v721 = vshll.u32 %v592, 16
      %v723 = vrot.slane %v721, 2
      %v724 = vor.u32 %v720, %v723
      %v726 = vshrl.u32 %v593, 16
      %v728 = vrot.slane %v726, 1
      %v729 = vshll.u32 %v593, 16
      %v731 = vrot.slane %v729, 2
      %v732 = vor.u32 %v728, %v731
      %v733 = vsel %vm716, %v724, %v732
      %v735 = vshrl.u32 %v594, 16
      %v737 = vrot.slane %v735, 1
      %v738 = vshll.u32 %v594, 16
      %v740 = vrot.slane %v738, 2
      %v741 = vor.u32 %v737, %v740
      %v742 = vsel %vm716, %v732, %v741
      %v744 = vshrl.u32 %v595, 16
      %v746 = vrot.slane %v744, 1
      %v747 = vshll.u32 %v595, 16
      %v749 = vrot.slane %v747, 2
      %v750 = vor.u32 %v746, %v749
      %v751 = vsel %vm716, %v741, %v750
      %v753 = vshrl.u32 %v596, 16
      %v755 = vrot.slane %v753, 1
      %v756 = vshll.u32 %v596, 16
      %v758 = vrot.slane %v756, 2
      %v759 = vor.u32 %v755, %v758
      %v760 = vsel %vm716, %v750, %v759
      %v762 = vshrl.u32 %v715, 16
      %v764 = vrot.slane %v762, 1
      %v765 = vshll.u32 %v715, 16
      %v767 = vrot.slane %v765, 2
      %v768 = vor.u32 %v764, %v767
      %v769 = vsel %vm716, %v759, %v768
      %v771 = vsel %vm259, %v733, 0
      %v774 = vsel %vm259, %v742, 0
      %v777 = vsel %vm259, %v751, 0
      %v780 = vsel %vm259, %v760, 0
      %v783 = vsel %vm259, %v769, 0
      %v786 = vsel %vm275, %v712, 0
      %788 = vmatprep.subr.bf16.mxu0 0
      %789 = vmatpush1.bf16.msra.mxu0 %v786
      %790 = vmatprep.subr.bf16.mxu0 0
      %791 = vmatpush1.bf16.msra.mxu0 0
      %792 = vmatprep.subr.bf16.mxu0 0
      %793 = vmatpush1.bf16.msra.mxu0 0
      %794 = vmatprep.subr.bf16.mxu0 0
      %795 = vmatpush1.bf16.msra.mxu0 0
      %796 = vmatprep.subr.bf16.mxu0 0
      %797 = vmatpush1.bf16.msra.mxu0 0
      %798 = vmatprep.subr.bf16.mxu0 0
      %799 = vmatpush1.bf16.msra.mxu0 0
      %800 = vmatprep.subr.bf16.mxu0 0
      %801 = vmatpush1.bf16.msra.mxu0 0
      %802 = vmatprep.subr.bf16.mxu0 0
      %803 = vmatpush1.bf16.msra.mxu0 0
      %804 = vmatprep.subr.bf16.mxu0 0
      %805 = vmatpush1.bf16.msra.mxu0 0
      %806 = vmatprep.subr.bf16.mxu0 0
      %807 = vmatpush1.bf16.msra.mxu0 0
      %808 = vmatprep.subr.bf16.mxu0 0
      %809 = vmatpush1.bf16.msra.mxu0 0
      %810 = vmatprep.subr.bf16.mxu0 0
      %811 = vmatpush1.bf16.msra.mxu0 0
      %812 = vmatprep.subr.bf16.mxu0 0
      %813 = vmatpush1.bf16.msra.mxu0 0
      %814 = vmatprep.subr.bf16.mxu0 0
      %815 = vmatpush1.bf16.msra.mxu0 0
      %816 = vmatprep.subr.bf16.mxu0 0
      %817 = vmatpush1.bf16.msra.mxu0 0
      %818 = vmatprep.subr.bf16.mxu0 0
      %819 = vmatpush1.bf16.msra.mxu0 0
      %820 = vmatprep.mubr.bf16.mxu0 0
      %821 = vmatmul.mubr.bf16.gmra.mrb[0].mxu0 %v771
      %v822 = vpop.f32.mrb[0].mxu0
      %v823 = vadd.f32 0.0, %v822
      %v824 = vpop.f32.mrb[0].mxu0
      %v825 = vpop.f32.mrb[0].mxu0
      %v826 = vadd.f32 0.0, %v825
      %v827 = vpop.f32.mrb[0].mxu0
      %828 = vmatprep.mubr.bf16.mxu0 0
      %829 = vmatmul.mubr.bf16.gmra.mrb[0].mxu0 %v774
      %v830 = vpop.f32.mrb[0].mxu0
      %v831 = vadd.f32 0.0, %v830
      %v832 = vpop.f32.mrb[0].mxu0
      %v833 = vpop.f32.mrb[0].mxu0
      %v834 = vadd.f32 0.0, %v833
      %v835 = vpop.f32.mrb[0].mxu0
      %836 = vmatprep.mubr.bf16.mxu0 0
      %837 = vmatmul.mubr.bf16.gmra.mrb[0].mxu0 %v777
      %v838 = vpop.f32.mrb[0].mxu0
      %v839 = vadd.f32 0.0, %v838
      %v840 = vpop.f32.mrb[0].mxu0
      %v841 = vpop.f32.mrb[0].mxu0
      %v842 = vadd.f32 0.0, %v841
      %v843 = vpop.f32.mrb[0].mxu0
      %844 = vmatprep.mubr.bf16.mxu0 0
      %845 = vmatmul.mubr.bf16.gmra.mrb[0].mxu0 %v780
      %v846 = vpop.f32.mrb[0].mxu0
      %v847 = vadd.f32 0.0, %v846
      %v848 = vpop.f32.mrb[0].mxu0
      %v849 = vpop.f32.mrb[0].mxu0
      %v850 = vadd.f32 0.0, %v849
      %v851 = vpop.f32.mrb[0].mxu0
      %852 = vmatprep.mubr.bf16.mxu0 0
      %853 = vmatmul.mubr.bf16.gmra.mrb[0].mxu0 %v783
      %v854 = vpop.f32.mrb[0].mxu0
      %v855 = vadd.f32 0.0, %v854
      %v856 = vpop.f32.mrb[0].mxu0
      %v857 = vpop.f32.mrb[0].mxu0
      %v858 = vadd.f32 0.0, %v857
      %v859 = vpop.f32.mrb[0].mxu0
      %860 = vdwg.mxu0
      %v861 = vadd.f32 %v700, %v823
      %v862 = vadd.f32 %v701, %v826
      %v863 = vadd.f32 %v702, %v831
      %v864 = vadd.f32 %v703, %v834
      %v865 = vadd.f32 %v704, %v839
      %v866 = vadd.f32 %v705, %v842
      %v867 = vadd.f32 %v706, %v847
      %v868 = vadd.f32 %v707, %v850
      %v869 = vadd.f32 %v708, %v855
      %v870 = vadd.f32 %v709, %v858
      %v871 = vld [vmem:[%s165 + $0x4] sm:$0xc]
      %s872 = scalar_lea.vmem %s1, 20
      %v873 = vld [vmem:[%s872] sm:$0xf]
      %v875 = vunpack.c.l.b16 %v871
      %v876 = vpack.c.b16 %v582, %v875
      %vm877 = vcmask 1045504
      %v878 = vrot.slane %v876, 2
      %v879 = vrot.slane %v593, 2
      %v880 = vsel %vm877, %v878, %v879
      %v881 = vrot.slane %v594, 2
      %v882 = vsel %vm877, %v879, %v881
      %v883 = vrot.slane %v595, 2
      %v884 = vsel %vm877, %v881, %v883
      %v885 = vrot.slane %v596, 2
      %v886 = vsel %vm877, %v883, %v885
      %v887 = vrot.slane %v715, 2
      %v888 = vsel %vm877, %v885, %v887
      %v890 = vsel %vm259, %v880, 0
      %v893 = vsel %vm259, %v882, 0
      %v896 = vsel %vm259, %v884, 0
      %v899 = vsel %vm259, %v886, 0
      %v902 = vsel %vm259, %v888, 0
      %v905 = vsel %vm275, %v873, 0
      %907 = vmatprep.subr.bf16.mxu0 0
      %908 = vmatpush1.bf16.msra.mxu0 %v905
      %909 = vmatprep.subr.bf16.mxu0 0
      %910 = vmatpush1.bf16.msra.mxu0 0
      %911 = vmatprep.subr.bf16.mxu0 0
      %912 = vmatpush1.bf16.msra.mxu0 0
      %913 = vmatprep.subr.bf16.mxu0 0
      %914 = vmatpush1.bf16.msra.mxu0 0
      %915 = vmatprep.subr.bf16.mxu0 0
      %916 = vmatpush1.bf16.msra.mxu0 0
      %917 = vmatprep.subr.bf16.mxu0 0
      %918 = vmatpush1.bf16.msra.mxu0 0
      %919 = vmatprep.subr.bf16.mxu0 0
      %920 = vmatpush1.bf16.msra.mxu0 0
      %921 = vmatprep.subr.bf16.mxu0 0
      %922 = vmatpush1.bf16.msra.mxu0 0
      %923 = vmatprep.subr.bf16.mxu0 0
      %924 = vmatpush1.bf16.msra.mxu0 0
      %925 = vmatprep.subr.bf16.mxu0 0
      %926 = vmatpush1.bf16.msra.mxu0 0
      %927 = vmatprep.subr.bf16.mxu0 0
      %928 = vmatpush1.bf16.msra.mxu0 0
      %929 = vmatprep.subr.bf16.mxu0 0
      %930 = vmatpush1.bf16.msra.mxu0 0
      %931 = vmatprep.subr.bf16.mxu0 0
      %932 = vmatpush1.bf16.msra.mxu0 0
      %933 = vmatprep.subr.bf16.mxu0 0
      %934 = vmatpush1.bf16.msra.mxu0 0
      %935 = vmatprep.subr.bf16.mxu0 0
      %936 = vmatpush1.bf16.msra.mxu0 0
      %937 = vmatprep.subr.bf16.mxu0 0
      %938 = vmatpush1.bf16.msra.mxu0 0
      %939 = vmatprep.mubr.bf16.mxu0 0
      %940 = vmatmul.mubr.bf16.gmra.mrb[0].mxu0 %v890
      %v941 = vpop.f32.mrb[0].mxu0
      %v942 = vadd.f32 0.0, %v941
      %v943 = vpop.f32.mrb[0].mxu0
      %v944 = vpop.f32.mrb[0].mxu0
      %v945 = vadd.f32 0.0, %v944
      %v946 = vpop.f32.mrb[0].mxu0
      %947 = vmatprep.mubr.bf16.mxu0 0
      %948 = vmatmul.mubr.bf16.gmra.mrb[0].mxu0 %v893
      %v949 = vpop.f32.mrb[0].mxu0
      %v950 = vadd.f32 0.0, %v949
      %v951 = vpop.f32.mrb[0].mxu0
      %v952 = vpop.f32.mrb[0].mxu0
      %v953 = vadd.f32 0.0, %v952
      %v954 = vpop.f32.mrb[0].mxu0
      %955 = vmatprep.mubr.bf16.mxu0 0
      %956 = vmatmul.mubr.bf16.gmra.mrb[0].mxu0 %v896
      %v957 = vpop.f32.mrb[0].mxu0
      %v958 = vadd.f32 0.0, %v957
      %v959 = vpop.f32.mrb[0].mxu0
      %v960 = vpop.f32.mrb[0].mxu0
      %v961 = vadd.f32 0.0, %v960
      %v962 = vpop.f32.mrb[0].mxu0
      %963 = vmatprep.mubr.bf16.mxu0 0
      %964 = vmatmul.mubr.bf16.gmra.mrb[0].mxu0 %v899
      %v965 = vpop.f32.mrb[0].mxu0
      %v966 = vadd.f32 0.0, %v965
      %v967 = vpop.f32.mrb[0].mxu0
      %v968 = vpop.f32.mrb[0].mxu0
      %v969 = vadd.f32 0.0, %v968
      %v970 = vpop.f32.mrb[0].mxu0
      %971 = vmatprep.mubr.bf16.mxu0 0
      %972 = vmatmul.mubr.bf16.gmra.mrb[0].mxu0 %v902
      %v973 = vpop.f32.mrb[0].mxu0
      %v974 = vadd.f32 0.0, %v973
      %v975 = vpop.f32.mrb[0].mxu0
      %v976 = vpop.f32.mrb[0].mxu0
      %v977 = vadd.f32 0.0, %v976
      %v978 = vpop.f32.mrb[0].mxu0
      %979 = vdwg.mxu0
      %v980 = vadd.f32 %v861, %v942
      %v981 = vadd.f32 %v862, %v945
      %v982 = vadd.f32 %v863, %v950
      %v983 = vadd.f32 %v864, %v953
      %v984 = vadd.f32 %v865, %v958
      %v985 = vadd.f32 %v866, %v961
      %v986 = vadd.f32 %v867, %v966
      %v987 = vadd.f32 %v868, %v969
      %v988 = vadd.f32 %v869, %v974
      %v989 = vadd.f32 %v870, %v977
      %v990 = vld [vmem:[%s165 + $0x8] sm:$0xc]
      %v991 = vld [vmem:[%s165 + $0xc] sm:$0xf]
      %v992 = vld [vmem:[%s165 + $0x10] sm:$0xf]
      %v993 = vld [vmem:[%s165 + $0x14] sm:$0xf]
      %v994 = vld [vmem:[%s165 + $0x18] sm:$0xf]
      %v995 = vld [vmem:[%s165 + $0x1c] sm:$0xf]
      %v996 = vld [vmem:[%s165 + $0x20] sm:$0xf]
      %v997 = vld [vmem:[%s165 + $0x24] sm:$0xf]
      %v998 = vld [vmem:[%s165 + $0x28] sm:$0xf]
      %v999 = vld [vmem:[%s165 + $0x2c] sm:$0xf]
      %v1000 = vld [vmem:[%s165 + $0x30] sm:$0x3]
      %s1001 = scalar_lea.vmem %s1, 24
      %v1002 = vld [vmem:[%s1001] sm:$0xf]
      %v1014 = vunpack.c.l.b16 %v990
      %v1015 = vunpack.c.l.b16 %v991
      %v1016 = vunpack.c.l.b16 %v992
      %v1017 = vunpack.c.l.b16 %v993
      %v1018 = vunpack.c.l.b16 %v994
      %v1019 = vunpack.c.l.b16 %v995
      %v1020 = vunpack.c.l.b16 %v996
      %v1021 = vunpack.c.l.b16 %v997
      %v1022 = vunpack.c.l.b16 %v998
      %v1023 = vunpack.c.l.b16 %v999
      %v1024 = vunpack.c.l.b16 %v1000
      %v1025 = vpack.c.b16 %v1015, %v1014
      %v1026 = vpack.c.b16 %v1017, %v1016
      %v1027 = vpack.c.b16 %v1019, %v1018
      %v1028 = vpack.c.b16 %v1021, %v1020
      %v1029 = vpack.c.b16 %v1023, %v1022
      %v1030 = vpack.c.b16 %v1024, %v1024
      %v1031 = vrot.slane %v1025, 2
      %v1032 = vrot.slane %v1026, 2
      %v1033 = vsel %vm877, %v1031, %v1032
      %v1034 = vrot.slane %v1027, 2
      %v1035 = vsel %vm877, %v1032, %v1034
      %v1036 = vrot.slane %v1028, 2
      %v1037 = vsel %vm877, %v1034, %v1036
      %v1038 = vrot.slane %v1029, 2
      %v1039 = vsel %vm877, %v1036, %v1038
      %v1040 = vrot.slane %v1030, 2
      %v1041 = vsel %vm877, %v1038, %v1040
      %v1043 = vsel %vm259, %v1033, 0
      %v1046 = vsel %vm259, %v1035, 0
      %v1049 = vsel %vm259, %v1037, 0
      %v1052 = vsel %vm259, %v1039, 0
      %v1055 = vsel %vm259, %v1041, 0
      %v1058 = vsel %vm275, %v1002, 0
      %1060 = vmatprep.subr.bf16.mxu0 0
      %1061 = vmatpush1.bf16.msra.mxu0 %v1058
      %1062 = vmatprep.subr.bf16.mxu0 0
      %1063 = vmatpush1.bf16.msra.mxu0 0
      %1064 = vmatprep.subr.bf16.mxu0 0
      %1065 = vmatpush1.bf16.msra.mxu0 0
      %1066 = vmatprep.subr.bf16.mxu0 0
      %1067 = vmatpush1.bf16.msra.mxu0 0
      %1068 = vmatprep.subr.bf16.mxu0 0
      %1069 = vmatpush1.bf16.msra.mxu0 0
      %1070 = vmatprep.subr.bf16.mxu0 0
      %1071 = vmatpush1.bf16.msra.mxu0 0
      %1072 = vmatprep.subr.bf16.mxu0 0
      %1073 = vmatpush1.bf16.msra.mxu0 0
      %1074 = vmatprep.subr.bf16.mxu0 0
      %1075 = vmatpush1.bf16.msra.mxu0 0
      %1076 = vmatprep.subr.bf16.mxu0 0
      %1077 = vmatpush1.bf16.msra.mxu0 0
      %1078 = vmatprep.subr.bf16.mxu0 0
      %1079 = vmatpush1.bf16.msra.mxu0 0
      %1080 = vmatprep.subr.bf16.mxu0 0
      %1081 = vmatpush1.bf16.msra.mxu0 0
      %1082 = vmatprep.subr.bf16.mxu0 0
      %1083 = vmatpush1.bf16.msra.mxu0 0
      %1084 = vmatprep.subr.bf16.mxu0 0
      %1085 = vmatpush1.bf16.msra.mxu0 0
      %1086 = vmatprep.subr.bf16.mxu0 0
      %1087 = vmatpush1.bf16.msra.mxu0 0
      %1088 = vmatprep.subr.bf16.mxu0 0
      %1089 = vmatpush1.bf16.msra.mxu0 0
      %1090 = vmatprep.subr.bf16.mxu0 0
      %1091 = vmatpush1.bf16.msra.mxu0 0
      %1092 = vmatprep.mubr.bf16.mxu0 0
      %1093 = vmatmul.mubr.bf16.gmra.mrb[0].mxu0 %v1043
      %v1094 = vpop.f32.mrb[0].mxu0
      %v1095 = vadd.f32 0.0, %v1094
      %v1096 = vpop.f32.mrb[0].mxu0
      %v1097 = vpop.f32.mrb[0].mxu0
      %v1098 = vadd.f32 0.0, %v1097
      %v1099 = vpop.f32.mrb[0].mxu0
      %1100 = vmatprep.mubr.bf16.mxu0 0
      %1101 = vmatmul.mubr.bf16.gmra.mrb[0].mxu0 %v1046
      %v1102 = vpop.f32.mrb[0].mxu0
      %v1103 = vadd.f32 0.0, %v1102
      %v1104 = vpop.f32.mrb[0].mxu0
      %v1105 = vpop.f32.mrb[0].mxu0
      %v1106 = vadd.f32 0.0, %v1105
      %v1107 = vpop.f32.mrb[0].mxu0
      %1108 = vmatprep.mubr.bf16.mxu0 0
      %1109 = vmatmul.mubr.bf16.gmra.mrb[0].mxu0 %v1049
      %v1110 = vpop.f32.mrb[0].mxu0
      %v1111 = vadd.f32 0.0, %v1110
      %v1112 = vpop.f32.mrb[0].mxu0
      %v1113 = vpop.f32.mrb[0].mxu0
      %v1114 = vadd.f32 0.0, %v1113
      %v1115 = vpop.f32.mrb[0].mxu0
      %1116 = vmatprep.mubr.bf16.mxu0 0
      %1117 = vmatmul.mubr.bf16.gmra.mrb[0].mxu0 %v1052
      %v1118 = vpop.f32.mrb[0].mxu0
      %v1119 = vadd.f32 0.0, %v1118
      %v1120 = vpop.f32.mrb[0].mxu0
      %v1121 = vpop.f32.mrb[0].mxu0
      %v1122 = vadd.f32 0.0, %v1121
      %v1123 = vpop.f32.mrb[0].mxu0
      %1124 = vmatprep.mubr.bf16.mxu0 0
      %1125 = vmatmul.mubr.bf16.gmra.mrb[0].mxu0 %v1055
      %v1126 = vpop.f32.mrb[0].mxu0
      %v1127 = vadd.f32 0.0, %v1126
      %v1128 = vpop.f32.mrb[0].mxu0
      %v1129 = vpop.f32.mrb[0].mxu0
      %v1130 = vadd.f32 0.0, %v1129
      %v1131 = vpop.f32.mrb[0].mxu0
      %1132 = vdwg.mxu0
      %v1133 = vadd.f32 %v980, %v1095
      %v1134 = vadd.f32 %v981, %v1098
      %v1135 = vadd.f32 %v982, %v1103
      %v1136 = vadd.f32 %v983, %v1106
      %v1137 = vadd.f32 %v984, %v1111
      %v1138 = vadd.f32 %v985, %v1114
      %v1139 = vadd.f32 %v986, %v1119
      %v1140 = vadd.f32 %v987, %v1122
      %v1141 = vadd.f32 %v988, %v1127
      %v1142 = vadd.f32 %v989, %v1130
      %v1143 = vld [vmem:[%s165 + $0x30] sm:$0x7]
      %s1144 = scalar_lea.vmem %s1, 28
      %v1145 = vld [vmem:[%s1144] sm:$0xf]
      %v1147 = vunpack.c.l.b16 %v1143
      %v1148 = vpack.c.b16 %v1147, %v1147
      %vm1149 = vsmask.f32 5376
      %v1151 = vshrl.u32 %v1025, 16
      %v1153 = vrot.slane %v1151, 2
      %v1154 = vshll.u32 %v1025, 16
      %v1156 = vrot.slane %v1154, 3
      %v1157 = vor.u32 %v1153, %v1156
      %v1159 = vshrl.u32 %v1026, 16
      %v1161 = vrot.slane %v1159, 2
      %v1162 = vshll.u32 %v1026, 16
      %v1164 = vrot.slane %v1162, 3
      %v1165 = vor.u32 %v1161, %v1164
      %v1166 = vsel %vm1149, %v1157, %v1165
      %v1168 = vshrl.u32 %v1027, 16
      %v1170 = vrot.slane %v1168, 2
      %v1171 = vshll.u32 %v1027, 16
      %v1173 = vrot.slane %v1171, 3
      %v1174 = vor.u32 %v1170, %v1173
      %v1175 = vsel %vm1149, %v1165, %v1174
      %v1177 = vshrl.u32 %v1028, 16
      %v1179 = vrot.slane %v1177, 2
      %v1180 = vshll.u32 %v1028, 16
      %v1182 = vrot.slane %v1180, 3
      %v1183 = vor.u32 %v1179, %v1182
      %v1184 = vsel %vm1149, %v1174, %v1183
      %v1186 = vshrl.u32 %v1029, 16
      %v1188 = vrot.slane %v1186, 2
      %v1189 = vshll.u32 %v1029, 16
      %v1191 = vrot.slane %v1189, 3
      %v1192 = vor.u32 %v1188, %v1191
      %v1193 = vsel %vm1149, %v1183, %v1192
      %v1195 = vshrl.u32 %v1148, 16
      %v1197 = vrot.slane %v1195, 2
      %v1198 = vshll.u32 %v1148, 16
      %v1200 = vrot.slane %v1198, 3
      %v1201 = vor.u32 %v1197, %v1200
      %v1202 = vsel %vm1149, %v1192, %v1201
      %v1204 = vsel %vm259, %v1166, 0
      %v1207 = vsel %vm259, %v1175, 0
      %v1210 = vsel %vm259, %v1184, 0
      %v1213 = vsel %vm259, %v1193, 0
      %v1216 = vsel %vm259, %v1202, 0
      %v1219 = vsel %vm275, %v1145, 0
      %1221 = vmatprep.subr.bf16.mxu0 0
      %1222 = vmatpush1.bf16.msra.mxu0 %v1219
      %1223 = vmatprep.subr.bf16.mxu0 0
      %1224 = vmatpush1.bf16.msra.mxu0 0
      %1225 = vmatprep.subr.bf16.mxu0 0
      %1226 = vmatpush1.bf16.msra.mxu0 0
      %1227 = vmatprep.subr.bf16.mxu0 0
      %1228 = vmatpush1.bf16.msra.mxu0 0
      %1229 = vmatprep.subr.bf16.mxu0 0
      %1230 = vmatpush1.bf16.msra.mxu0 0
      %1231 = vmatprep.subr.bf16.mxu0 0
      %1232 = vmatpush1.bf16.msra.mxu0 0
      %1233 = vmatprep.subr.bf16.mxu0 0
      %1234 = vmatpush1.bf16.msra.mxu0 0
      %1235 = vmatprep.subr.bf16.mxu0 0
      %1236 = vmatpush1.bf16.msra.mxu0 0
      %1237 = vmatprep.subr.bf16.mxu0 0
      %1238 = vmatpush1.bf16.msra.mxu0 0
      %1239 = vmatprep.subr.bf16.mxu0 0
      %1240 = vmatpush1.bf16.msra.mxu0 0
      %1241 = vmatprep.subr.bf16.mxu0 0
      %1242 = vmatpush1.bf16.msra.mxu0 0
      %1243 = vmatprep.subr.bf16.mxu0 0
      %1244 = vmatpush1.bf16.msra.mxu0 0
      %1245 = vmatprep.subr.bf16.mxu0 0
      %1246 = vmatpush1.bf16.msra.mxu0 0
      %1247 = vmatprep.subr.bf16.mxu0 0
      %1248 = vmatpush1.bf16.msra.mxu0 0
      %1249 = vmatprep.subr.bf16.mxu0 0
      %1250 = vmatpush1.bf16.msra.mxu0 0
      %1251 = vmatprep.subr.bf16.mxu0 0
      %1252 = vmatpush1.bf16.msra.mxu0 0
      %1253 = vmatprep.mubr.bf16.mxu0 0
      %1254 = vmatmul.mubr.bf16.gmra.mrb[0].mxu0 %v1204
      %v1255 = vpop.f32.mrb[0].mxu0
      %v1256 = vadd.f32 0.0, %v1255
      %v1257 = vpop.f32.mrb[0].mxu0
      %v1258 = vpop.f32.mrb[0].mxu0
      %v1259 = vadd.f32 0.0, %v1258
      %v1260 = vpop.f32.mrb[0].mxu0
      %1261 = vmatprep.mubr.bf16.mxu0 0
      %1262 = vmatmul.mubr.bf16.gmra.mrb[0].mxu0 %v1207
      %v1263 = vpop.f32.mrb[0].mxu0
      %v1264 = vadd.f32 0.0, %v1263
      %v1265 = vpop.f32.mrb[0].mxu0
      %v1266 = vpop.f32.mrb[0].mxu0
      %v1267 = vadd.f32 0.0, %v1266
      %v1268 = vpop.f32.mrb[0].mxu0
      %1269 = vmatprep.mubr.bf16.mxu0 0
      %1270 = vmatmul.mubr.bf16.gmra.mrb[0].mxu0 %v1210
      %v1271 = vpop.f32.mrb[0].mxu0
      %v1272 = vadd.f32 0.0, %v1271
      %v1273 = vpop.f32.mrb[0].mxu0
      %v1274 = vpop.f32.mrb[0].mxu0
      %v1275 = vadd.f32 0.0, %v1274
      %v1276 = vpop.f32.mrb[0].mxu0
      %1277 = vmatprep.mubr.bf16.mxu0 0
      %1278 = vmatmul.mubr.bf16.gmra.mrb[0].mxu0 %v1213
      %v1279 = vpop.f32.mrb[0].mxu0
      %v1280 = vadd.f32 0.0, %v1279
      %v1281 = vpop.f32.mrb[0].mxu0
      %v1282 = vpop.f32.mrb[0].mxu0
      %v1283 = vadd.f32 0.0, %v1282
      %v1284 = vpop.f32.mrb[0].mxu0
      %1285 = vmatprep.mubr.bf16.mxu0 0
      %1286 = vmatmul.mubr.bf16.gmra.mrb[0].mxu0 %v1216
      %v1287 = vpop.f32.mrb[0].mxu0
      %v1288 = vadd.f32 0.0, %v1287
      %v1289 = vpop.f32.mrb[0].mxu0
      %v1290 = vpop.f32.mrb[0].mxu0
      %v1291 = vadd.f32 0.0, %v1290
      %v1292 = vpop.f32.mrb[0].mxu0
      %1293 = vdwg.mxu0
      %v1294 = vadd.f32 %v1133, %v1256
      %v1295 = vadd.f32 %v1134, %v1259
      %v1296 = vadd.f32 %v1135, %v1264
      %v1297 = vadd.f32 %v1136, %v1267
      %v1298 = vadd.f32 %v1137, %v1272
      %v1299 = vadd.f32 %v1138, %v1275
      %v1300 = vadd.f32 %v1139, %v1280
      %v1301 = vadd.f32 %v1140, %v1283
      %v1302 = vadd.f32 %v1141, %v1288
      %v1303 = vadd.f32 %v1142, %v1291
      %v1304 = vld [vmem:[%s165 + $0x8] sm:$0x8]
      %s1305 = scalar_lea.vmem %s1, 32
      %v1306 = vld [vmem:[%s1305] sm:$0xf]
      %v1308 = vunpack.c.l.b16 %v1304
      %v1309 = vpack.c.b16 %v1015, %v1308
      %vm1310 = vcmask 1044480
      %v1311 = vrot.slane %v1309, 3
      %v1312 = vrot.slane %v1026, 3
      %v1313 = vsel %vm1310, %v1311, %v1312
      %v1314 = vrot.slane %v1027, 3
      %v1315 = vsel %vm1310, %v1312, %v1314
      %v1316 = vrot.slane %v1028, 3
      %v1317 = vsel %vm1310, %v1314, %v1316
      %v1318 = vrot.slane %v1029, 3
      %v1319 = vsel %vm1310, %v1316, %v1318
      %v1320 = vrot.slane %v1148, 3
      %v1321 = vsel %vm1310, %v1318, %v1320
      %v1323 = vsel %vm259, %v1313, 0
      %v1326 = vsel %vm259, %v1315, 0
      %v1329 = vsel %vm259, %v1317, 0
      %v1332 = vsel %vm259, %v1319, 0
      %v1335 = vsel %vm259, %v1321, 0
      %v1338 = vsel %vm275, %v1306, 0
      %1340 = vmatprep.subr.bf16.mxu0 0
      %1341 = vmatpush1.bf16.msra.mxu0 %v1338
      %1342 = vmatprep.subr.bf16.mxu0 0
      %1343 = vmatpush1.bf16.msra.mxu0 0
      %1344 = vmatprep.subr.bf16.mxu0 0
      %1345 = vmatpush1.bf16.msra.mxu0 0
      %1346 = vmatprep.subr.bf16.mxu0 0
      %1347 = vmatpush1.bf16.msra.mxu0 0
      %1348 = vmatprep.subr.bf16.mxu0 0
      %1349 = vmatpush1.bf16.msra.mxu0 0
      %1350 = vmatprep.subr.bf16.mxu0 0
      %1351 = vmatpush1.bf16.msra.mxu0 0
      %1352 = vmatprep.subr.bf16.mxu0 0
      %1353 = vmatpush1.bf16.msra.mxu0 0
      %1354 = vmatprep.subr.bf16.mxu0 0
      %1355 = vmatpush1.bf16.msra.mxu0 0
      %1356 = vmatprep.subr.bf16.mxu0 0
      %1357 = vmatpush1.bf16.msra.mxu0 0
      %1358 = vmatprep.subr.bf16.mxu0 0
      %1359 = vmatpush1.bf16.msra.mxu0 0
      %1360 = vmatprep.subr.bf16.mxu0 0
      %1361 = vmatpush1.bf16.msra.mxu0 0
      %1362 = vmatprep.subr.bf16.mxu0 0
      %1363 = vmatpush1.bf16.msra.mxu0 0
      %1364 = vmatprep.subr.bf16.mxu0 0
      %1365 = vmatpush1.bf16.msra.mxu0 0
      %1366 = vmatprep.subr.bf16.mxu0 0
      %1367 = vmatpush1.bf16.msra.mxu0 0
      %1368 = vmatprep.subr.bf16.mxu0 0
      %1369 = vmatpush1.bf16.msra.mxu0 0
      %1370 = vmatprep.subr.bf16.mxu0 0
      %1371 = vmatpush1.bf16.msra.mxu0 0
      %1372 = vmatprep.mubr.bf16.mxu0 0
      %1373 = vmatmul.mubr.bf16.gmra.mrb[0].mxu0 %v1323
      %v1374 = vpop.f32.mrb[0].mxu0
      %v1375 = vadd.f32 0.0, %v1374
      %v1376 = vpop.f32.mrb[0].mxu0
      %v1377 = vpop.f32.mrb[0].mxu0
      %v1378 = vadd.f32 0.0, %v1377
      %v1379 = vpop.f32.mrb[0].mxu0
      %1380 = vmatprep.mubr.bf16.mxu0 0
      %1381 = vmatmul.mubr.bf16.gmra.mrb[0].mxu0 %v1326
      %v1382 = vpop.f32.mrb[0].mxu0
      %v1383 = vadd.f32 0.0, %v1382
      %v1384 = vpop.f32.mrb[0].mxu0
      %v1385 = vpop.f32.mrb[0].mxu0
      %v1386 = vadd.f32 0.0, %v1385
      %v1387 = vpop.f32.mrb[0].mxu0
      %1388 = vmatprep.mubr.bf16.mxu0 0
      %1389 = vmatmul.mubr.bf16.gmra.mrb[0].mxu0 %v1329
      %v1390 = vpop.f32.mrb[0].mxu0
      %v1391 = vadd.f32 0.0, %v1390
      %v1392 = vpop.f32.mrb[0].mxu0
      %v1393 = vpop.f32.mrb[0].mxu0
      %v1394 = vadd.f32 0.0, %v1393
      %v1395 = vpop.f32.mrb[0].mxu0
      %1396 = vmatprep.mubr.bf16.mxu0 0
      %1397 = vmatmul.mubr.bf16.gmra.mrb[0].mxu0 %v1332
      %v1398 = vpop.f32.mrb[0].mxu0
      %v1399 = vadd.f32 0.0, %v1398
      %v1400 = vpop.f32.mrb[0].mxu0
      %v1401 = vpop.f32.mrb[0].mxu0
      %v1402 = vadd.f32 0.0, %v1401
      %v1403 = vpop.f32.mrb[0].mxu0
      %1404 = vmatprep.mubr.bf16.mxu0 0
      %1405 = vmatmul.mubr.bf16.gmra.mrb[0].mxu0 %v1335
      %v1406 = vpop.f32.mrb[0].mxu0
      %v1407 = vadd.f32 0.0, %v1406
      %v1408 = vpop.f32.mrb[0].mxu0
      %v1409 = vpop.f32.mrb[0].mxu0
      %v1410 = vadd.f32 0.0, %v1409
      %v1411 = vpop.f32.mrb[0].mxu0
      %1412 = vdwg.mxu0
      %v1413 = vadd.f32 %v1294, %v1375
      %v1414 = vadd.f32 %v1295, %v1378
      %v1415 = vadd.f32 %v1296, %v1383
      %v1416 = vadd.f32 %v1297, %v1386
      %v1417 = vadd.f32 %v1298, %v1391
      %v1418 = vadd.f32 %v1299, %v1394
      %v1419 = vadd.f32 %v1300, %v1399
      %v1420 = vadd.f32 %v1301, %v1402
      %v1421 = vadd.f32 %v1302, %v1407
      %v1422 = vadd.f32 %v1303, %v1410
      %v1423 = vld [vmem:[%s2] sm:$0x1]
      %v1425 = vlaneseq
      %v1426 = vshrl.u32 %v1425, 7
      %v1427 = vsub.s32 0, %v1426
      %v1428 = vrot.slane %v1423, %v1427
      %v1430 = vadd.f32 %v1413, %v1428
      %v1431 = vadd.f32 %v1414, %v1428
      %v1432 = vadd.f32 %v1415, %v1428
      %v1433 = vadd.f32 %v1416, %v1428
      %v1434 = vadd.f32 %v1417, %v1428
      %v1435 = vadd.f32 %v1418, %v1428
      %v1436 = vadd.f32 %v1419, %v1428
      %v1437 = vadd.f32 %v1420, %v1428
      %v1438 = vadd.f32 %v1421, %v1428
      %v1439 = vadd.f32 %v1422, %v1428
      %v1440 = vmax.f32 %v1430, 0.0
      %v1441 = vmax.f32 %v1431, 0.0
      %v1442 = vmax.f32 %v1432, 0.0
      %v1443 = vmax.f32 %v1433, 0.0
      %v1444 = vmax.f32 %v1434, 0.0
      %v1445 = vmax.f32 %v1435, 0.0
      %v1446 = vmax.f32 %v1436, 0.0
      %v1447 = vmax.f32 %v1437, 0.0
      %v1448 = vmax.f32 %v1438, 0.0
      %v1449 = vmax.f32 %v1439, 0.0
      %vm1450 = vcmask 130048
      %1451 = vst.msk [vmem:[%s170] sm:$0xff] %vm1450, %v1440
      %1452 = vst.msk [vmem:[%s170 + $0x8] sm:$0xff] %vm1450, %v1441
      %1453 = vst.msk [vmem:[%s170 + $0x10] sm:$0xff] %vm1450, %v1442
      %1454 = vst.msk [vmem:[%s170 + $0x18] sm:$0xff] %vm1450, %v1443
      %1455 = vst.msk [vmem:[%s170 + $0x20] sm:$0xff] %vm1450, %v1444
      %1456 = vst.msk [vmem:[%s170 + $0x28] sm:$0xff] %vm1450, %v1445
      %1457 = vst.msk [vmem:[%s170 + $0x30] sm:$0xff] %vm1450, %v1446
      %1458 = vst.msk [vmem:[%s170 + $0x38] sm:$0xff] %vm1450, %v1447
      %1459 = vst.msk [vmem:[%s170 + $0x40] sm:$0xff] %vm1450, %v1448
      %1460 = vst.msk [vmem:[%s170 + $0x48] sm:$0xff] %vm1450, %v1449
      %p1461 = scmp.lt.s32.totalorder %s14, 1
      %s1462 = scalar_select %p1461, %s14, 1
      %s1463 = smul.addr %s1462, 10
      %s1464 = smul.addr %s1463, 8
      %s1465 = scalar_lea.vmem %s3, %s1464
      // Predicated region
      $region33: #{conv_down_forward.4} parent=31 // pred_check
        %p1466 = pneg %p100
      $region34: #{conv_down_forward.4} parent=31 // pred_check_branch
        %1468 = sbr.rel (%p1466) target = $region36
      $region35: #{conv_down_forward.4} parent=31 // pred_region
        _
      $region36: #{conv_down_forward.4} parent=31 // pred_fallthru
        _
    $region32: #{conv_down_forward.4} parent=5 // pred_fallthru
      _
    %p1469 = scmp.le.s32.totalorder 2, %s9
    // Predicated region
    $region37: #{conv_down_forward.4} parent=5 // pred_check
      %p1470 = pneg %p1469
    $region38: #{conv_down_forward.4} parent=5 // pred_check_branch
      %1472 = sbr.rel (%p1470) target = $region40
    $region39: #{conv_down_forward.4} parent=5 // pred_region
      %s1473 = ssub.s32 %s9, 2
      // Predicated region
      $region41: #{conv_down_forward.4} parent=39 // pred_check
        %p1474 = pneg %p106
      $region42: #{conv_down_forward.4} parent=39 // pred_check_branch
        %1476 = sbr.rel (%p1474) target = $region44
      $region43: #{conv_down_forward.4} parent=39 // pred_region
        %p1477 = scmp.lt.s32.totalorder %s15, 1
        %s1478 = scalar_select %p1477, %s15, 1
        %s1479 = smul.addr %s1478, 10
        %s1480 = smul.addr %s1479, 8
        %s1481 = scalar_lea.vmem %s3, %s1480
      $region44: #{conv_down_forward.4} parent=39 // pred_fallthru
        _
    $region40: #{conv_down_forward.4} parent=5 // pred_fallthru
      _
  $region6: #{conv_down_forward.4} parent=0 // loop_footer
    %s13 = sadd.s32 1, %s9
  $region7: #{conv_down_forward.4} parent=0 // loop_footer_branch
    %8 = sbr.rel target = $region3
  $region8: #{conv_down_forward.4} parent=0 // loop_exit
    _

// kernel: conv_down_forward.5
$region0: #{conv_down_forward.5}
  #allocation0 [shape = 'u32[]', space=smem, size = 0x4, offset = 0x4, fixed_abs, tag = 'smem constant byte address 0x4 - core index']
  #allocation1 [shape = 'u32[144,128]{1,0:T(1,128)}', space=vmem, size = 0x12000, scoped, tag = 'internal scratch']
  %s0 = inlined_call_operand.vmem [shape: bf16[2,110,16], index: 0, kind: input, shape index: {}]
  %s1 = inlined_call_operand.vmem [shape: bf16[9,16,16], index: 1, kind: input, shape index: {}]
  %s2 = inlined_call_operand.vmem [shape: f32[1,16], index: 2, kind: input, shape index: {}]
  %s3 = inlined_call_operand.vmem [shape: f32[2,80,16], index: 3, kind: output, shape index: {}]
  %s4 = sld [smem:[#allocation0]]
  $region45: #{conv_down_forward.5} parent=0
    _
  %s6 = ssub.s32 1, %s4
  %s7 = scalar_select 0, %s6, %s4
  loop: start=0, step=1, limit=4
  $region2: #{conv_down_forward.5} parent=0 // loop_pre_header
    _
  $region3: #{conv_down_forward.5} parent=0 // loop_header
    %s9 = sphi 0, %s13
    %p10 = scmp.ge.s32.totalorder %s9, 4
    %s19 = sphi 0, %s21
    %s22 = sphi 0, %s19
    %s23 = sphi 0, %s22
    %s39 = sphi 0, %s23
    %s43 = sphi 0, %s43
    %s45 = sphi 0, %s43
    %s46 = sphi 0, %s45
    %s60 = sphi 0, %s46
    %s64 = sphi 0, %s64
    %s66 = sphi 0, %s64
    %s67 = sphi 0, %s66
    %s81 = sphi 0, %s67
    %s87 = sphi 0, %s89
    %s90 = sphi 0, %s87
    %s91 = sphi 0, %s90
    %s107 = sphi 0, %s91
  $region4: #{conv_down_forward.5} parent=0 // loop_header_branch
    %12 = sbr.rel (%p10) target = $region8
  $region5: #{conv_down_forward.5} parent=0 // loop_body
    %s14 = ssub.s32 %s9, 1
    %s15 = ssub.s32 %s9, 2
    %s16 = sadd.s32 %s9, 1
    %s17 = ssub.s32 %s9, %s16
    %p18 = scmp.eq.s32.totalorder %s17, 0
    %s20 = sadd.s32 %s19, 1
    %s21 = scalar_select %p18, %s19, %s20
    %p24 = pneg %p18
    %p25 = scmp.eq.s32.totalorder %s9, 1
    %p26 = por %p24, %p25
    %p27 = scmp.ne.s32.totalorder %s19, %s22
    %p28 = scmp.eq.s32.totalorder %s9, 0
    %p29 = por %p27, %p28
    %p30 = scmp.ne.s32.totalorder %s19, %s22
    %p31 = scmp.eq.s32.totalorder %s14, 1
    %p32 = por %p30, %p31
    %p33 = scmp.ne.s32.totalorder %s22, %s23
    %p34 = scmp.eq.s32.totalorder %s14, 0
    %p35 = por %p33, %p34
    %p36 = scmp.ne.s32.totalorder %s22, %s23
    %p37 = scmp.eq.s32.totalorder %s15, 1
    %p38 = por %p36, %p37
    %p40 = scmp.ne.s32.totalorder %s23, %s39
    %p41 = scmp.eq.s32.totalorder %s15, 0
    %p42 = por %p40, %p41
    %s44 = sadd.s32 %s43, 1
    %p47 = scmp.eq.s32.totalorder %s9, 1
    %p48 = scmp.ne.s32.totalorder %s43, %s45
    %p49 = scmp.eq.s32.totalorder %s9, 0
    %p50 = por %p48, %p49
    %p51 = scmp.ne.s32.totalorder %s43, %s45
    %p52 = scmp.eq.s32.totalorder %s14, 1
    %p53 = por %p51, %p52
    %p54 = scmp.ne.s32.totalorder %s45, %s46
    %p55 = scmp.eq.s32.totalorder %s14, 0
    %p56 = por %p54, %p55
    %p57 = scmp.ne.s32.totalorder %s45, %s46
    %p58 = scmp.eq.s32.totalorder %s15, 1
    %p59 = por %p57, %p58
    %p61 = scmp.ne.s32.totalorder %s46, %s60
    %p62 = scmp.eq.s32.totalorder %s15, 0
    %p63 = por %p61, %p62
    %s65 = sadd.s32 %s64, 1
    %p68 = scmp.eq.s32.totalorder %s9, 1
    %p69 = scmp.ne.s32.totalorder %s64, %s66
    %p70 = scmp.eq.s32.totalorder %s9, 0
    %p71 = por %p69, %p70
    %p72 = scmp.ne.s32.totalorder %s64, %s66
    %p73 = scmp.eq.s32.totalorder %s14, 1
    %p74 = por %p72, %p73
    %p75 = scmp.ne.s32.totalorder %s66, %s67
    %p76 = scmp.eq.s32.totalorder %s14, 0
    %p77 = por %p75, %p76
    %p78 = scmp.ne.s32.totalorder %s66, %s67
    %p79 = scmp.eq.s32.totalorder %s15, 1
    %p80 = por %p78, %p79
    %p82 = scmp.ne.s32.totalorder %s67, %s81
    %p83 = scmp.eq.s32.totalorder %s15, 0
    %p84 = por %p82, %p83
    %s85 = ssub.s32 %s9, %s16
    %p86 = scmp.eq.s32.totalorder %s85, 0
    %s88 = sadd.s32 %s87, 1
    %s89 = scalar_select %p86, %s87, %s88
    %p92 = pneg %p86
    %p93 = scmp.eq.s32.totalorder %s9, 1
    %p94 = por %p92, %p93
    %p95 = scmp.ne.s32.totalorder %s87, %s90
    %p96 = scmp.eq.s32.totalorder %s9, 0
    %p97 = por %p95, %p96
    %p98 = scmp.ne.s32.totalorder %s87, %s90
    %p99 = scmp.eq.s32.totalorder %s14, 1
    %p100 = por %p98, %p99
    %p101 = scmp.ne.s32.totalorder %s90, %s91
    %p102 = scmp.eq.s32.totalorder %s14, 0
    %p103 = por %p101, %p102
    %p104 = scmp.ne.s32.totalorder %s90, %s91
    %p105 = scmp.eq.s32.totalorder %s15, 1
    %p106 = por %p104, %p105
    %p108 = scmp.ne.s32.totalorder %s91, %s107
    %p109 = scmp.eq.s32.totalorder %s15, 0
    %p110 = por %p108, %p109
    %p111 = scmp.le.s32.totalorder 1, %s9
    %p112 = scmp.lt.s32.totalorder %s9, 3
    %p113 = pnand %p111, %p112
    %p114 = pneg %p113
    // Predicated region
    $region9: #{conv_down_forward.5} parent=5 // pred_check
      _
    $region10: #{conv_down_forward.5} parent=5 // pred_check_branch
      %116 = sbr.rel (%p113) target = $region12
    $region11: #{conv_down_forward.5} parent=5 // pred_region
      %s117 = ssub.s32 %s9, 1
      // Predicated region
      $region13: #{conv_down_forward.5} parent=11 // pred_check
        %p118 = pneg %p56
      $region14: #{conv_down_forward.5} parent=11 // pred_check_branch
        %120 = sbr.rel (%p118) target = $region16
      $region15: #{conv_down_forward.5} parent=11 // pred_region
        _
      $region16: #{conv_down_forward.5} parent=11 // pred_fallthru
        _
      // Predicated region
      $region17: #{conv_down_forward.5} parent=11 // pred_check
        %p121 = pneg %p77
      $region18: #{conv_down_forward.5} parent=11 // pred_check_branch
        %123 = sbr.rel (%p121) target = $region20
      $region19: #{conv_down_forward.5} parent=11 // pred_region
        _
      $region20: #{conv_down_forward.5} parent=11 // pred_fallthru
        _
    $region12: #{conv_down_forward.5} parent=5 // pred_fallthru
      _
    %p124 = scmp.lt.s32.totalorder %s9, 2
    // Predicated region
    $region21: #{conv_down_forward.5} parent=5 // pred_check
      %p125 = pneg %p124
    $region22: #{conv_down_forward.5} parent=5 // pred_check_branch
      %127 = sbr.rel (%p125) target = $region24
    $region23: #{conv_down_forward.5} parent=5 // pred_region
      // Predicated region
      $region25: #{conv_down_forward.5} parent=23 // pred_check
        %p128 = pneg %p29
      $region26: #{conv_down_forward.5} parent=23 // pred_check_branch
        %130 = sbr.rel (%p128) target = $region28
      $region27: #{conv_down_forward.5} parent=23 // pred_region
        %p131 = scmp.lt.s32.totalorder %s9, 1
        %s132 = scalar_select %p131, %s9, 1
        %s133 = smul.addr %s132, 14
        %s134 = smul.addr %s133, 4
        %s135 = scalar_lea.vmem %s0, %s134
      $region28: #{conv_down_forward.5} parent=23 // pred_fallthru
        _
    $region24: #{conv_down_forward.5} parent=5 // pred_fallthru
      _
    %p136 = scmp.le.s32.totalorder 1, %s9
    %p137 = scmp.lt.s32.totalorder %s9, 3
    %p138 = pnand %p136, %p137
    %p139 = pneg %p138
    // Predicated region
    $region29: #{conv_down_forward.5} parent=5 // pred_check
      _
    $region30: #{conv_down_forward.5} parent=5 // pred_check_branch
      %141 = sbr.rel (%p138) target = $region32
    $region31: #{conv_down_forward.5} parent=5 // pred_region
      %s142 = ssub.s32 %s9, 1
      %p143 = scmp.lt.s32.totalorder %s14, 1
      %s144 = scalar_select %p143, %s14, 1
      %s145 = smul.addr %s144, 14
      %s146 = smul.addr %s145, 4
      %s147 = scalar_lea.vmem %s0, %s146
      %p148 = pneg %p35
      %p149 = pneg %p32
      %p150 = pneg %p56
      %p151 = pneg %p53
      %p152 = pneg %p77
      %p153 = pneg %p74
      %p154 = pneg %p103
      %p155 = pneg %p100
      %p156 = scmp.lt.s32.totalorder %s14, 1
      %s157 = scalar_select %p156, %s14, 1
      %s158 = smul.addr %s157, 10
      %s159 = smul.addr %s158, 8
      %s160 = scalar_lea.vmem %s3, %s159
      %p161 = scmp.lt.s32.totalorder %s14, 1
      %s162 = scalar_select %p161, %s14, 1
      %s163 = smul.addr %s162, 14
      %s164 = smul.addr %s163, 4
      %s165 = scalar_lea.vmem %s0, %s164
      %p166 = scmp.lt.s32.totalorder %s14, 1
      %s167 = scalar_select %p166, %s14, 1
      %s168 = smul.addr %s167, 10
      %s169 = smul.addr %s168, 8
      %s170 = scalar_lea.vmem %s3, %s169
      %v172 = vld [vmem:[%s165] sm:$0xf]
      %v173 = vld [vmem:[%s165 + $0x4] sm:$0xf]
      %v174 = vld [vmem:[%s165 + $0x8] sm:$0xf]
      %v175 = vld [vmem:[%s165 + $0xc] sm:$0xf]
      %v176 = vld [vmem:[%s165 + $0x10] sm:$0xf]
      %v177 = vld [vmem:[%s165 + $0x14] sm:$0xf]
      %v178 = vld [vmem:[%s165 + $0x18] sm:$0xf]
      %v179 = vld [vmem:[%s165 + $0x1c] sm:$0xf]
      %v180 = vld [vmem:[%s165 + $0x20] sm:$0xf]
      %v181 = vld [vmem:[%s165 + $0x24] sm:$0xf]
      %v182 = vld [vmem:[%s1] sm:$0xf]
      %v183 = vld [vmem:[%s1 + $0x4] sm:$0xf]
      %v184 = vld [vmem:[%s165 + $0x28] sm:$0x1]
      %s185 = scalar_lea.vmem %s1, 8
      %v186 = vld [vmem:[%s185] sm:$0xf]
      %v187 = vld [vmem:[%s185 + $0x4] sm:$0xf]
      %v199 = vunpack.c.l.b16 %v172
      %v200 = vunpack.c.l.b16 %v173
      %v201 = vunpack.c.l.b16 %v174
      %v202 = vunpack.c.l.b16 %v175
      %v203 = vunpack.c.l.b16 %v176
      %v204 = vunpack.c.l.b16 %v177
      %v205 = vunpack.c.l.b16 %v178
      %v206 = vunpack.c.l.b16 %v179
      %v207 = vunpack.c.l.b16 %v180
      %v208 = vunpack.c.l.b16 %v181
      %v209 = vunpack.c.l.b16 %v184
      %v210 = vpack.c.b16 %v200, %v199
      %v211 = vpack.c.b16 %v202, %v201
      %v212 = vpack.c.b16 %v204, %v203
      %v213 = vpack.c.b16 %v206, %v205
      %v214 = vpack.c.b16 %v208, %v207
      %v215 = vpack.c.b16 %v209, %v209
      %vm216 = vsmask.f32 7424
      %v218 = vshrl.u32 %v210, 16
      %v220 = vshll.u32 %v210, 16
      %v222 = vrot.slane %v220, 1
      %v223 = vor.u32 %v218, %v222
      %v225 = vshll.u32 %v211, 16
      %v227 = vrot.slane %v225, 1
      %v228 = vsel %vm216, %v223, %v227
      %v229 = vshrl.u32 %v211, 16
      %v231 = vor.u32 %v229, %v227
      %v233 = vshll.u32 %v212, 16
      %v235 = vrot.slane %v233, 1
      %v236 = vsel %vm216, %v231, %v235
      %v237 = vshrl.u32 %v212, 16
      %v239 = vor.u32 %v237, %v235
      %v241 = vshll.u32 %v213, 16
      %v243 = vrot.slane %v241, 1
      %v244 = vsel %vm216, %v239, %v243
      %v245 = vshrl.u32 %v213, 16
      %v247 = vor.u32 %v245, %v243
      %v249 = vshll.u32 %v214, 16
      %v251 = vrot.slane %v249, 1
      %v252 = vsel %vm216, %v247, %v251
      %v253 = vshrl.u32 %v214, 16
      %v255 = vor.u32 %v253, %v251
      %v257 = vshll.u32 %v215, 16
      %v259 = vrot.slane %v257, 1
      %v260 = vsel %vm216, %v255, %v259
      %v263 = vunpack.c.l.b16 %v186
      %v264 = vunpack.c.l.b16 %v187
      %v265 = vpack.c.b16 %v264, %v263
      %vm267 = vcmask 130048
      %v269 = vsel %vm267, %v228, 0
      %v272 = vsel %vm267, %v236, 0
      %v275 = vsel %vm267, %v244, 0
      %v278 = vsel %vm267, %v252, 0
      %v281 = vsel %vm267, %v260, 0
      %283 = vmatprep.subr.bf16.mxu0 0
      %284 = vmatpush1.bf16.msra.mxu0 %v265
      %285 = vmatprep.subr.bf16.mxu0 0
      %286 = vmatpush1.bf16.msra.mxu0 0
      %287 = vmatprep.subr.bf16.mxu0 0
      %288 = vmatpush1.bf16.msra.mxu0 0
      %289 = vmatprep.subr.bf16.mxu0 0
      %290 = vmatpush1.bf16.msra.mxu0 0
      %291 = vmatprep.subr.bf16.mxu0 0
      %292 = vmatpush1.bf16.msra.mxu0 0
      %293 = vmatprep.subr.bf16.mxu0 0
      %294 = vmatpush1.bf16.msra.mxu0 0
      %295 = vmatprep.subr.bf16.mxu0 0
      %296 = vmatpush1.bf16.msra.mxu0 0
      %297 = vmatprep.subr.bf16.mxu0 0
      %298 = vmatpush1.bf16.msra.mxu0 0
      %299 = vmatprep.subr.bf16.mxu0 0
      %300 = vmatpush1.bf16.msra.mxu0 0
      %301 = vmatprep.subr.bf16.mxu0 0
      %302 = vmatpush1.bf16.msra.mxu0 0
      %303 = vmatprep.subr.bf16.mxu0 0
      %304 = vmatpush1.bf16.msra.mxu0 0
      %305 = vmatprep.subr.bf16.mxu0 0
      %306 = vmatpush1.bf16.msra.mxu0 0
      %307 = vmatprep.subr.bf16.mxu0 0
      %308 = vmatpush1.bf16.msra.mxu0 0
      %309 = vmatprep.subr.bf16.mxu0 0
      %310 = vmatpush1.bf16.msra.mxu0 0
      %311 = vmatprep.subr.bf16.mxu0 0
      %312 = vmatpush1.bf16.msra.mxu0 0
      %313 = vmatprep.subr.bf16.mxu0 0
      %314 = vmatpush1.bf16.msra.mxu0 0
      %315 = vmatprep.mubr.bf16.mxu0 0
      %316 = vmatmul.mubr.bf16.gmra.mrb[0].mxu0 %v269
      %v317 = vpop.f32.mrb[0].mxu0
      %v318 = vadd.f32 0.0, %v317
      %v319 = vpop.f32.mrb[0].mxu0
      %v320 = vpop.f32.mrb[0].mxu0
      %v321 = vadd.f32 0.0, %v320
      %v322 = vpop.f32.mrb[0].mxu0
      %323 = vmatprep.mubr.bf16.mxu0 0
      %324 = vmatmul.mubr.bf16.gmra.mrb[0].mxu0 %v272
      %v325 = vpop.f32.mrb[0].mxu0
      %v326 = vadd.f32 0.0, %v325
      %v327 = vpop.f32.mrb[0].mxu0
      %v328 = vpop.f32.mrb[0].mxu0
      %v329 = vadd.f32 0.0, %v328
      %v330 = vpop.f32.mrb[0].mxu0
      %331 = vmatprep.mubr.bf16.mxu0 0
      %332 = vmatmul.mubr.bf16.gmra.mrb[0].mxu0 %v275
      %v333 = vpop.f32.mrb[0].mxu0
      %v334 = vadd.f32 0.0, %v333
      %v335 = vpop.f32.mrb[0].mxu0
      %v336 = vpop.f32.mrb[0].mxu0
      %v337 = vadd.f32 0.0, %v336
      %v338 = vpop.f32.mrb[0].mxu0
      %339 = vmatprep.mubr.bf16.mxu0 0
      %340 = vmatmul.mubr.bf16.gmra.mrb[0].mxu0 %v278
      %v341 = vpop.f32.mrb[0].mxu0
      %v342 = vadd.f32 0.0, %v341
      %v343 = vpop.f32.mrb[0].mxu0
      %v344 = vpop.f32.mrb[0].mxu0
      %v345 = vadd.f32 0.0, %v344
      %v346 = vpop.f32.mrb[0].mxu0
      %347 = vmatprep.mubr.bf16.mxu0 0
      %348 = vmatmul.mubr.bf16.gmra.mrb[0].mxu0 %v281
      %v349 = vpop.f32.mrb[0].mxu0
      %v350 = vadd.f32 0.0, %v349
      %v351 = vpop.f32.mrb[0].mxu0
      %v352 = vpop.f32.mrb[0].mxu0
      %v353 = vadd.f32 0.0, %v352
      %v354 = vpop.f32.mrb[0].mxu0
      %355 = vdwg.mxu0
      %v358 = vunpack.c.l.b16 %v182
      %v359 = vunpack.c.l.b16 %v183
      %v360 = vpack.c.b16 %v359, %v358
      %v362 = vsel %vm267, %v210, 0
      %v364 = vsel %vm267, %v211, 0
      %v366 = vsel %vm267, %v212, 0
      %v368 = vsel %vm267, %v213, 0
      %v370 = vsel %vm267, %v214, 0
      %372 = vmatprep.subr.bf16.mxu0 0
      %373 = vmatpush1.bf16.msra.mxu0 %v360
      %374 = vmatprep.subr.bf16.mxu0 0
      %375 = vmatpush1.bf16.msra.mxu0 0
      %376 = vmatprep.subr.bf16.mxu0 0
      %377 = vmatpush1.bf16.msra.mxu0 0
      %378 = vmatprep.subr.bf16.mxu0 0
      %379 = vmatpush1.bf16.msra.mxu0 0
      %380 = vmatprep.subr.bf16.mxu0 0
      %381 = vmatpush1.bf16.msra.mxu0 0
      %382 = vmatprep.subr.bf16.mxu0 0
      %383 = vmatpush1.bf16.msra.mxu0 0
      %384 = vmatprep.subr.bf16.mxu0 0
      %385 = vmatpush1.bf16.msra.mxu0 0
      %386 = vmatprep.subr.bf16.mxu0 0
      %387 = vmatpush1.bf16.msra.mxu0 0
      %388 = vmatprep.subr.bf16.mxu0 0
      %389 = vmatpush1.bf16.msra.mxu0 0
      %390 = vmatprep.subr.bf16.mxu0 0
      %391 = vmatpush1.bf16.msra.mxu0 0
      %392 = vmatprep.subr.bf16.mxu0 0
      %393 = vmatpush1.bf16.msra.mxu0 0
      %394 = vmatprep.subr.bf16.mxu0 0
      %395 = vmatpush1.bf16.msra.mxu0 0
      %396 = vmatprep.subr.bf16.mxu0 0
      %397 = vmatpush1.bf16.msra.mxu0 0
      %398 = vmatprep.subr.bf16.mxu0 0
      %399 = vmatpush1.bf16.msra.mxu0 0
      %400 = vmatprep.subr.bf16.mxu0 0
      %401 = vmatpush1.bf16.msra.mxu0 0
      %402 = vmatprep.subr.bf16.mxu0 0
      %403 = vmatpush1.bf16.msra.mxu0 0
      %404 = vmatprep.mubr.bf16.mxu0 0
      %405 = vmatmul.mubr.bf16.gmra.mrb[0].mxu0 %v362
      %v406 = vpop.f32.mrb[0].mxu0
      %v407 = vadd.f32 %v318, %v406
      %v408 = vpop.f32.mrb[0].mxu0
      %v409 = vpop.f32.mrb[0].mxu0
      %v410 = vadd.f32 %v321, %v409
      %v411 = vpop.f32.mrb[0].mxu0
      %412 = vmatprep.mubr.bf16.mxu0 0
      %413 = vmatmul.mubr.bf16.gmra.mrb[0].mxu0 %v364
      %v414 = vpop.f32.mrb[0].mxu0
      %v415 = vadd.f32 %v326, %v414
      %v416 = vpop.f32.mrb[0].mxu0
      %v417 = vpop.f32.mrb[0].mxu0
      %v418 = vadd.f32 %v329, %v417
      %v419 = vpop.f32.mrb[0].mxu0
      %420 = vmatprep.mubr.bf16.mxu0 0
      %421 = vmatmul.mubr.bf16.gmra.mrb[0].mxu0 %v366
      %v422 = vpop.f32.mrb[0].mxu0
      %v423 = vadd.f32 %v334, %v422
      %v424 = vpop.f32.mrb[0].mxu0
      %v425 = vpop.f32.mrb[0].mxu0
      %v426 = vadd.f32 %v337, %v425
      %v427 = vpop.f32.mrb[0].mxu0
      %428 = vmatprep.mubr.bf16.mxu0 0
      %429 = vmatmul.mubr.bf16.gmra.mrb[0].mxu0 %v368
      %v430 = vpop.f32.mrb[0].mxu0
      %v431 = vadd.f32 %v342, %v430
      %v432 = vpop.f32.mrb[0].mxu0
      %v433 = vpop.f32.mrb[0].mxu0
      %v434 = vadd.f32 %v345, %v433
      %v435 = vpop.f32.mrb[0].mxu0
      %436 = vmatprep.mubr.bf16.mxu0 0
      %437 = vmatmul.mubr.bf16.gmra.mrb[0].mxu0 %v370
      %v438 = vpop.f32.mrb[0].mxu0
      %v439 = vadd.f32 %v350, %v438
      %v440 = vpop.f32.mrb[0].mxu0
      %v441 = vpop.f32.mrb[0].mxu0
      %v442 = vadd.f32 %v353, %v441
      %v443 = vpop.f32.mrb[0].mxu0
      %444 = vdwg.mxu0
      %v445 = vld [vmem:[%s165] sm:$0xe]
      %s446 = scalar_lea.vmem %s1, 16
      %v447 = vld [vmem:[%s446] sm:$0xf]
      %v448 = vld [vmem:[%s446 + $0x4] sm:$0xf]
      %v450 = vunpack.c.l.b16 %v445
      %v451 = vpack.c.b16 %v200, %v450
      %vm452 = vcmask 1046528
      %v453 = vrot.slane %v451, 1
      %v454 = vrot.slane %v211, 1
      %v455 = vsel %vm452, %v453, %v454
      %v456 = vrot.slane %v212, 1
      %v457 = vsel %vm452, %v454, %v456
      %v458 = vrot.slane %v213, 1
      %v459 = vsel %vm452, %v456, %v458
      %v460 = vrot.slane %v214, 1
      %v461 = vsel %vm452, %v458, %v460
      %v462 = vrot.slane %v215, 1
      %v463 = vsel %vm452, %v460, %v462
      %v466 = vunpack.c.l.b16 %v447
      %v467 = vunpack.c.l.b16 %v448
      %v468 = vpack.c.b16 %v467, %v466
      %v471 = vsel %vm267, %v455, 0
      %v474 = vsel %vm267, %v457, 0
      %v477 = vsel %vm267, %v459, 0
      %v480 = vsel %vm267, %v461, 0
      %v483 = vsel %vm267, %v463, 0
      %485 = vmatprep.subr.bf16.mxu0 0
      %486 = vmatpush1.bf16.msra.mxu0 %v468
      %487 = vmatprep.subr.bf16.mxu0 0
      %488 = vmatpush1.bf16.msra.mxu0 0
      %489 = vmatprep.subr.bf16.mxu0 0
      %490 = vmatpush1.bf16.msra.mxu0 0
      %491 = vmatprep.subr.bf16.mxu0 0
      %492 = vmatpush1.bf16.msra.mxu0 0
      %493 = vmatprep.subr.bf16.mxu0 0
      %494 = vmatpush1.bf16.msra.mxu0 0
      %495 = vmatprep.subr.bf16.mxu0 0
      %496 = vmatpush1.bf16.msra.mxu0 0
      %497 = vmatprep.subr.bf16.mxu0 0
      %498 = vmatpush1.bf16.msra.mxu0 0
      %499 = vmatprep.subr.bf16.mxu0 0
      %500 = vmatpush1.bf16.msra.mxu0 0
      %501 = vmatprep.subr.bf16.mxu0 0
      %502 = vmatpush1.bf16.msra.mxu0 0
      %503 = vmatprep.subr.bf16.mxu0 0
      %504 = vmatpush1.bf16.msra.mxu0 0
      %505 = vmatprep.subr.bf16.mxu0 0
      %506 = vmatpush1.bf16.msra.mxu0 0
      %507 = vmatprep.subr.bf16.mxu0 0
      %508 = vmatpush1.bf16.msra.mxu0 0
      %509 = vmatprep.subr.bf16.mxu0 0
      %510 = vmatpush1.bf16.msra.mxu0 0
      %511 = vmatprep.subr.bf16.mxu0 0
      %512 = vmatpush1.bf16.msra.mxu0 0
      %513 = vmatprep.subr.bf16.mxu0 0
      %514 = vmatpush1.bf16.msra.mxu0 0
      %515 = vmatprep.subr.bf16.mxu0 0
      %516 = vmatpush1.bf16.msra.mxu0 0
      %517 = vmatprep.mubr.bf16.mxu0 0
      %518 = vmatmul.mubr.bf16.gmra.mrb[0].mxu0 %v471
      %v519 = vpop.f32.mrb[0].mxu0
      %v520 = vadd.f32 0.0, %v519
      %v521 = vpop.f32.mrb[0].mxu0
      %v522 = vpop.f32.mrb[0].mxu0
      %v523 = vadd.f32 0.0, %v522
      %v524 = vpop.f32.mrb[0].mxu0
      %525 = vmatprep.mubr.bf16.mxu0 0
      %526 = vmatmul.mubr.bf16.gmra.mrb[0].mxu0 %v474
      %v527 = vpop.f32.mrb[0].mxu0
      %v528 = vadd.f32 0.0, %v527
      %v529 = vpop.f32.mrb[0].mxu0
      %v530 = vpop.f32.mrb[0].mxu0
      %v531 = vadd.f32 0.0, %v530
      %v532 = vpop.f32.mrb[0].mxu0
      %533 = vmatprep.mubr.bf16.mxu0 0
      %534 = vmatmul.mubr.bf16.gmra.mrb[0].mxu0 %v477
      %v535 = vpop.f32.mrb[0].mxu0
      %v536 = vadd.f32 0.0, %v535
      %v537 = vpop.f32.mrb[0].mxu0
      %v538 = vpop.f32.mrb[0].mxu0
      %v539 = vadd.f32 0.0, %v538
      %v540 = vpop.f32.mrb[0].mxu0
      %541 = vmatprep.mubr.bf16.mxu0 0
      %542 = vmatmul.mubr.bf16.gmra.mrb[0].mxu0 %v480
      %v543 = vpop.f32.mrb[0].mxu0
      %v544 = vadd.f32 0.0, %v543
      %v545 = vpop.f32.mrb[0].mxu0
      %v546 = vpop.f32.mrb[0].mxu0
      %v547 = vadd.f32 0.0, %v546
      %v548 = vpop.f32.mrb[0].mxu0
      %549 = vmatprep.mubr.bf16.mxu0 0
      %550 = vmatmul.mubr.bf16.gmra.mrb[0].mxu0 %v483
      %v551 = vpop.f32.mrb[0].mxu0
      %v552 = vadd.f32 0.0, %v551
      %v553 = vpop.f32.mrb[0].mxu0
      %v554 = vpop.f32.mrb[0].mxu0
      %v555 = vadd.f32 0.0, %v554
      %v556 = vpop.f32.mrb[0].mxu0
      %557 = vdwg.mxu0
      %v558 = vadd.f32 %v407, %v520
      %v559 = vadd.f32 %v410, %v523
      %v560 = vadd.f32 %v415, %v528
      %v561 = vadd.f32 %v418, %v531
      %v562 = vadd.f32 %v423, %v536
      %v563 = vadd.f32 %v426, %v539
      %v564 = vadd.f32 %v431, %v544
      %v565 = vadd.f32 %v434, %v547
      %v566 = vadd.f32 %v439, %v552
      %v567 = vadd.f32 %v442, %v555
      %v568 = vld [vmem:[%s165 + $0x4] sm:$0xe]
      %v569 = vld [vmem:[%s165 + $0x8] sm:$0xf]
      %v570 = vld [vmem:[%s165 + $0xc] sm:$0xf]
      %v571 = vld [vmem:[%s165 + $0x10] sm:$0xf]
      %v572 = vld [vmem:[%s165 + $0x14] sm:$0xf]
      %v573 = vld [vmem:[%s165 + $0x18] sm:$0xf]
      %v574 = vld [vmem:[%s165 + $0x1c] sm:$0xf]
      %v575 = vld [vmem:[%s165 + $0x20] sm:$0xf]
      %v576 = vld [vmem:[%s165 + $0x24] sm:$0xf]
      %v577 = vld [vmem:[%s165 + $0x28] sm:$0xf]
      %v578 = vld [vmem:[%s165 + $0x2c] sm:$0x1]
      %s579 = scalar_lea.vmem %s1, 24
      %v580 = vld [vmem:[%s579] sm:$0xf]
      %v581 = vld [vmem:[%s579 + $0x4] sm:$0xf]
      %v593 = vunpack.c.l.b16 %v568
      %v594 = vunpack.c.l.b16 %v569
      %v595 = vunpack.c.l.b16 %v570
      %v596 = vunpack.c.l.b16 %v571
      %v597 = vunpack.c.l.b16 %v572
      %v598 = vunpack.c.l.b16 %v573
      %v599 = vunpack.c.l.b16 %v574
      %v600 = vunpack.c.l.b16 %v575
      %v601 = vunpack.c.l.b16 %v576
      %v602 = vunpack.c.l.b16 %v577
      %v603 = vunpack.c.l.b16 %v578
      %v604 = vpack.c.b16 %v594, %v593
      %v605 = vpack.c.b16 %v596, %v595
      %v606 = vpack.c.b16 %v598, %v597
      %v607 = vpack.c.b16 %v600, %v599
      %v608 = vpack.c.b16 %v602, %v601
      %v609 = vpack.c.b16 %v603, %v603
      %v610 = vrot.slane %v604, 1
      %v611 = vrot.slane %v605, 1
      %v612 = vsel %vm452, %v610, %v611
      %v613 = vrot.slane %v606, 1
      %v614 = vsel %vm452, %v611, %v613
      %v615 = vrot.slane %v607, 1
      %v616 = vsel %vm452, %v613, %v615
      %v617 = vrot.slane %v608, 1
      %v618 = vsel %vm452, %v615, %v617
      %v619 = vrot.slane %v609, 1
      %v620 = vsel %vm452, %v617, %v619
      %v623 = vunpack.c.l.b16 %v580
      %v624 = vunpack.c.l.b16 %v581
      %v625 = vpack.c.b16 %v624, %v623
      %v628 = vsel %vm267, %v612, 0
      %v631 = vsel %vm267, %v614, 0
      %v634 = vsel %vm267, %v616, 0
      %v637 = vsel %vm267, %v618, 0
      %v640 = vsel %vm267, %v620, 0
      %642 = vmatprep.subr.bf16.mxu0 0
      %643 = vmatpush1.bf16.msra.mxu0 %v625
      %644 = vmatprep.subr.bf16.mxu0 0
      %645 = vmatpush1.bf16.msra.mxu0 0
      %646 = vmatprep.subr.bf16.mxu0 0
      %647 = vmatpush1.bf16.msra.mxu0 0
      %648 = vmatprep.subr.bf16.mxu0 0
      %649 = vmatpush1.bf16.msra.mxu0 0
      %650 = vmatprep.subr.bf16.mxu0 0
      %651 = vmatpush1.bf16.msra.mxu0 0
      %652 = vmatprep.subr.bf16.mxu0 0
      %653 = vmatpush1.bf16.msra.mxu0 0
      %654 = vmatprep.subr.bf16.mxu0 0
      %655 = vmatpush1.bf16.msra.mxu0 0
      %656 = vmatprep.subr.bf16.mxu0 0
      %657 = vmatpush1.bf16.msra.mxu0 0
      %658 = vmatprep.subr.bf16.mxu0 0
      %659 = vmatpush1.bf16.msra.mxu0 0
      %660 = vmatprep.subr.bf16.mxu0 0
      %661 = vmatpush1.bf16.msra.mxu0 0
      %662 = vmatprep.subr.bf16.mxu0 0
      %663 = vmatpush1.bf16.msra.mxu0 0
      %664 = vmatprep.subr.bf16.mxu0 0
      %665 = vmatpush1.bf16.msra.mxu0 0
      %666 = vmatprep.subr.bf16.mxu0 0
      %667 = vmatpush1.bf16.msra.mxu0 0
      %668 = vmatprep.subr.bf16.mxu0 0
      %669 = vmatpush1.bf16.msra.mxu0 0
      %670 = vmatprep.subr.bf16.mxu0 0
      %671 = vmatpush1.bf16.msra.mxu0 0
      %672 = vmatprep.subr.bf16.mxu0 0
      %673 = vmatpush1.bf16.msra.mxu0 0
      %674 = vmatprep.mubr.bf16.mxu0 0
      %675 = vmatmul.mubr.bf16.gmra.mrb[0].mxu0 %v628
      %v676 = vpop.f32.mrb[0].mxu0
      %v677 = vadd.f32 0.0, %v676
      %v678 = vpop.f32.mrb[0].mxu0
      %v679 = vpop.f32.mrb[0].mxu0
      %v680 = vadd.f32 0.0, %v679
      %v681 = vpop.f32.mrb[0].mxu0
      %682 = vmatprep.mubr.bf16.mxu0 0
      %683 = vmatmul.mubr.bf16.gmra.mrb[0].mxu0 %v631
      %v684 = vpop.f32.mrb[0].mxu0
      %v685 = vadd.f32 0.0, %v684
      %v686 = vpop.f32.mrb[0].mxu0
      %v687 = vpop.f32.mrb[0].mxu0
      %v688 = vadd.f32 0.0, %v687
      %v689 = vpop.f32.mrb[0].mxu0
      %690 = vmatprep.mubr.bf16.mxu0 0
      %691 = vmatmul.mubr.bf16.gmra.mrb[0].mxu0 %v634
      %v692 = vpop.f32.mrb[0].mxu0
      %v693 = vadd.f32 0.0, %v692
      %v694 = vpop.f32.mrb[0].mxu0
      %v695 = vpop.f32.mrb[0].mxu0
      %v696 = vadd.f32 0.0, %v695
      %v697 = vpop.f32.mrb[0].mxu0
      %698 = vmatprep.mubr.bf16.mxu0 0
      %699 = vmatmul.mubr.bf16.gmra.mrb[0].mxu0 %v637
      %v700 = vpop.f32.mrb[0].mxu0
      %v701 = vadd.f32 0.0, %v700
      %v702 = vpop.f32.mrb[0].mxu0
      %v703 = vpop.f32.mrb[0].mxu0
      %v704 = vadd.f32 0.0, %v703
      %v705 = vpop.f32.mrb[0].mxu0
      %706 = vmatprep.mubr.bf16.mxu0 0
      %707 = vmatmul.mubr.bf16.gmra.mrb[0].mxu0 %v640
      %v708 = vpop.f32.mrb[0].mxu0
      %v709 = vadd.f32 0.0, %v708
      %v710 = vpop.f32.mrb[0].mxu0
      %v711 = vpop.f32.mrb[0].mxu0
      %v712 = vadd.f32 0.0, %v711
      %v713 = vpop.f32.mrb[0].mxu0
      %714 = vdwg.mxu0
      %v715 = vadd.f32 %v558, %v677
      %v716 = vadd.f32 %v559, %v680
      %v717 = vadd.f32 %v560, %v685
      %v718 = vadd.f32 %v561, %v688
      %v719 = vadd.f32 %v562, %v693
      %v720 = vadd.f32 %v563, %v696
      %v721 = vadd.f32 %v564, %v701
      %v722 = vadd.f32 %v565, %v704
      %v723 = vadd.f32 %v566, %v709
      %v724 = vadd.f32 %v567, %v712
      %v725 = vld [vmem:[%s165 + $0x2c] sm:$0x3]
      %s726 = scalar_lea.vmem %s1, 32
      %v727 = vld [vmem:[%s726] sm:$0xf]
      %v728 = vld [vmem:[%s726 + $0x4] sm:$0xf]
      %v730 = vunpack.c.l.b16 %v725
      %v731 = vpack.c.b16 %v730, %v730
      %vm732 = vsmask.f32 6400
      %v734 = vshrl.u32 %v604, 16
      %v736 = vrot.slane %v734, 1
      %v737 = vshll.u32 %v604, 16
      %v739 = vrot.slane %v737, 2
      %v740 = vor.u32 %v736, %v739
      %v742 = vshrl.u32 %v605, 16
      %v744 = vrot.slane %v742, 1
      %v745 = vshll.u32 %v605, 16
      %v747 = vrot.slane %v745, 2
      %v748 = vor.u32 %v744, %v747
      %v749 = vsel %vm732, %v740, %v748
      %v751 = vshrl.u32 %v606, 16
      %v753 = vrot.slane %v751, 1
      %v754 = vshll.u32 %v606, 16
      %v756 = vrot.slane %v754, 2
      %v757 = vor.u32 %v753, %v756
      %v758 = vsel %vm732, %v748, %v757
      %v760 = vshrl.u32 %v607, 16
      %v762 = vrot.slane %v760, 1
      %v763 = vshll.u32 %v607, 16
      %v765 = vrot.slane %v763, 2
      %v766 = vor.u32 %v762, %v765
      %v767 = vsel %vm732, %v757, %v766
      %v769 = vshrl.u32 %v608, 16
      %v771 = vrot.slane %v769, 1
      %v772 = vshll.u32 %v608, 16
      %v774 = vrot.slane %v772, 2
      %v775 = vor.u32 %v771, %v774
      %v776 = vsel %vm732, %v766, %v775
      %v778 = vshrl.u32 %v731, 16
      %v780 = vrot.slane %v778, 1
      %v781 = vshll.u32 %v731, 16
      %v783 = vrot.slane %v781, 2
      %v784 = vor.u32 %v780, %v783
      %v785 = vsel %vm732, %v775, %v784
      %v788 = vunpack.c.l.b16 %v727
      %v789 = vunpack.c.l.b16 %v728
      %v790 = vpack.c.b16 %v789, %v788
      %v793 = vsel %vm267, %v749, 0
      %v796 = vsel %vm267, %v758, 0
      %v799 = vsel %vm267, %v767, 0
      %v802 = vsel %vm267, %v776, 0
      %v805 = vsel %vm267, %v785, 0
      %807 = vmatprep.subr.bf16.mxu0 0
      %808 = vmatpush1.bf16.msra.mxu0 %v790
      %809 = vmatprep.subr.bf16.mxu0 0
      %810 = vmatpush1.bf16.msra.mxu0 0
      %811 = vmatprep.subr.bf16.mxu0 0
      %812 = vmatpush1.bf16.msra.mxu0 0
      %813 = vmatprep.subr.bf16.mxu0 0
      %814 = vmatpush1.bf16.msra.mxu0 0
      %815 = vmatprep.subr.bf16.mxu0 0
      %816 = vmatpush1.bf16.msra.mxu0 0
      %817 = vmatprep.subr.bf16.mxu0 0
      %818 = vmatpush1.bf16.msra.mxu0 0
      %819 = vmatprep.subr.bf16.mxu0 0
      %820 = vmatpush1.bf16.msra.mxu0 0
      %821 = vmatprep.subr.bf16.mxu0 0
      %822 = vmatpush1.bf16.msra.mxu0 0
      %823 = vmatprep.subr.bf16.mxu0 0
      %824 = vmatpush1.bf16.msra.mxu0 0
      %825 = vmatprep.subr.bf16.mxu0 0
      %826 = vmatpush1.bf16.msra.mxu0 0
      %827 = vmatprep.subr.bf16.mxu0 0
      %828 = vmatpush1.bf16.msra.mxu0 0
      %829 = vmatprep.subr.bf16.mxu0 0
      %830 = vmatpush1.bf16.msra.mxu0 0
      %831 = vmatprep.subr.bf16.mxu0 0
      %832 = vmatpush1.bf16.msra.mxu0 0
      %833 = vmatprep.subr.bf16.mxu0 0
      %834 = vmatpush1.bf16.msra.mxu0 0
      %835 = vmatprep.subr.bf16.mxu0 0
      %836 = vmatpush1.bf16.msra.mxu0 0
      %837 = vmatprep.subr.bf16.mxu0 0
      %838 = vmatpush1.bf16.msra.mxu0 0
      %839 = vmatprep.mubr.bf16.mxu0 0
      %840 = vmatmul.mubr.bf16.gmra.mrb[0].mxu0 %v793
      %v841 = vpop.f32.mrb[0].mxu0
      %v842 = vadd.f32 0.0, %v841
      %v843 = vpop.f32.mrb[0].mxu0
      %v844 = vpop.f32.mrb[0].mxu0
      %v845 = vadd.f32 0.0, %v844
      %v846 = vpop.f32.mrb[0].mxu0
      %847 = vmatprep.mubr.bf16.mxu0 0
      %848 = vmatmul.mubr.bf16.gmra.mrb[0].mxu0 %v796
      %v849 = vpop.f32.mrb[0].mxu0
      %v850 = vadd.f32 0.0, %v849
      %v851 = vpop.f32.mrb[0].mxu0
      %v852 = vpop.f32.mrb[0].mxu0
      %v853 = vadd.f32 0.0, %v852
      %v854 = vpop.f32.mrb[0].mxu0
      %855 = vmatprep.mubr.bf16.mxu0 0
      %856 = vmatmul.mubr.bf16.gmra.mrb[0].mxu0 %v799
      %v857 = vpop.f32.mrb[0].mxu0
      %v858 = vadd.f32 0.0, %v857
      %v859 = vpop.f32.mrb[0].mxu0
      %v860 = vpop.f32.mrb[0].mxu0
      %v861 = vadd.f32 0.0, %v860
      %v862 = vpop.f32.mrb[0].mxu0
      %863 = vmatprep.mubr.bf16.mxu0 0
      %864 = vmatmul.mubr.bf16.gmra.mrb[0].mxu0 %v802
      %v865 = vpop.f32.mrb[0].mxu0
      %v866 = vadd.f32 0.0, %v865
      %v867 = vpop.f32.mrb[0].mxu0
      %v868 = vpop.f32.mrb[0].mxu0
      %v869 = vadd.f32 0.0, %v868
      %v870 = vpop.f32.mrb[0].mxu0
      %871 = vmatprep.mubr.bf16.mxu0 0
      %872 = vmatmul.mubr.bf16.gmra.mrb[0].mxu0 %v805
      %v873 = vpop.f32.mrb[0].mxu0
      %v874 = vadd.f32 0.0, %v873
      %v875 = vpop.f32.mrb[0].mxu0
      %v876 = vpop.f32.mrb[0].mxu0
      %v877 = vadd.f32 0.0, %v876
      %v878 = vpop.f32.mrb[0].mxu0
      %879 = vdwg.mxu0
      %v880 = vadd.f32 %v715, %v842
      %v881 = vadd.f32 %v716, %v845
      %v882 = vadd.f32 %v717, %v850
      %v883 = vadd.f32 %v718, %v853
      %v884 = vadd.f32 %v719, %v858
      %v885 = vadd.f32 %v720, %v861
      %v886 = vadd.f32 %v721, %v866
      %v887 = vadd.f32 %v722, %v869
      %v888 = vadd.f32 %v723, %v874
      %v889 = vadd.f32 %v724, %v877
      %v890 = vld [vmem:[%s165 + $0x4] sm:$0xc]
      %s891 = scalar_lea.vmem %s1, 40
      %v892 = vld [vmem:[%s891] sm:$0xf]
      %v893 = vld [vmem:[%s891 + $0x4] sm:$0xf]
      %v895 = vunpack.c.l.b16 %v890
      %v896 = vpack.c.b16 %v594, %v895
      %vm897 = vcmask 1045504
      %v898 = vrot.slane %v896, 2
      %v899 = vrot.slane %v605, 2
      %v900 = vsel %vm897, %v898, %v899
      %v901 = vrot.slane %v606, 2
      %v902 = vsel %vm897, %v899, %v901
      %v903 = vrot.slane %v607, 2
      %v904 = vsel %vm897, %v901, %v903
      %v905 = vrot.slane %v608, 2
      %v906 = vsel %vm897, %v903, %v905
      %v907 = vrot.slane %v731, 2
      %v908 = vsel %vm897, %v905, %v907
      %v911 = vunpack.c.l.b16 %v892
      %v912 = vunpack.c.l.b16 %v893
      %v913 = vpack.c.b16 %v912, %v911
      %v916 = vsel %vm267, %v900, 0
      %v919 = vsel %vm267, %v902, 0
      %v922 = vsel %vm267, %v904, 0
      %v925 = vsel %vm267, %v906, 0
      %v928 = vsel %vm267, %v908, 0
      %930 = vmatprep.subr.bf16.mxu0 0
      %931 = vmatpush1.bf16.msra.mxu0 %v913
      %932 = vmatprep.subr.bf16.mxu0 0
      %933 = vmatpush1.bf16.msra.mxu0 0
      %934 = vmatprep.subr.bf16.mxu0 0
      %935 = vmatpush1.bf16.msra.mxu0 0
      %936 = vmatprep.subr.bf16.mxu0 0
      %937 = vmatpush1.bf16.msra.mxu0 0
      %938 = vmatprep.subr.bf16.mxu0 0
      %939 = vmatpush1.bf16.msra.mxu0 0
      %940 = vmatprep.subr.bf16.mxu0 0
      %941 = vmatpush1.bf16.msra.mxu0 0
      %942 = vmatprep.subr.bf16.mxu0 0
      %943 = vmatpush1.bf16.msra.mxu0 0
      %944 = vmatprep.subr.bf16.mxu0 0
      %945 = vmatpush1.bf16.msra.mxu0 0
      %946 = vmatprep.subr.bf16.mxu0 0
      %947 = vmatpush1.bf16.msra.mxu0 0
      %948 = vmatprep.subr.bf16.mxu0 0
      %949 = vmatpush1.bf16.msra.mxu0 0
      %950 = vmatprep.subr.bf16.mxu0 0
      %951 = vmatpush1.bf16.msra.mxu0 0
      %952 = vmatprep.subr.bf16.mxu0 0
      %953 = vmatpush1.bf16.msra.mxu0 0
      %954 = vmatprep.subr.bf16.mxu0 0
      %955 = vmatpush1.bf16.msra.mxu0 0
      %956 = vmatprep.subr.bf16.mxu0 0
      %957 = vmatpush1.bf16.msra.mxu0 0
      %958 = vmatprep.subr.bf16.mxu0 0
      %959 = vmatpush1.bf16.msra.mxu0 0
      %960 = vmatprep.subr.bf16.mxu0 0
      %961 = vmatpush1.bf16.msra.mxu0 0
      %962 = vmatprep.mubr.bf16.mxu0 0
      %963 = vmatmul.mubr.bf16.gmra.mrb[0].mxu0 %v916
      %v964 = vpop.f32.mrb[0].mxu0
      %v965 = vadd.f32 0.0, %v964
      %v966 = vpop.f32.mrb[0].mxu0
      %v967 = vpop.f32.mrb[0].mxu0
      %v968 = vadd.f32 0.0, %v967
      %v969 = vpop.f32.mrb[0].mxu0
      %970 = vmatprep.mubr.bf16.mxu0 0
      %971 = vmatmul.mubr.bf16.gmra.mrb[0].mxu0 %v919
      %v972 = vpop.f32.mrb[0].mxu0
      %v973 = vadd.f32 0.0, %v972
      %v974 = vpop.f32.mrb[0].mxu0
      %v975 = vpop.f32.mrb[0].mxu0
      %v976 = vadd.f32 0.0, %v975
      %v977 = vpop.f32.mrb[0].mxu0
      %978 = vmatprep.mubr.bf16.mxu0 0
      %979 = vmatmul.mubr.bf16.gmra.mrb[0].mxu0 %v922
      %v980 = vpop.f32.mrb[0].mxu0
      %v981 = vadd.f32 0.0, %v980
      %v982 = vpop.f32.mrb[0].mxu0
      %v983 = vpop.f32.mrb[0].mxu0
      %v984 = vadd.f32 0.0, %v983
      %v985 = vpop.f32.mrb[0].mxu0
      %986 = vmatprep.mubr.bf16.mxu0 0
      %987 = vmatmul.mubr.bf16.gmra.mrb[0].mxu0 %v925
      %v988 = vpop.f32.mrb[0].mxu0
      %v989 = vadd.f32 0.0, %v988
      %v990 = vpop.f32.mrb[0].mxu0
      %v991 = vpop.f32.mrb[0].mxu0
      %v992 = vadd.f32 0.0, %v991
      %v993 = vpop.f32.mrb[0].mxu0
      %994 = vmatprep.mubr.bf16.mxu0 0
      %995 = vmatmul.mubr.bf16.gmra.mrb[0].mxu0 %v928
      %v996 = vpop.f32.mrb[0].mxu0
      %v997 = vadd.f32 0.0, %v996
      %v998 = vpop.f32.mrb[0].mxu0
      %v999 = vpop.f32.mrb[0].mxu0
      %v1000 = vadd.f32 0.0, %v999
      %v1001 = vpop.f32.mrb[0].mxu0
      %1002 = vdwg.mxu0
      %v1003 = vadd.f32 %v880, %v965
      %v1004 = vadd.f32 %v881, %v968
      %v1005 = vadd.f32 %v882, %v973
      %v1006 = vadd.f32 %v883, %v976
      %v1007 = vadd.f32 %v884, %v981
      %v1008 = vadd.f32 %v885, %v984
      %v1009 = vadd.f32 %v886, %v989
      %v1010 = vadd.f32 %v887, %v992
      %v1011 = vadd.f32 %v888, %v997
      %v1012 = vadd.f32 %v889, %v1000
      %v1013 = vld [vmem:[%s165 + $0x8] sm:$0xc]
      %v1014 = vld [vmem:[%s165 + $0xc] sm:$0xf]
      %v1015 = vld [vmem:[%s165 + $0x10] sm:$0xf]
      %v1016 = vld [vmem:[%s165 + $0x14] sm:$0xf]
      %v1017 = vld [vmem:[%s165 + $0x18] sm:$0xf]
      %v1018 = vld [vmem:[%s165 + $0x1c] sm:$0xf]
      %v1019 = vld [vmem:[%s165 + $0x20] sm:$0xf]
      %v1020 = vld [vmem:[%s165 + $0x24] sm:$0xf]
      %v1021 = vld [vmem:[%s165 + $0x28] sm:$0xf]
      %v1022 = vld [vmem:[%s165 + $0x2c] sm:$0xf]
      %v1023 = vld [vmem:[%s165 + $0x30] sm:$0x3]
      %s1024 = scalar_lea.vmem %s1, 48
      %v1025 = vld [vmem:[%s1024] sm:$0xf]
      %v1026 = vld [vmem:[%s1024 + $0x4] sm:$0xf]
      %v1038 = vunpack.c.l.b16 %v1013
      %v1039 = vunpack.c.l.b16 %v1014
      %v1040 = vunpack.c.l.b16 %v1015
      %v1041 = vunpack.c.l.b16 %v1016
      %v1042 = vunpack.c.l.b16 %v1017
      %v1043 = vunpack.c.l.b16 %v1018
      %v1044 = vunpack.c.l.b16 %v1019
      %v1045 = vunpack.c.l.b16 %v1020
      %v1046 = vunpack.c.l.b16 %v1021
      %v1047 = vunpack.c.l.b16 %v1022
      %v1048 = vunpack.c.l.b16 %v1023
      %v1049 = vpack.c.b16 %v1039, %v1038
      %v1050 = vpack.c.b16 %v1041, %v1040
      %v1051 = vpack.c.b16 %v1043, %v1042
      %v1052 = vpack.c.b16 %v1045, %v1044
      %v1053 = vpack.c.b16 %v1047, %v1046
      %v1054 = vpack.c.b16 %v1048, %v1048
      %v1055 = vrot.slane %v1049, 2
      %v1056 = vrot.slane %v1050, 2
      %v1057 = vsel %vm897, %v1055, %v1056
      %v1058 = vrot.slane %v1051, 2
      %v1059 = vsel %vm897, %v1056, %v1058
      %v1060 = vrot.slane %v1052, 2
      %v1061 = vsel %vm897, %v1058, %v1060
      %v1062 = vrot.slane %v1053, 2
      %v1063 = vsel %vm897, %v1060, %v1062
      %v1064 = vrot.slane %v1054, 2
      %v1065 = vsel %vm897, %v1062, %v1064
      %v1068 = vunpack.c.l.b16 %v1025
      %v1069 = vunpack.c.l.b16 %v1026
      %v1070 = vpack.c.b16 %v1069, %v1068
      %v1073 = vsel %vm267, %v1057, 0
      %v1076 = vsel %vm267, %v1059, 0
      %v1079 = vsel %vm267, %v1061, 0
      %v1082 = vsel %vm267, %v1063, 0
      %v1085 = vsel %vm267, %v1065, 0
      %1087 = vmatprep.subr.bf16.mxu0 0
      %1088 = vmatpush1.bf16.msra.mxu0 %v1070
      %1089 = vmatprep.subr.bf16.mxu0 0
      %1090 = vmatpush1.bf16.msra.mxu0 0
      %1091 = vmatprep.subr.bf16.mxu0 0
      %1092 = vmatpush1.bf16.msra.mxu0 0
      %1093 = vmatprep.subr.bf16.mxu0 0
      %1094 = vmatpush1.bf16.msra.mxu0 0
      %1095 = vmatprep.subr.bf16.mxu0 0
      %1096 = vmatpush1.bf16.msra.mxu0 0
      %1097 = vmatprep.subr.bf16.mxu0 0
      %1098 = vmatpush1.bf16.msra.mxu0 0
      %1099 = vmatprep.subr.bf16.mxu0 0
      %1100 = vmatpush1.bf16.msra.mxu0 0
      %1101 = vmatprep.subr.bf16.mxu0 0
      %1102 = vmatpush1.bf16.msra.mxu0 0
      %1103 = vmatprep.subr.bf16.mxu0 0
      %1104 = vmatpush1.bf16.msra.mxu0 0
      %1105 = vmatprep.subr.bf16.mxu0 0
      %1106 = vmatpush1.bf16.msra.mxu0 0
      %1107 = vmatprep.subr.bf16.mxu0 0
      %1108 = vmatpush1.bf16.msra.mxu0 0
      %1109 = vmatprep.subr.bf16.mxu0 0
      %1110 = vmatpush1.bf16.msra.mxu0 0
      %1111 = vmatprep.subr.bf16.mxu0 0
      %1112 = vmatpush1.bf16.msra.mxu0 0
      %1113 = vmatprep.subr.bf16.mxu0 0
      %1114 = vmatpush1.bf16.msra.mxu0 0
      %1115 = vmatprep.subr.bf16.mxu0 0
      %1116 = vmatpush1.bf16.msra.mxu0 0
      %1117 = vmatprep.subr.bf16.mxu0 0
      %1118 = vmatpush1.bf16.msra.mxu0 0
      %1119 = vmatprep.mubr.bf16.mxu0 0
      %1120 = vmatmul.mubr.bf16.gmra.mrb[0].mxu0 %v1073
      %v1121 = vpop.f32.mrb[0].mxu0
      %v1122 = vadd.f32 0.0, %v1121
      %v1123 = vpop.f32.mrb[0].mxu0
      %v1124 = vpop.f32.mrb[0].mxu0
      %v1125 = vadd.f32 0.0, %v1124
      %v1126 = vpop.f32.mrb[0].mxu0
      %1127 = vmatprep.mubr.bf16.mxu0 0
      %1128 = vmatmul.mubr.bf16.gmra.mrb[0].mxu0 %v1076
      %v1129 = vpop.f32.mrb[0].mxu0
      %v1130 = vadd.f32 0.0, %v1129
      %v1131 = vpop.f32.mrb[0].mxu0
      %v1132 = vpop.f32.mrb[0].mxu0
      %v1133 = vadd.f32 0.0, %v1132
      %v1134 = vpop.f32.mrb[0].mxu0
      %1135 = vmatprep.mubr.bf16.mxu0 0
      %1136 = vmatmul.mubr.bf16.gmra.mrb[0].mxu0 %v1079
      %v1137 = vpop.f32.mrb[0].mxu0
      %v1138 = vadd.f32 0.0, %v1137
      %v1139 = vpop.f32.mrb[0].mxu0
      %v1140 = vpop.f32.mrb[0].mxu0
      %v1141 = vadd.f32 0.0, %v1140
      %v1142 = vpop.f32.mrb[0].mxu0
      %1143 = vmatprep.mubr.bf16.mxu0 0
      %1144 = vmatmul.mubr.bf16.gmra.mrb[0].mxu0 %v1082
      %v1145 = vpop.f32.mrb[0].mxu0
      %v1146 = vadd.f32 0.0, %v1145
      %v1147 = vpop.f32.mrb[0].mxu0
      %v1148 = vpop.f32.mrb[0].mxu0
      %v1149 = vadd.f32 0.0, %v1148
      %v1150 = vpop.f32.mrb[0].mxu0
      %1151 = vmatprep.mubr.bf16.mxu0 0
      %1152 = vmatmul.mubr.bf16.gmra.mrb[0].mxu0 %v1085
      %v1153 = vpop.f32.mrb[0].mxu0
      %v1154 = vadd.f32 0.0, %v1153
      %v1155 = vpop.f32.mrb[0].mxu0
      %v1156 = vpop.f32.mrb[0].mxu0
      %v1157 = vadd.f32 0.0, %v1156
      %v1158 = vpop.f32.mrb[0].mxu0
      %1159 = vdwg.mxu0
      %v1160 = vadd.f32 %v1003, %v1122
      %v1161 = vadd.f32 %v1004, %v1125
      %v1162 = vadd.f32 %v1005, %v1130
      %v1163 = vadd.f32 %v1006, %v1133
      %v1164 = vadd.f32 %v1007, %v1138
      %v1165 = vadd.f32 %v1008, %v1141
      %v1166 = vadd.f32 %v1009, %v1146
      %v1167 = vadd.f32 %v1010, %v1149
      %v1168 = vadd.f32 %v1011, %v1154
      %v1169 = vadd.f32 %v1012, %v1157
      %v1170 = vld [vmem:[%s165 + $0x30] sm:$0x7]
      %s1171 = scalar_lea.vmem %s1, 56
      %v1172 = vld [vmem:[%s1171] sm:$0xf]
      %v1173 = vld [vmem:[%s1171 + $0x4] sm:$0xf]
      %v1175 = vunpack.c.l.b16 %v1170
      %v1176 = vpack.c.b16 %v1175, %v1175
      %vm1177 = vsmask.f32 5376
      %v1179 = vshrl.u32 %v1049, 16
      %v1181 = vrot.slane %v1179, 2
      %v1182 = vshll.u32 %v1049, 16
      %v1184 = vrot.slane %v1182, 3
      %v1185 = vor.u32 %v1181, %v1184
      %v1187 = vshrl.u32 %v1050, 16
      %v1189 = vrot.slane %v1187, 2
      %v1190 = vshll.u32 %v1050, 16
      %v1192 = vrot.slane %v1190, 3
      %v1193 = vor.u32 %v1189, %v1192
      %v1194 = vsel %vm1177, %v1185, %v1193
      %v1196 = vshrl.u32 %v1051, 16
      %v1198 = vrot.slane %v1196, 2
      %v1199 = vshll.u32 %v1051, 16
      %v1201 = vrot.slane %v1199, 3
      %v1202 = vor.u32 %v1198, %v1201
      %v1203 = vsel %vm1177, %v1193, %v1202
      %v1205 = vshrl.u32 %v1052, 16
      %v1207 = vrot.slane %v1205, 2
      %v1208 = vshll.u32 %v1052, 16
      %v1210 = vrot.slane %v1208, 3
      %v1211 = vor.u32 %v1207, %v1210
      %v1212 = vsel %vm1177, %v1202, %v1211
      %v1214 = vshrl.u32 %v1053, 16
      %v1216 = vrot.slane %v1214, 2
      %v1217 = vshll.u32 %v1053, 16
      %v1219 = vrot.slane %v1217, 3
      %v1220 = vor.u32 %v1216, %v1219
      %v1221 = vsel %vm1177, %v1211, %v1220
      %v1223 = vshrl.u32 %v1176, 16
      %v1225 = vrot.slane %v1223, 2
      %v1226 = vshll.u32 %v1176, 16
      %v1228 = vrot.slane %v1226, 3
      %v1229 = vor.u32 %v1225, %v1228
      %v1230 = vsel %vm1177, %v1220, %v1229
      %v1233 = vunpack.c.l.b16 %v1172
      %v1234 = vunpack.c.l.b16 %v1173
      %v1235 = vpack.c.b16 %v1234, %v1233
      %v1238 = vsel %vm267, %v1194, 0
      %v1241 = vsel %vm267, %v1203, 0
      %v1244 = vsel %vm267, %v1212, 0
      %v1247 = vsel %vm267, %v1221, 0
      %v1250 = vsel %vm267, %v1230, 0
      %1252 = vmatprep.subr.bf16.mxu0 0
      %1253 = vmatpush1.bf16.msra.mxu0 %v1235
      %1254 = vmatprep.subr.bf16.mxu0 0
      %1255 = vmatpush1.bf16.msra.mxu0 0
      %1256 = vmatprep.subr.bf16.mxu0 0
      %1257 = vmatpush1.bf16.msra.mxu0 0
      %1258 = vmatprep.subr.bf16.mxu0 0
      %1259 = vmatpush1.bf16.msra.mxu0 0
      %1260 = vmatprep.subr.bf16.mxu0 0
      %1261 = vmatpush1.bf16.msra.mxu0 0
      %1262 = vmatprep.subr.bf16.mxu0 0
      %1263 = vmatpush1.bf16.msra.mxu0 0
      %1264 = vmatprep.subr.bf16.mxu0 0
      %1265 = vmatpush1.bf16.msra.mxu0 0
      %1266 = vmatprep.subr.bf16.mxu0 0
      %1267 = vmatpush1.bf16.msra.mxu0 0
      %1268 = vmatprep.subr.bf16.mxu0 0
      %1269 = vmatpush1.bf16.msra.mxu0 0
      %1270 = vmatprep.subr.bf16.mxu0 0
      %1271 = vmatpush1.bf16.msra.mxu0 0
      %1272 = vmatprep.subr.bf16.mxu0 0
      %1273 = vmatpush1.bf16.msra.mxu0 0
      %1274 = vmatprep.subr.bf16.mxu0 0
      %1275 = vmatpush1.bf16.msra.mxu0 0
      %1276 = vmatprep.subr.bf16.mxu0 0
      %1277 = vmatpush1.bf16.msra.mxu0 0
      %1278 = vmatprep.subr.bf16.mxu0 0
      %1279 = vmatpush1.bf16.msra.mxu0 0
      %1280 = vmatprep.subr.bf16.mxu0 0
      %1281 = vmatpush1.bf16.msra.mxu0 0
      %1282 = vmatprep.subr.bf16.mxu0 0
      %1283 = vmatpush1.bf16.msra.mxu0 0
      %1284 = vmatprep.mubr.bf16.mxu0 0
      %1285 = vmatmul.mubr.bf16.gmra.mrb[0].mxu0 %v1238
      %v1286 = vpop.f32.mrb[0].mxu0
      %v1287 = vadd.f32 0.0, %v1286
      %v1288 = vpop.f32.mrb[0].mxu0
      %v1289 = vpop.f32.mrb[0].mxu0
      %v1290 = vadd.f32 0.0, %v1289
      %v1291 = vpop.f32.mrb[0].mxu0
      %1292 = vmatprep.mubr.bf16.mxu0 0
      %1293 = vmatmul.mubr.bf16.gmra.mrb[0].mxu0 %v1241
      %v1294 = vpop.f32.mrb[0].mxu0
      %v1295 = vadd.f32 0.0, %v1294
      %v1296 = vpop.f32.mrb[0].mxu0
      %v1297 = vpop.f32.mrb[0].mxu0
      %v1298 = vadd.f32 0.0, %v1297
      %v1299 = vpop.f32.mrb[0].mxu0
      %1300 = vmatprep.mubr.bf16.mxu0 0
      %1301 = vmatmul.mubr.bf16.gmra.mrb[0].mxu0 %v1244
      %v1302 = vpop.f32.mrb[0].mxu0
      %v1303 = vadd.f32 0.0, %v1302
      %v1304 = vpop.f32.mrb[0].mxu0
      %v1305 = vpop.f32.mrb[0].mxu0
      %v1306 = vadd.f32 0.0, %v1305
      %v1307 = vpop.f32.mrb[0].mxu0
      %1308 = vmatprep.mubr.bf16.mxu0 0
      %1309 = vmatmul.mubr.bf16.gmra.mrb[0].mxu0 %v1247
      %v1310 = vpop.f32.mrb[0].mxu0
      %v1311 = vadd.f32 0.0, %v1310
      %v1312 = vpop.f32.mrb[0].mxu0
      %v1313 = vpop.f32.mrb[0].mxu0
      %v1314 = vadd.f32 0.0, %v1313
      %v1315 = vpop.f32.mrb[0].mxu0
      %1316 = vmatprep.mubr.bf16.mxu0 0
      %1317 = vmatmul.mubr.bf16.gmra.mrb[0].mxu0 %v1250
      %v1318 = vpop.f32.mrb[0].mxu0
      %v1319 = vadd.f32 0.0, %v1318
      %v1320 = vpop.f32.mrb[0].mxu0
      %v1321 = vpop.f32.mrb[0].mxu0
      %v1322 = vadd.f32 0.0, %v1321
      %v1323 = vpop.f32.mrb[0].mxu0
      %1324 = vdwg.mxu0
      %v1325 = vadd.f32 %v1160, %v1287
      %v1326 = vadd.f32 %v1161, %v1290
      %v1327 = vadd.f32 %v1162, %v1295
      %v1328 = vadd.f32 %v1163, %v1298
      %v1329 = vadd.f32 %v1164, %v1303
      %v1330 = vadd.f32 %v1165, %v1306
      %v1331 = vadd.f32 %v1166, %v1311
      %v1332 = vadd.f32 %v1167, %v1314
      %v1333 = vadd.f32 %v1168, %v1319
      %v1334 = vadd.f32 %v1169, %v1322
      %v1335 = vld [vmem:[%s165 + $0x8] sm:$0x8]
      %s1336 = scalar_lea.vmem %s1, 64
      %v1337 = vld [vmem:[%s1336] sm:$0xf]
      %v1338 = vld [vmem:[%s1336 + $0x4] sm:$0xf]
      %v1340 = vunpack.c.l.b16 %v1335
      %v1341 = vpack.c.b16 %v1039, %v1340
      %vm1342 = vcmask 1044480
      %v1343 = vrot.slane %v1341, 3
      %v1344 = vrot.slane %v1050, 3
      %v1345 = vsel %vm1342, %v1343, %v1344
      %v1346 = vrot.slane %v1051, 3
      %v1347 = vsel %vm1342, %v1344, %v1346
      %v1348 = vrot.slane %v1052, 3
      %v1349 = vsel %vm1342, %v1346, %v1348
      %v1350 = vrot.slane %v1053, 3
      %v1351 = vsel %vm1342, %v1348, %v1350
      %v1352 = vrot.slane %v1176, 3
      %v1353 = vsel %vm1342, %v1350, %v1352
      %v1356 = vunpack.c.l.b16 %v1337
      %v1357 = vunpack.c.l.b16 %v1338
      %v1358 = vpack.c.b16 %v1357, %v1356
      %v1361 = vsel %vm267, %v1345, 0
      %v1364 = vsel %vm267, %v1347, 0
      %v1367 = vsel %vm267, %v1349, 0
      %v1370 = vsel %vm267, %v1351, 0
      %v1373 = vsel %vm267, %v1353, 0
      %1375 = vmatprep.subr.bf16.mxu0 0
      %1376 = vmatpush1.bf16.msra.mxu0 %v1358
      %1377 = vmatprep.subr.bf16.mxu0 0
      %1378 = vmatpush1.bf16.msra.mxu0 0
      %1379 = vmatprep.subr.bf16.mxu0 0
      %1380 = vmatpush1.bf16.msra.mxu0 0
      %1381 = vmatprep.subr.bf16.mxu0 0
      %1382 = vmatpush1.bf16.msra.mxu0 0
      %1383 = vmatprep.subr.bf16.mxu0 0
      %1384 = vmatpush1.bf16.msra.mxu0 0
      %1385 = vmatprep.subr.bf16.mxu0 0
      %1386 = vmatpush1.bf16.msra.mxu0 0
      %1387 = vmatprep.subr.bf16.mxu0 0
      %1388 = vmatpush1.bf16.msra.mxu0 0
      %1389 = vmatprep.subr.bf16.mxu0 0
      %1390 = vmatpush1.bf16.msra.mxu0 0
      %1391 = vmatprep.subr.bf16.mxu0 0
      %1392 = vmatpush1.bf16.msra.mxu0 0
      %1393 = vmatprep.subr.bf16.mxu0 0
      %1394 = vmatpush1.bf16.msra.mxu0 0
      %1395 = vmatprep.subr.bf16.mxu0 0
      %1396 = vmatpush1.bf16.msra.mxu0 0
      %1397 = vmatprep.subr.bf16.mxu0 0
      %1398 = vmatpush1.bf16.msra.mxu0 0
      %1399 = vmatprep.subr.bf16.mxu0 0
      %1400 = vmatpush1.bf16.msra.mxu0 0
      %1401 = vmatprep.subr.bf16.mxu0 0
      %1402 = vmatpush1.bf16.msra.mxu0 0
      %1403 = vmatprep.subr.bf16.mxu0 0
      %1404 = vmatpush1.bf16.msra.mxu0 0
      %1405 = vmatprep.subr.bf16.mxu0 0
      %1406 = vmatpush1.bf16.msra.mxu0 0
      %1407 = vmatprep.mubr.bf16.mxu0 0
      %1408 = vmatmul.mubr.bf16.gmra.mrb[0].mxu0 %v1361
      %v1409 = vpop.f32.mrb[0].mxu0
      %v1410 = vadd.f32 0.0, %v1409
      %v1411 = vpop.f32.mrb[0].mxu0
      %v1412 = vpop.f32.mrb[0].mxu0
      %v1413 = vadd.f32 0.0, %v1412
      %v1414 = vpop.f32.mrb[0].mxu0
      %1415 = vmatprep.mubr.bf16.mxu0 0
      %1416 = vmatmul.mubr.bf16.gmra.mrb[0].mxu0 %v1364
      %v1417 = vpop.f32.mrb[0].mxu0
      %v1418 = vadd.f32 0.0, %v1417
      %v1419 = vpop.f32.mrb[0].mxu0
      %v1420 = vpop.f32.mrb[0].mxu0
      %v1421 = vadd.f32 0.0, %v1420
      %v1422 = vpop.f32.mrb[0].mxu0
      %1423 = vmatprep.mubr.bf16.mxu0 0
      %1424 = vmatmul.mubr.bf16.gmra.mrb[0].mxu0 %v1367
      %v1425 = vpop.f32.mrb[0].mxu0
      %v1426 = vadd.f32 0.0, %v1425
      %v1427 = vpop.f32.mrb[0].mxu0
      %v1428 = vpop.f32.mrb[0].mxu0
      %v1429 = vadd.f32 0.0, %v1428
      %v1430 = vpop.f32.mrb[0].mxu0
      %1431 = vmatprep.mubr.bf16.mxu0 0
      %1432 = vmatmul.mubr.bf16.gmra.mrb[0].mxu0 %v1370
      %v1433 = vpop.f32.mrb[0].mxu0
      %v1434 = vadd.f32 0.0, %v1433
      %v1435 = vpop.f32.mrb[0].mxu0
      %v1436 = vpop.f32.mrb[0].mxu0
      %v1437 = vadd.f32 0.0, %v1436
      %v1438 = vpop.f32.mrb[0].mxu0
      %1439 = vmatprep.mubr.bf16.mxu0 0
      %1440 = vmatmul.mubr.bf16.gmra.mrb[0].mxu0 %v1373
      %v1441 = vpop.f32.mrb[0].mxu0
      %v1442 = vadd.f32 0.0, %v1441
      %v1443 = vpop.f32.mrb[0].mxu0
      %v1444 = vpop.f32.mrb[0].mxu0
      %v1445 = vadd.f32 0.0, %v1444
      %v1446 = vpop.f32.mrb[0].mxu0
      %1447 = vdwg.mxu0
      %v1448 = vadd.f32 %v1325, %v1410
      %v1449 = vadd.f32 %v1326, %v1413
      %v1450 = vadd.f32 %v1327, %v1418
      %v1451 = vadd.f32 %v1328, %v1421
      %v1452 = vadd.f32 %v1329, %v1426
      %v1453 = vadd.f32 %v1330, %v1429
      %v1454 = vadd.f32 %v1331, %v1434
      %v1455 = vadd.f32 %v1332, %v1437
      %v1456 = vadd.f32 %v1333, %v1442
      %v1457 = vadd.f32 %v1334, %v1445
      %v1458 = vld [vmem:[%s2] sm:$0x1]
      %v1460 = vlaneseq
      %v1461 = vshrl.u32 %v1460, 7
      %v1462 = vsub.s32 0, %v1461
      %v1463 = vrot.slane %v1458, %v1462
      %v1465 = vadd.f32 %v1448, %v1463
      %v1466 = vadd.f32 %v1449, %v1463
      %v1467 = vadd.f32 %v1450, %v1463
      %v1468 = vadd.f32 %v1451, %v1463
      %v1469 = vadd.f32 %v1452, %v1463
      %v1470 = vadd.f32 %v1453, %v1463
      %v1471 = vadd.f32 %v1454, %v1463
      %v1472 = vadd.f32 %v1455, %v1463
      %v1473 = vadd.f32 %v1456, %v1463
      %v1474 = vadd.f32 %v1457, %v1463
      %v1475 = vmax.f32 %v1465, 0.0
      %v1476 = vmax.f32 %v1466, 0.0
      %v1477 = vmax.f32 %v1467, 0.0
      %v1478 = vmax.f32 %v1468, 0.0
      %v1479 = vmax.f32 %v1469, 0.0
      %v1480 = vmax.f32 %v1470, 0.0
      %v1481 = vmax.f32 %v1471, 0.0
      %v1482 = vmax.f32 %v1472, 0.0
      %v1483 = vmax.f32 %v1473, 0.0
      %v1484 = vmax.f32 %v1474, 0.0
      %1485 = vst.msk [vmem:[%s170] sm:$0xff] %vm267, %v1475
      %1486 = vst.msk [vmem:[%s170 + $0x8] sm:$0xff] %vm267, %v1476
      %1487 = vst.msk [vmem:[%s170 + $0x10] sm:$0xff] %vm267, %v1477
      %1488 = vst.msk [vmem:[%s170 + $0x18] sm:$0xff] %vm267, %v1478
      %1489 = vst.msk [vmem:[%s170 + $0x20] sm:$0xff] %vm267, %v1479
      %1490 = vst.msk [vmem:[%s170 + $0x28] sm:$0xff] %vm267, %v1480
      %1491 = vst.msk [vmem:[%s170 + $0x30] sm:$0xff] %vm267, %v1481
      %1492 = vst.msk [vmem:[%s170 + $0x38] sm:$0xff] %vm267, %v1482
      %1493 = vst.msk [vmem:[%s170 + $0x40] sm:$0xff] %vm267, %v1483
      %1494 = vst.msk [vmem:[%s170 + $0x48] sm:$0xff] %vm267, %v1484
      %p1495 = scmp.lt.s32.totalorder %s14, 1
      %s1496 = scalar_select %p1495, %s14, 1
      %s1497 = smul.addr %s1496, 10
      %s1498 = smul.addr %s1497, 8
      %s1499 = scalar_lea.vmem %s3, %s1498
      // Predicated region
      $region33: #{conv_down_forward.5} parent=31 // pred_check
        %p1500 = pneg %p100
      $region34: #{conv_down_forward.5} parent=31 // pred_check_branch
        %1502 = sbr.rel (%p1500) target = $region36
      $region35: #{conv_down_forward.5} parent=31 // pred_region
        _
      $region36: #{conv_down_forward.5} parent=31 // pred_fallthru
        _
    $region32: #{conv_down_forward.5} parent=5 // pred_fallthru
      _
    %p1503 = scmp.le.s32.totalorder 2, %s9
    // Predicated region
    $region37: #{conv_down_forward.5} parent=5 // pred_check
      %p1504 = pneg %p1503
    $region38: #{conv_down_forward.5} parent=5 // pred_check_branch
      %1506 = sbr.rel (%p1504) target = $region40
    $region39: #{conv_down_forward.5} parent=5 // pred_region
      %s1507 = ssub.s32 %s9, 2
      // Predicated region
      $region41: #{conv_down_forward.5} parent=39 // pred_check
        %p1508 = pneg %p106
      $region42: #{conv_down_forward.5} parent=39 // pred_check_branch
        %1510 = sbr.rel (%p1508) target = $region44
      $region43: #{conv_down_forward.5} parent=39 // pred_region
        %p1511 = scmp.lt.s32.totalorder %s15, 1
        %s1512 = scalar_select %p1511, %s15, 1
        %s1513 = smul.addr %s1512, 10
        %s1514 = smul.addr %s1513, 8
        %s1515 = scalar_lea.vmem %s3, %s1514
      $region44: #{conv_down_forward.5} parent=39 // pred_fallthru
        _
    $region40: #{conv_down_forward.5} parent=5 // pred_fallthru
      _
  $region6: #{conv_down_forward.5} parent=0 // loop_footer
    %s13 = sadd.s32 1, %s9
  $region7: #{conv_down_forward.5} parent=0 // loop_footer_branch
    %8 = sbr.rel target = $region3
  $region8: #{conv_down_forward.5} parent=0 // loop_exit
    _

</llo_original>
